<compile_context>
chip_gen: v7x
topology: tpu7x:2x2x1
jax: 0.10.0
libtpu: 0.0.40
codegen_flags: <defaults>
</compile_context>

<pallas_src>
import functools
import math

import jax
import jax.numpy as jnp
from jax.experimental import pallas as pl
from jax.experimental.pallas import tpu as pltpu


# ----------------------- optimized Pallas kernel --------------------------- #
def _vwgcn_kernel_opt(supports_ref, x_ref, w_ref, b_ref, out_ref, *,
                      K, N, Cin, Cout, Bblk):
    """One batch block per grid step.

    supports_ref : (K*N, N)         batch-invariant, rows ordered (k, n)
    x_ref        : (N, Bblk*Cin)    columns ordered (b, i)  -> wide MXU RHS
    w_ref        : (N, K*Cin, Cout) per-node weights, rows ordered (k, i)
    b_ref        : (N, Cout)
    out_ref      : (N, Bblk*Cout)   columns ordered (b, o)  -> lane-dense store
    """
    x2 = x_ref[...].astype(jnp.float32)
    # (1) all K Chebyshev/adaptive supports in ONE wide MXU matmul:
    #     xg[(k,n), (b,i)] = sum_m supports[k,n,m] * x[b,m,i]
    xg = jnp.dot(supports_ref[...].astype(jnp.float32), x2,
                 preferred_element_type=jnp.float32)          # (K*N, Bblk*Cin)
    # (2) regroup so the contraction dim (k, i) sits on the last axis.
    #     K is small -> static slice per k, then lane-concat.
    parts = [xg[k * N:(k + 1) * N, :].reshape(N, Bblk, Cin) for k in range(K)]
    xg_n = jnp.concatenate(parts, axis=-1)                    # (N, Bblk, K*Cin)
    # (3) per-node weight contraction as a node-batched MXU matmul:
    #     out[n, b, o] = sum_c xg_n[n, b, c] * W[n, c, o]
    out = jnp.einsum('nbc,nco->nbo', xg_n,
                     w_ref[...].astype(jnp.float32),
                     preferred_element_type=jnp.float32)      # (N, Bblk, Cout)
    out = out + b_ref[...].astype(jnp.float32)[:, None, :]
    # (4) lane-dense store: fold (b, o) into the last axis.
    out_ref[...] = out.reshape(N, Bblk * Cout).astype(out_ref.dtype)


def _pick_batch_block(B, Cin, Cout, target_lanes=512):
    """Pick a batch block so x/out kernel blocks are lane-dense and legal."""
    if B * max(Cin, Cout) <= target_lanes:
        return B                       # single grid step, full-extent blocks
    # multi-step grid: b_blk*Cin and b_blk*Cout must be 128-aligned
    step = math.lcm(128 // math.gcd(Cin, 128), 128 // math.gcd(Cout, 128))
    b_blk = max(step, (target_lanes // max(Cin, Cout)) // step * step)
    return b_blk


def _vwgcn_pallas_opt(x, supports, weights_nco, bias, *, single_buffer_consts):
    B, N, Cin = x.shape
    K = supports.shape[0]
    Cout = bias.shape[1]

    b_blk = _pick_batch_block(B, Cin, Cout)
    n_blocks = -(-B // b_blk)
    B_pad = n_blocks * b_blk
    if B_pad != B:
        x = jnp.pad(x, ((0, B_pad - B), (0, 0), (0, 0)))

    # Layout plumbing done in plain XLA (cheap): wide, lane-dense operands.
    x2 = jnp.transpose(x, (1, 0, 2)).reshape(N, B_pad * Cin)  # cols = (b, i)
    supports2 = supports.reshape(K * N, N)                    # rows = (k, n)

    def const_spec(shape):
        idx = lambda b: (0,) * len(shape)
        if single_buffer_consts:
            # batch-invariant block: one VMEM buffer is enough (no re-DMA).
            return pl.BlockSpec(shape, idx, pipeline_mode=pl.Buffered(1))
        return pl.BlockSpec(shape, idx)

    kernel = functools.partial(_vwgcn_kernel_opt, K=K, N=N, Cin=Cin,
                               Cout=Cout, Bblk=b_blk)
    out2 = pl.pallas_call(
        kernel,
        out_shape=jax.ShapeDtypeStruct((N, B_pad * Cout), x.dtype),
        grid=(n_blocks,),
        in_specs=[
            const_spec((K * N, N)),
            pl.BlockSpec((N, b_blk * Cin), lambda b: (0, b)),
            const_spec((N, K * Cin, Cout)),
            const_spec((N, Cout)),
        ],
        out_specs=pl.BlockSpec((N, b_blk * Cout), lambda b: (0, b)),
        compiler_params=pltpu.CompilerParams(
            dimension_semantics=("parallel",),
            vmem_limit_bytes=64 * 1024 * 1024,   # explicit budget (v7x: 64 MiB)
        ),
    )(supports2, x2, weights_nco, bias)

    out = out2.reshape(N, B_pad, Cout).transpose(1, 0, 2)
    return out[:B]


# -------------------- proven-safe fallback Pallas kernel ------------------- #
def _vwgcn_kernel_basic(supports_ref, x_ref, w_ref, b_ref, out_ref, *, K):
    x = x_ref[0].astype(jnp.float32)                 # (N, Cin)
    acc = b_ref[...].astype(jnp.float32)             # (N, Cout)
    for k in range(K):
        xgk = jnp.dot(supports_ref[k], x, preferred_element_type=jnp.float32)
        acc = acc + jnp.sum(xgk[:, :, None] * w_ref[k].astype(jnp.float32), axis=1)
    out_ref[0] = acc.astype(out_ref.dtype)


def _vwgcn_pallas_basic(x, supports, weights_knio, bias):
    B, N, Cin = x.shape
    K = supports.shape[0]
    Cout = bias.shape[1]
    kernel = functools.partial(_vwgcn_kernel_basic, K=K)
    return pl.pallas_call(
        kernel,
        out_shape=jax.ShapeDtypeStruct((B, N, Cout), x.dtype),
        grid=(B,),
        in_specs=[
            pl.BlockSpec((K, N, N), lambda b: (0, 0, 0)),
            pl.BlockSpec((1, N, Cin), lambda b: (b, 0, 0)),
            pl.BlockSpec((K, N, Cin, Cout), lambda b: (0, 0, 0, 0)),
            pl.BlockSpec((N, Cout), lambda b: (0, 0)),
        ],
        out_specs=pl.BlockSpec((1, N, Cout), lambda b: (b, 0, 0)),
        compiler_params=pltpu.CompilerParams(dimension_semantics=("parallel",)),
    )(supports, x, weights_knio, bias)


# -------------------------- dispatcher / wrapper --------------------------- #
def vwgcn_pallas(x, supports, weights_nkio, bias):
    N, K, Cin, Cout = weights_nkio.shape
    w_nco = weights_nkio.reshape(N, K * Cin, Cout)
    # Prefer the MXU-wide kernel; degrade gracefully if a layout feature
    # (Buffered(1) single-buffering, in-kernel relayout) is unavailable.
    for single_buffer in (True, False):
        try:
            return jax.block_until_ready(
                _vwgcn_pallas_opt(x, supports, w_nco, bias,
                                  single_buffer_consts=single_buffer))
        except Exception:
            continue
    return _vwgcn_pallas_basic(
        x, supports, jnp.transpose(weights_nkio, (1, 0, 2, 3)), bias)


# ------------------------------ glue (JAX) --------------------------------- #
def build_supports(node_embeddings, lap, cheb_k, add_apt):
    """support_set = [I, lap, T_2, ..., T_{cheb_k-1}] (+ adaptive support)."""
    n = node_embeddings.shape[0]
    support_set = [jnp.eye(n, dtype=lap.dtype), lap]
    for _ in range(2, cheb_k):
        support_set.append(2.0 * lap @ support_set[-1] - support_set[-2])
    if add_apt:
        sim = jax.nn.relu(node_embeddings @ node_embeddings.T)
        support_set.append(jax.nn.softmax(sim, axis=1))
    return jnp.stack(support_set, axis=0)  # (K, N, N)


def vwgcn_forward(x, node_embeddings, lap, weights_pool, bias_pool,
                  cheb_k, add_apt):
    # TODO(synk): nn.Dropout on node_embeddings is stochastic (training-mode
    # only); this implements the deterministic (dropout_rate == 0 / eval) path.
    supports = build_supports(node_embeddings, lap, cheb_k, add_apt)       # (K,N,N)
    weights_nkio = jnp.einsum('nd,dkio->nkio', node_embeddings, weights_pool)
    bias = node_embeddings @ bias_pool                                     # (N, Cout)
    return vwgcn_pallas(x, supports, weights_nkio, bias)


# ------------------------- pure-JAX reference ------------------------------ #
def vwgcn_reference(x, node_embeddings, lap, weights_pool, bias_pool,
                    cheb_k, add_apt):
    supports = build_supports(node_embeddings, lap, cheb_k, add_apt)
    weights = jnp.einsum('nd,dkio->nkio', node_embeddings, weights_pool)
    bias = node_embeddings @ bias_pool
    x_g = jnp.einsum('knm,bmc->bknc', supports, x)
    x_g = jnp.transpose(x_g, (0, 2, 1, 3))            # (B, N, K, C)
    return jnp.einsum('bnki,nkio->bno', x_g, weights) + bias


# --------------------------------- main ------------------------------------ #
if __name__ == "__main__":
    # module config (dropout=0 -> deterministic forward)
    B, N, C_in, C_out = 2, 16, 4, 8
    embed_dim, cheb_k, add_apt = 8, 3, True
    K = cheb_k + 1 if add_apt else cheb_k

    key = jax.random.PRNGKey(0)
    kx, ke, kl, kw, kb = jax.random.split(key, 5)

    x = jax.random.normal(kx, (B, N, C_in), dtype=jnp.float32)
    node_embeddings = jax.random.normal(ke, (N, embed_dim), dtype=jnp.float32)
    # symmetric, row-normalized Laplacian-like matrix
    a = jax.random.uniform(kl, (N, N), dtype=jnp.float32)
    a = 0.5 * (a + a.T)
    lap = a / jnp.sum(a, axis=1, keepdims=True)

    weights_pool = 0.1 * jax.random.normal(
        kw, (embed_dim, K, C_in, C_out), dtype=jnp.float32)
    bias_pool = 0.1 * jax.random.normal(kb, (embed_dim, C_out), dtype=jnp.float32)

    out = vwgcn_forward(x, node_embeddings, lap, weights_pool, bias_pool,
                        cheb_k, add_apt)
    out = jax.block_until_ready(out)

    ref = vwgcn_reference(x, node_embeddings, lap, weights_pool, bias_pool,
                          cheb_k, add_apt)
    assert out.shape == (B, N, C_out)
    assert jnp.allclose(out, ref, atol=2e-4, rtol=2e-4), "mismatch vs reference"

    print("KERNEL_OK")
</pallas_src>

<mosaic_0001>
module attributes {stable_mosaic.version = 11 : i64} {
  func.func @_vwgcn_kernel_opt(%arg0: i32, %arg1: memref<64x16xf32, #tpu.memory_space<vmem>>, %arg2: memref<16x8xf32, #tpu.memory_space<vmem>>, %arg3: memref<16x16x8xf32, #tpu.memory_space<vmem>>, %arg4: memref<16x8xf32, #tpu.memory_space<vmem>>, %arg5: memref<16x16xf32, #tpu.memory_space<vmem>>) attributes {dimension_semantics = [#tpu.dimension_semantics<parallel>], iteration_bounds = array<i64: 1>, scalar_prefetch = 0 : i64, scratch_operands = 0 : i64, tpu.core_type = #tpu.core_type<tc>, window_params = [{pipeline_mode = #tpu.pipeline_mode<synchronous>, transform_indices = @transform_0, window_bounds = array<i64: 64, 16>}, {transform_indices = @transform_1, window_bounds = array<i64: 16, 8>}, {pipeline_mode = #tpu.pipeline_mode<synchronous>, transform_indices = @transform_2, window_bounds = array<i64: 16, 16, 8>}, {pipeline_mode = #tpu.pipeline_mode<synchronous>, transform_indices = @transform_3, window_bounds = array<i64: 16, 8>}, {transform_indices = @transform_4, window_bounds = array<i64: 16, 16>}]} {
    %c0 = arith.constant 0 : index
    %c0_0 = arith.constant 0 : index
    %0 = vector.load %arg2[%c0, %c0_0] : memref<16x8xf32, #tpu.memory_space<vmem>>, vector<16x8xf32>
    %c0_1 = arith.constant 0 : index
    %c0_2 = arith.constant 0 : index
    %1 = vector.load %arg1[%c0_1, %c0_2] : memref<64x16xf32, #tpu.memory_space<vmem>>, vector<64x16xf32>
    %cst = arith.constant dense<0.000000e+00> : vector<64x8xf32>
    %2 = tpu.matmul %1, %0, %cst {dimension_numbers = #tpu.dot_dimension_numbers<[1], [0], [0], [1], [0, 0, 1, 1], [], []>} : vector<64x16xf32>, vector<16x8xf32>, vector<64x8xf32> -> vector<64x8xf32>
    %3 = vector.extract_strided_slice %2 {offsets = [0, 0], sizes = [16, 8], strides = [1, 1]} : vector<64x8xf32> to vector<16x8xf32>
    %4 = vector.shape_cast %3 : vector<16x8xf32> to vector<16x2x4xf32>
    %5 = vector.extract_strided_slice %2 {offsets = [16, 0], sizes = [16, 8], strides = [1, 1]} : vector<64x8xf32> to vector<16x8xf32>
    %6 = vector.shape_cast %5 : vector<16x8xf32> to vector<16x2x4xf32>
    %7 = vector.extract_strided_slice %2 {offsets = [32, 0], sizes = [16, 8], strides = [1, 1]} : vector<64x8xf32> to vector<16x8xf32>
    %8 = vector.shape_cast %7 : vector<16x8xf32> to vector<16x2x4xf32>
    %9 = vector.extract_strided_slice %2 {offsets = [48, 0], sizes = [16, 8], strides = [1, 1]} : vector<64x8xf32> to vector<16x8xf32>
    %10 = vector.shape_cast %9 : vector<16x8xf32> to vector<16x2x4xf32>
    %11 = tpu.concatenate %4, %6, %8, %10 in 2 : vector<16x2x4xf32>, vector<16x2x4xf32>, vector<16x2x4xf32>, vector<16x2x4xf32> -> vector<16x2x16xf32>
    %c0_3 = arith.constant 0 : index
    %c0_4 = arith.constant 0 : index
    %c0_5 = arith.constant 0 : index
    %12 = vector.load %arg3[%c0_3, %c0_4, %c0_5] : memref<16x16x8xf32, #tpu.memory_space<vmem>>, vector<16x16x8xf32>
    "tpu.trace_start"() <{level = 10 : i32, message = "nbc,nco->nbo"}> : () -> ()
    %cst_6 = arith.constant dense<0.000000e+00> : vector<16x2x8xf32>
    %13 = tpu.matmul %11, %12, %cst_6 {dimension_numbers = #tpu.dot_dimension_numbers<[2], [1], [1], [2], [0, 0, 0, 1, 1, 2], [0], [0]>} : vector<16x2x16xf32>, vector<16x16x8xf32>, vector<16x2x8xf32> -> vector<16x2x8xf32>
    "tpu.trace_stop"() : () -> ()
    %c0_7 = arith.constant 0 : index
    %c0_8 = arith.constant 0 : index
    %14 = vector.load %arg4[%c0_7, %c0_8] : memref<16x8xf32, #tpu.memory_space<vmem>>, vector<16x8xf32>
    %15 = vector.shape_cast %14 : vector<16x8xf32> to vector<16x1x8xf32>
    %16 = vector.broadcast %15 : vector<16x1x8xf32> to vector<16x2x8xf32>
    %17 = arith.addf %13, %16 : vector<16x2x8xf32>
    %18 = vector.shape_cast %17 : vector<16x2x8xf32> to vector<16x16xf32>
    %c0_9 = arith.constant 0 : index
    %c0_10 = arith.constant 0 : index
    %19 = vector.load %arg5[%c0_9, %c0_10] : memref<16x16xf32, #tpu.memory_space<vmem>>, vector<16x16xf32>
    tpu.vector_store %arg5[%c0_9, %c0_10], %18 {strides = array<i32>} : memref<16x16xf32, #tpu.memory_space<vmem>>, vector<16x16xf32>,
    return
  }
  func.func @transform_0(%arg0: i32) -> (i32, i32) {
    %c0_i32 = arith.constant 0 : i32
    %c0_i32_0 = arith.constant 0 : i32
    %c0_i32_1 = arith.constant 0 : i32
    return %c0_i32, %c0_i32_0 : i32, i32
  }
  func.func @transform_1(%arg0: i32) -> (i32, i32) {
    %c0_i32 = arith.constant 0 : i32
    %c0_i32_0 = arith.constant 0 : i32
    return %c0_i32, %arg0 : i32, i32
  }
  func.func @transform_2(%arg0: i32) -> (i32, i32, i32) {
    %c0_i32 = arith.constant 0 : i32
    %c0_i32_0 = arith.constant 0 : i32
    %c0_i32_1 = arith.constant 0 : i32
    %c0_i32_2 = arith.constant 0 : i32
    return %c0_i32, %c0_i32_0, %c0_i32_1 : i32, i32, i32
  }
  func.func @transform_3(%arg0: i32) -> (i32, i32) {
    %c0_i32 = arith.constant 0 : i32
    %c0_i32_0 = arith.constant 0 : i32
    %c0_i32_1 = arith.constant 0 : i32
    return %c0_i32, %c0_i32_0 : i32, i32
  }
  func.func @transform_4(%arg0: i32) -> (i32, i32) {
    %c0_i32 = arith.constant 0 : i32
    %c0_i32_0 = arith.constant 0 : i32
    return %c0_i32, %arg0 : i32, i32
  }
}

module attributes {stable_mosaic.version = 11 : i64} {
  func.func @_vwgcn_kernel_opt(%arg0: i32, %arg1: memref<64x16xf32, #tpu.memory_space<vmem>>, %arg2: memref<16x8xf32, #tpu.memory_space<vmem>>, %arg3: memref<16x16x8xf32, #tpu.memory_space<vmem>>, %arg4: memref<16x8xf32, #tpu.memory_space<vmem>>, %arg5: memref<16x16xf32, #tpu.memory_space<vmem>>) attributes {dimension_semantics = [#tpu.dimension_semantics<parallel>], iteration_bounds = array<i64: 1>, scalar_prefetch = 0 : i64, scratch_operands = 0 : i64, tpu.core_type = #tpu.core_type<tc>, window_params = [{pipeline_mode = #tpu.pipeline_mode<synchronous>, transform_indices = @transform_0, window_bounds = array<i64: 64, 16>}, {transform_indices = @transform_1, window_bounds = array<i64: 16, 8>}, {pipeline_mode = #tpu.pipeline_mode<synchronous>, transform_indices = @transform_2, window_bounds = array<i64: 16, 16, 8>}, {pipeline_mode = #tpu.pipeline_mode<synchronous>, transform_indices = @transform_3, window_bounds = array<i64: 16, 8>}, {transform_indices = @transform_4, window_bounds = array<i64: 16, 16>}]} {
    %c0 = arith.constant 0 : index
    %c0_0 = arith.constant 0 : index
    %0 = vector.load %arg2[%c0, %c0_0] : memref<16x8xf32, #tpu.memory_space<vmem>>, vector<16x8xf32>
    %c0_1 = arith.constant 0 : index
    %c0_2 = arith.constant 0 : index
    %1 = vector.load %arg1[%c0_1, %c0_2] : memref<64x16xf32, #tpu.memory_space<vmem>>, vector<64x16xf32>
    %cst = arith.constant dense<0.000000e+00> : vector<64x8xf32>
    %2 = tpu.matmul %1, %0, %cst {dimension_numbers = #tpu.dot_dimension_numbers<[1], [0], [0], [1], [0, 0, 1, 1], [], []>} : vector<64x16xf32>, vector<16x8xf32>, vector<64x8xf32> -> vector<64x8xf32>
    %3 = vector.extract_strided_slice %2 {offsets = [0, 0], sizes = [16, 8], strides = [1, 1]} : vector<64x8xf32> to vector<16x8xf32>
    %4 = vector.shape_cast %3 : vector<16x8xf32> to vector<16x2x4xf32>
    %5 = vector.extract_strided_slice %2 {offsets = [16, 0], sizes = [16, 8], strides = [1, 1]} : vector<64x8xf32> to vector<16x8xf32>
    %6 = vector.shape_cast %5 : vector<16x8xf32> to vector<16x2x4xf32>
    %7 = vector.extract_strided_slice %2 {offsets = [32, 0], sizes = [16, 8], strides = [1, 1]} : vector<64x8xf32> to vector<16x8xf32>
    %8 = vector.shape_cast %7 : vector<16x8xf32> to vector<16x2x4xf32>
    %9 = vector.extract_strided_slice %2 {offsets = [48, 0], sizes = [16, 8], strides = [1, 1]} : vector<64x8xf32> to vector<16x8xf32>
    %10 = vector.shape_cast %9 : vector<16x8xf32> to vector<16x2x4xf32>
    %11 = tpu.concatenate %4, %6, %8, %10 in 2 : vector<16x2x4xf32>, vector<16x2x4xf32>, vector<16x2x4xf32>, vector<16x2x4xf32> -> vector<16x2x16xf32>
    %c0_3 = arith.constant 0 : index
    %c0_4 = arith.constant 0 : index
    %c0_5 = arith.constant 0 : index
    %12 = vector.load %arg3[%c0_3, %c0_4, %c0_5] : memref<16x16x8xf32, #tpu.memory_space<vmem>>, vector<16x16x8xf32>
    "tpu.trace_start"() <{level = 10 : i32, message = "nbc,nco->nbo"}> : () -> ()
    %cst_6 = arith.constant dense<0.000000e+00> : vector<16x2x8xf32>
    %13 = tpu.matmul %11, %12, %cst_6 {dimension_numbers = #tpu.dot_dimension_numbers<[2], [1], [1], [2], [0, 0, 0, 1, 1, 2], [0], [0]>} : vector<16x2x16xf32>, vector<16x16x8xf32>, vector<16x2x8xf32> -> vector<16x2x8xf32>
    "tpu.trace_stop"() : () -> ()
    %c0_7 = arith.constant 0 : index
    %c0_8 = arith.constant 0 : index
    %14 = vector.load %arg4[%c0_7, %c0_8] : memref<16x8xf32, #tpu.memory_space<vmem>>, vector<16x8xf32>
    %15 = vector.shape_cast %14 : vector<16x8xf32> to vector<16x1x8xf32>
    %16 = vector.broadcast %15 : vector<16x1x8xf32> to vector<16x2x8xf32>
    %17 = arith.addf %13, %16 : vector<16x2x8xf32>
    %18 = vector.shape_cast %17 : vector<16x2x8xf32> to vector<16x16xf32>
    %c0_9 = arith.constant 0 : index
    %c0_10 = arith.constant 0 : index
    %19 = vector.load %arg5[%c0_9, %c0_10] : memref<16x16xf32, #tpu.memory_space<vmem>>, vector<16x16xf32>
    tpu.vector_store %arg5[%c0_9, %c0_10], %18 {strides = array<i32>} : memref<16x16xf32, #tpu.memory_space<vmem>>, vector<16x16xf32>,
    return
  }
  func.func @transform_0(%arg0: i32) -> (i32, i32) {
    %c0_i32 = arith.constant 0 : i32
    %c0_i32_0 = arith.constant 0 : i32
    %c0_i32_1 = arith.constant 0 : i32
    return %c0_i32, %c0_i32_0 : i32, i32
  }
  func.func @transform_1(%arg0: i32) -> (i32, i32) {
    %c0_i32 = arith.constant 0 : i32
    %c0_i32_0 = arith.constant 0 : i32
    return %c0_i32, %arg0 : i32, i32
  }
  func.func @transform_2(%arg0: i32) -> (i32, i32, i32) {
    %c0_i32 = arith.constant 0 : i32
    %c0_i32_0 = arith.constant 0 : i32
    %c0_i32_1 = arith.constant 0 : i32
    %c0_i32_2 = arith.constant 0 : i32
    return %c0_i32, %c0_i32_0, %c0_i32_1 : i32, i32, i32
  }
  func.func @transform_3(%arg0: i32) -> (i32, i32) {
    %c0_i32 = arith.constant 0 : i32
    %c0_i32_0 = arith.constant 0 : i32
    %c0_i32_1 = arith.constant 0 : i32
    return %c0_i32, %c0_i32_0 : i32, i32
  }
  func.func @transform_4(%arg0: i32) -> (i32, i32) {
    %c0_i32 = arith.constant 0 : i32
    %c0_i32_0 = arith.constant 0 : i32
    return %c0_i32, %arg0 : i32, i32
  }
}

module attributes {stable_mosaic.version = 11 : i64} {
  func.func @_vwgcn_kernel_basic(%arg0: i32, %arg1: memref<4x16x16xf32, #tpu.memory_space<vmem>>, %arg2: memref<1x16x4xf32, #tpu.memory_space<vmem>>, %arg3: memref<4x16x4x8xf32, #tpu.memory_space<vmem>>, %arg4: memref<16x8xf32, #tpu.memory_space<vmem>>, %arg5: memref<1x16x8xf32, #tpu.memory_space<vmem>>) attributes {dimension_semantics = [#tpu.dimension_semantics<parallel>], iteration_bounds = array<i64: 2>, scalar_prefetch = 0 : i64, scratch_operands = 0 : i64, tpu.core_type = #tpu.core_type<tc>, window_params = [{pipeline_mode = #tpu.pipeline_mode<synchronous>, transform_indices = @transform_0, window_bounds = array<i64: 4, 16, 16>}, {transform_indices = @transform_1, window_bounds = array<i64: 1, 16, 4>}, {pipeline_mode = #tpu.pipeline_mode<synchronous>, transform_indices = @transform_2, window_bounds = array<i64: 4, 16, 4, 8>}, {pipeline_mode = #tpu.pipeline_mode<synchronous>, transform_indices = @transform_3, window_bounds = array<i64: 16, 8>}, {transform_indices = @transform_4, window_bounds = array<i64: 1, 16, 8>}]} {
    %c0 = arith.constant 0 : index
    %c0_0 = arith.constant 0 : index
    %c0_1 = arith.constant 0 : index
    %0 = vector.load %arg2[%c0, %c0_0, %c0_1] : memref<1x16x4xf32, #tpu.memory_space<vmem>>, vector<1x16x4xf32>
    %1 = vector.shape_cast %0 : vector<1x16x4xf32> to vector<16x4xf32>
    %c0_2 = arith.constant 0 : index
    %c0_3 = arith.constant 0 : index
    %2 = vector.load %arg4[%c0_2, %c0_3] : memref<16x8xf32, #tpu.memory_space<vmem>>, vector<16x8xf32>
    %c0_4 = arith.constant 0 : index
    %c0_5 = arith.constant 0 : index
    %c0_6 = arith.constant 0 : index
    %3 = vector.load %arg1[%c0_4, %c0_5, %c0_6] : memref<4x16x16xf32, #tpu.memory_space<vmem>>, vector<1x16x16xf32>
    %4 = vector.shape_cast %3 : vector<1x16x16xf32> to vector<16x16xf32>
    %cst = arith.constant dense<0.000000e+00> : vector<16x4xf32>
    %5 = tpu.matmul %4, %1, %cst {dimension_numbers = #tpu.dot_dimension_numbers<[1], [0], [0], [1], [0, 0, 1, 1], [], []>} : vector<16x16xf32>, vector<16x4xf32>, vector<16x4xf32> -> vector<16x4xf32>
    %6 = vector.shape_cast %5 : vector<16x4xf32> to vector<16x4x1xf32>
    %c0_7 = arith.constant 0 : index
    %c0_8 = arith.constant 0 : index
    %c0_9 = arith.constant 0 : index
    %c0_10 = arith.constant 0 : index
    %7 = vector.load %arg3[%c0_7, %c0_8, %c0_9, %c0_10] : memref<4x16x4x8xf32, #tpu.memory_space<vmem>>, vector<1x16x4x8xf32>
    %8 = vector.shape_cast %7 : vector<1x16x4x8xf32> to vector<16x4x8xf32>
    %9 = vector.broadcast %6 : vector<16x4x1xf32> to vector<16x4x8xf32>
    %10 = arith.mulf %9, %8 : vector<16x4x8xf32>
    %cst_11 = arith.constant dense<0.000000e+00> : vector<16x8xf32>
    %11 = vector.multi_reduction <add>, %10, %cst_11 [1] : vector<16x4x8xf32> to vector<16x8xf32>
    %12 = arith.addf %2, %11 : vector<16x8xf32>
    %c1 = arith.constant 1 : index
    %c0_12 = arith.constant 0 : index
    %c0_13 = arith.constant 0 : index
    %13 = vector.load %arg1[%c1, %c0_12, %c0_13] : memref<4x16x16xf32, #tpu.memory_space<vmem>>, vector<1x16x16xf32>
    %14 = vector.shape_cast %13 : vector<1x16x16xf32> to vector<16x16xf32>
    %cst_14 = arith.constant dense<0.000000e+00> : vector<16x4xf32>
    %15 = tpu.matmul %14, %1, %cst_14 {dimension_numbers = #tpu.dot_dimension_numbers<[1], [0], [0], [1], [0, 0, 1, 1], [], []>} : vector<16x16xf32>, vector<16x4xf32>, vector<16x4xf32> -> vector<16x4xf32>
    %16 = vector.shape_cast %15 : vector<16x4xf32> to vector<16x4x1xf32>
    %c1_15 = arith.constant 1 : index
    %c0_16 = arith.constant 0 : index
    %c0_17 = arith.constant 0 : index
    %c0_18 = arith.constant 0 : index
    %17 = vector.load %arg3[%c1_15, %c0_16, %c0_17, %c0_18] : memref<4x16x4x8xf32, #tpu.memory_space<vmem>>, vector<1x16x4x8xf32>
    %18 = vector.shape_cast %17 : vector<1x16x4x8xf32> to vector<16x4x8xf32>
    %19 = vector.broadcast %16 : vector<16x4x1xf32> to vector<16x4x8xf32>
    %20 = arith.mulf %19, %18 : vector<16x4x8xf32>
    %cst_19 = arith.constant dense<0.000000e+00> : vector<16x8xf32>
    %21 = vector.multi_reduction <add>, %20, %cst_19 [1] : vector<16x4x8xf32> to vector<16x8xf32>
    %22 = arith.addf %12, %21 : vector<16x8xf32>
    %c2 = arith.constant 2 : index
    %c0_20 = arith.constant 0 : index
    %c0_21 = arith.constant 0 : index
    %23 = vector.load %arg1[%c2, %c0_20, %c0_21] : memref<4x16x16xf32, #tpu.memory_space<vmem>>, vector<1x16x16xf32>
    %24 = vector.shape_cast %23 : vector<1x16x16xf32> to vector<16x16xf32>
    %cst_22 = arith.constant dense<0.000000e+00> : vector<16x4xf32>
    %25 = tpu.matmul %24, %1, %cst_22 {dimension_numbers = #tpu.dot_dimension_numbers<[1], [0], [0], [1], [0, 0, 1, 1], [], []>} : vector<16x16xf32>, vector<16x4xf32>, vector<16x4xf32> -> vector<16x4xf32>
    %26 = vector.shape_cast %25 : vector<16x4xf32> to vector<16x4x1xf32>
    %c2_23 = arith.constant 2 : index
    %c0_24 = arith.constant 0 : index
    %c0_25 = arith.constant 0 : index
    %c0_26 = arith.constant 0 : index
    %27 = vector.load %arg3[%c2_23, %c0_24, %c0_25, %c0_26] : memref<4x16x4x8xf32, #tpu.memory_space<vmem>>, vector<1x16x4x8xf32>
    %28 = vector.shape_cast %27 : vector<1x16x4x8xf32> to vector<16x4x8xf32>
    %29 = vector.broadcast %26 : vector<16x4x1xf32> to vector<16x4x8xf32>
    %30 = arith.mulf %29, %28 : vector<16x4x8xf32>
    %cst_27 = arith.constant dense<0.000000e+00> : vector<16x8xf32>
    %31 = vector.multi_reduction <add>, %30, %cst_27 [1] : vector<16x4x8xf32> to vector<16x8xf32>
    %32 = arith.addf %22, %31 : vector<16x8xf32>
    %c3 = arith.constant 3 : index
    %c0_28 = arith.constant 0 : index
    %c0_29 = arith.constant 0 : index
    %33 = vector.load %arg1[%c3, %c0_28, %c0_29] : memref<4x16x16xf32, #tpu.memory_space<vmem>>, vector<1x16x16xf32>
    %34 = vector.shape_cast %33 : vector<1x16x16xf32> to vector<16x16xf32>
    %cst_30 = arith.constant dense<0.000000e+00> : vector<16x4xf32>
    %35 = tpu.matmul %34, %1, %cst_30 {dimension_numbers = #tpu.dot_dimension_numbers<[1], [0], [0], [1], [0, 0, 1, 1], [], []>} : vector<16x16xf32>, vector<16x4xf32>, vector<16x4xf32> -> vector<16x4xf32>
    %36 = vector.shape_cast %35 : vector<16x4xf32> to vector<16x4x1xf32>
    %c3_31 = arith.constant 3 : index
    %c0_32 = arith.constant 0 : index
    %c0_33 = arith.constant 0 : index
    %c0_34 = arith.constant 0 : index
    %37 = vector.load %arg3[%c3_31, %c0_32, %c0_33, %c0_34] : memref<4x16x4x8xf32, #tpu.memory_space<vmem>>, vector<1x16x4x8xf32>
    %38 = vector.shape_cast %37 : vector<1x16x4x8xf32> to vector<16x4x8xf32>
    %39 = vector.broadcast %36 : vector<16x4x1xf32> to vector<16x4x8xf32>
    %40 = arith.mulf %39, %38 : vector<16x4x8xf32>
    %cst_35 = arith.constant dense<0.000000e+00> : vector<16x8xf32>
    %41 = vector.multi_reduction <add>, %40, %cst_35 [1] : vector<16x4x8xf32> to vector<16x8xf32>
    %42 = arith.addf %32, %41 : vector<16x8xf32>
    %c0_36 = arith.constant 0 : index
    %c0_37 = arith.constant 0 : index
    %c0_38 = arith.constant 0 : index
    %43 = vector.load %arg5[%c0_36, %c0_37, %c0_38] : memref<1x16x8xf32, #tpu.memory_space<vmem>>, vector<1x16x8xf32>
    %44 = vector.shape_cast %43 : vector<1x16x8xf32> to vector<16x8xf32>
    %45 = vector.shape_cast %42 : vector<16x8xf32> to vector<1x16x8xf32>
    tpu.vector_store %arg5[%c0_36, %c0_37, %c0_38], %45 {strides = array<i32>} : memref<1x16x8xf32, #tpu.memory_space<vmem>>, vector<1x16x8xf32>,
    return
  }
  func.func @transform_0(%arg0: i32) -> (i32, i32, i32) {
    %c0_i32 = arith.constant 0 : i32
    %c0_i32_0 = arith.constant 0 : i32
    %c0_i32_1 = arith.constant 0 : i32
    %c0_i32_2 = arith.constant 0 : i32
    return %c0_i32, %c0_i32_0, %c0_i32_1 : i32, i32, i32
  }
  func.func @transform_1(%arg0: i32) -> (i32, i32, i32) {
    %c0_i32 = arith.constant 0 : i32
    %c0_i32_0 = arith.constant 0 : i32
    %c0_i32_1 = arith.constant 0 : i32
    return %arg0, %c0_i32, %c0_i32_0 : i32, i32, i32
  }
  func.func @transform_2(%arg0: i32) -> (i32, i32, i32, i32) {
    %c0_i32 = arith.constant 0 : i32
    %c0_i32_0 = arith.constant 0 : i32
    %c0_i32_1 = arith.constant 0 : i32
    %c0_i32_2 = arith.constant 0 : i32
    %c0_i32_3 = arith.constant 0 : i32
    return %c0_i32, %c0_i32_0, %c0_i32_1, %c0_i32_2 : i32, i32, i32, i32
  }
  func.func @transform_3(%arg0: i32) -> (i32, i32) {
    %c0_i32 = arith.constant 0 : i32
    %c0_i32_0 = arith.constant 0 : i32
    %c0_i32_1 = arith.constant 0 : i32
    return %c0_i32, %c0_i32_0 : i32, i32
  }
  func.func @transform_4(%arg0: i32) -> (i32, i32, i32) {
    %c0_i32 = arith.constant 0 : i32
    %c0_i32_0 = arith.constant 0 : i32
    %c0_i32_1 = arith.constant 0 : i32
    return %arg0, %c0_i32, %c0_i32_0 : i32, i32, i32
  }
}

</mosaic_0001>

<llo_original>
// kernel: tpu_custom_call.1
$region0: #{tpu_custom_call.1}
  #allocation0 [shape = 'u32[]', space=smem, size = 0x4, offset = 0x4, fixed_abs, tag = 'smem constant byte address 0x4 - core index']
  #allocation1 [shape = 'u32[144,128]{1,0:T(1,128)}', space=vmem, size = 0x12000, scoped, tag = 'internal scratch']
  %s0 = inlined_call_operand.hbm [shape: f32[64,16], index: 0, kind: input, shape index: {}]
  %s1 = inlined_call_operand.hbm [shape: f32[16,8], index: 1, kind: input, shape index: {}]
  %s2 = inlined_call_operand.hbm [shape: f32[16,16,8], index: 2, kind: input, shape index: {}]
  %s3 = inlined_call_operand.hbm [shape: f32[16,8], index: 3, kind: input, shape index: {}]
  %s4 = inlined_call_operand.hbm [shape: f32[16,16], index: 4, kind: output, shape index: {}]
  %s5 = sld [smem:[#allocation0]]
  $region42: #{tpu_custom_call.1} parent=0
    _
  %s7 = ssub.s32 1, %s5
  %s8 = scalar_select 0, %s7, %s5
  $region1: #{tpu_custom_call.1} parent=0
    #allocation2 [shape = 'u8[32768]{0}', space=vmem, size = 0x8000, scoped, tag = 'input window, operand 0, single buffered']
    #allocation3 [shape = 's32[1]{0}', space=sflag, size = 0x4, scoped, tag = 'scoped memory for tpu_custom_call.1']
    #allocation4 [shape = 's32[1]{0}', space=sflag, size = 0x4, scoped, tag = 'scoped memory for tpu_custom_call.1']
    #allocation5 [shape = 'u8[8192]{0}', space=vmem, size = 0x2000, scoped, tag = 'input window, operand 1, single buffered']
    #allocation6 [shape = 's32[1]{0}', space=sflag, size = 0x4, scoped, tag = 'scoped memory for tpu_custom_call.1']
    #allocation7 [shape = 'u8[131072]{0}', space=vmem, size = 0x20000, scoped, tag = 'input window, operand 2, single buffered']
    #allocation8 [shape = 'u8[8192]{0}', space=vmem, size = 0x2000, scoped, tag = 'input window, operand 3, single buffered']
    #allocation9 [shape = 's32[1]{0}', space=sflag, size = 0x4, scoped, tag = 'scoped memory for tpu_custom_call.1']
    #allocation10 [shape = 'u8[8192]{0}', space=vmem, size = 0x2000, scoped, tag = 'output window, operand 0, single buffered']
    %9 = vsyncpa [#allocation3], 0
    %10 = vsyncpa [#allocation6], 0
    %11 = vsyncpa [#allocation9], 0
    %12 = vsyncpa [#allocation4], 0
    // Predicated region
    $region2: #{tpu_custom_call.1} parent=1 // pred_check
      _
    $region3: #{tpu_custom_call.1} parent=1 // pred_check_branch
      %14 = sbr.rel (0) target = $region5
    $region4: #{tpu_custom_call.1} parent=1 // pred_region
      %s16 = ssub.s32 1024, 1024
      %17 = vsyncadd [#allocation3], %s16
      %s18 = sshll.u32 [#allocation2], 4
      %s19 = int_to_ptr.vmem [resolvable:$true] %s18
      %24 = dma.hbm_to_vmem [thread:$0]  %s0, 1024, %s19, [#allocation3], 128, 128, 8
    $region5: #{tpu_custom_call.1} parent=1 // pred_fallthru
      _
    // Predicated region
    $region6: #{tpu_custom_call.1} parent=1 // pred_check
      _
    $region7: #{tpu_custom_call.1} parent=1 // pred_check_branch
      %26 = sbr.rel (0) target = $region9
    $region8: #{tpu_custom_call.1} parent=1 // pred_region
      %s28 = ssub.s32 256, 256
      %29 = vsyncadd [#allocation6], %s28
      %s30 = sshll.u32 [#allocation5], 4
      %s31 = int_to_ptr.vmem [resolvable:$true] %s30
      %36 = dma.hbm_to_vmem [thread:$0]  %s1, 256, %s31, [#allocation6], 128, 128, 8
    $region9: #{tpu_custom_call.1} parent=1 // pred_fallthru
      _
    // Predicated region
    $region10: #{tpu_custom_call.1} parent=1 // pred_check
      _
    $region11: #{tpu_custom_call.1} parent=1 // pred_check_branch
      %38 = sbr.rel (0) target = $region13
    $region12: #{tpu_custom_call.1} parent=1 // pred_region
      %s40 = ssub.s32 4096, 4096
      %41 = vsyncadd [#allocation6], %s40
      %s42 = sshll.u32 [#allocation7], 4
      %s43 = int_to_ptr.vmem [resolvable:$true] %s42
      %48 = dma.hbm_to_vmem [thread:$0]  %s2, 4096, %s43, [#allocation6], 128, 128, 8
    $region13: #{tpu_custom_call.1} parent=1 // pred_fallthru
      _
    // Predicated region
    $region14: #{tpu_custom_call.1} parent=1 // pred_check
      _
    $region15: #{tpu_custom_call.1} parent=1 // pred_check_branch
      %50 = sbr.rel (0) target = $region17
    $region16: #{tpu_custom_call.1} parent=1 // pred_region
      %s52 = ssub.s32 256, 256
      %53 = vsyncadd [#allocation9], %s52
      %s54 = sshll.u32 [#allocation8], 4
      %s55 = int_to_ptr.vmem [resolvable:$true] %s54
      %60 = dma.hbm_to_vmem [thread:$0]  %s3, 256, %s55, [#allocation9], 128, 128, 8
    $region17: #{tpu_custom_call.1} parent=1 // pred_fallthru
      _
    // Predicated region
    $region18: #{tpu_custom_call.1} parent=1 // pred_check
      _
    $region19: #{tpu_custom_call.1} parent=1 // pred_check_branch
      %62 = sbr.rel (0) target = $region21
    $region20: #{tpu_custom_call.1} parent=1 // pred_region
      %63 = dma.done [#allocation3], 1024
    $region21: #{tpu_custom_call.1} parent=1 // pred_fallthru
      _
    // Predicated region
    $region22: #{tpu_custom_call.1} parent=1 // pred_check
      _
    $region23: #{tpu_custom_call.1} parent=1 // pred_check_branch
      %65 = sbr.rel (0) target = $region25
    $region24: #{tpu_custom_call.1} parent=1 // pred_region
      %66 = dma.done [#allocation6], 256
    $region25: #{tpu_custom_call.1} parent=1 // pred_fallthru
      _
    // Predicated region
    $region26: #{tpu_custom_call.1} parent=1 // pred_check
      _
    $region27: #{tpu_custom_call.1} parent=1 // pred_check_branch
      %68 = sbr.rel (0) target = $region29
    $region28: #{tpu_custom_call.1} parent=1 // pred_region
      %69 = dma.done [#allocation6], 4096
    $region29: #{tpu_custom_call.1} parent=1 // pred_fallthru
      _
    // Predicated region
    $region30: #{tpu_custom_call.1} parent=1 // pred_check
      _
    $region31: #{tpu_custom_call.1} parent=1 // pred_check_branch
      %71 = sbr.rel (0) target = $region33
    $region32: #{tpu_custom_call.1} parent=1 // pred_region
      %72 = dma.done [#allocation9], 256
    $region33: #{tpu_custom_call.1} parent=1 // pred_fallthru
      _
    %v73 = vld [vmem:[#allocation5] sm:$0xff]
    %v74 = vld [vmem:[#allocation5 + $0x8] sm:$0xff]
    %v75 = vld [vmem:[#allocation2] sm:$0xff]
    %v76 = vld [vmem:[#allocation2 + $0x8] sm:$0xff]
    %v77 = vld [vmem:[#allocation2 + $0x10] sm:$0xff]
    %v78 = vld [vmem:[#allocation2 + $0x18] sm:$0xff]
    %v79 = vld [vmem:[#allocation2 + $0x20] sm:$0xff]
    %v80 = vld [vmem:[#allocation2 + $0x28] sm:$0xff]
    %v81 = vld [vmem:[#allocation2 + $0x30] sm:$0xff]
    %v82 = vld [vmem:[#allocation2 + $0x38] sm:$0xff]
    %vm83 = vcmask 130048
    %v85 = vsel %vm83, %v75, 0
    %v88 = vsel %vm83, %v76, 0
    %v91 = vsel %vm83, %v77, 0
    %v94 = vsel %vm83, %v78, 0
    %v97 = vsel %vm83, %v79, 0
    %v100 = vsel %vm83, %v80, 0
    %v103 = vsel %vm83, %v81, 0
    %v106 = vsel %vm83, %v82, 0
    %108 = vmatprep.subr.mxu0 0.0
    %109 = vmatpush1.msra.mxu0 %v73
    %110 = vmatprep.subr.mxu0 0.0
    %111 = vmatpush1.msra.mxu0 %v74
    %112 = vmatprep.subr.mxu0 0.0
    %113 = vmatpush1.msra.mxu0 0.0
    %114 = vmatprep.subr.mxu0 0.0
    %115 = vmatpush1.msra.mxu0 0.0
    %116 = vmatprep.subr.mxu0 0.0
    %117 = vmatpush1.msra.mxu0 0.0
    %118 = vmatprep.subr.mxu0 0.0
    %119 = vmatpush1.msra.mxu0 0.0
    %120 = vmatprep.subr.mxu0 0.0
    %121 = vmatpush1.msra.mxu0 0.0
    %122 = vmatprep.subr.mxu0 0.0
    %123 = vmatpush1.msra.mxu0 0.0
    %124 = vmatprep.subr.mxu0 0.0
    %125 = vmatpush1.msra.mxu0 0.0
    %126 = vmatprep.subr.mxu0 0.0
    %127 = vmatpush1.msra.mxu0 0.0
    %128 = vmatprep.subr.mxu0 0.0
    %129 = vmatpush1.msra.mxu0 0.0
    %130 = vmatprep.subr.mxu0 0.0
    %131 = vmatpush1.msra.mxu0 0.0
    %132 = vmatprep.subr.mxu0 0.0
    %133 = vmatpush1.msra.mxu0 0.0
    %134 = vmatprep.subr.mxu0 0.0
    %135 = vmatpush1.msra.mxu0 0.0
    %136 = vmatprep.subr.mxu0 0.0
    %137 = vmatpush1.msra.mxu0 0.0
    %138 = vmatprep.subr.mxu0 0.0
    %139 = vmatpush1.msra.mxu0 0.0
    %140 = vmatprep.subr.mxu0 0.0
    %141 = vmatpush1.msra.mxu0 0.0
    %142 = vmatprep.subr.mxu0 0.0
    %143 = vmatpush1.msra.mxu0 0.0
    %144 = vmatprep.subr.mxu0 0.0
    %145 = vmatpush1.msra.mxu0 0.0
    %146 = vmatprep.subr.mxu0 0.0
    %147 = vmatpush1.msra.mxu0 0.0
    %148 = vmatprep.subr.mxu0 0.0
    %149 = vmatpush1.msra.mxu0 0.0
    %150 = vmatprep.subr.mxu0 0.0
    %151 = vmatpush1.msra.mxu0 0.0
    %152 = vmatprep.subr.mxu0 0.0
    %153 = vmatpush1.msra.mxu0 0.0
    %154 = vmatprep.subr.mxu0 0.0
    %155 = vmatpush1.msra.mxu0 0.0
    %156 = vmatprep.subr.mxu0 0.0
    %157 = vmatpush1.msra.mxu0 0.0
    %158 = vmatprep.subr.mxu0 0.0
    %159 = vmatpush1.msra.mxu0 0.0
    %160 = vmatprep.subr.mxu0 0.0
    %161 = vmatpush1.msra.mxu0 0.0
    %162 = vmatprep.subr.mxu0 0.0
    %163 = vmatpush1.msra.mxu0 0.0
    %164 = vmatprep.subr.mxu0 0.0
    %165 = vmatpush1.msra.mxu0 0.0
    %166 = vmatprep.subr.mxu0 0.0
    %167 = vmatpush1.msra.mxu0 0.0
    %168 = vmatprep.subr.mxu0 0.0
    %169 = vmatpush1.msra.mxu0 0.0
    %170 = vmatprep.subr.mxu0 0.0
    %171 = vmatpush1.msra.mxu0 0.0
    %172 = vmatprep.mubr.f32.mxu0 0.0
    %173 = vmatmul.mubr.f32.gmra.mrb[0].mxu0 %v85
    %v174 = vpop.f32.mrb[0].mxu0
    %v175 = vadd.f32 0.0, %v174
    %v176 = vpop.f32.mrb[0].mxu0
    %177 = vmatprep.mubr.f32.mxu0 0.0
    %178 = vmatmul.mubr.f32.gmra.mrb[0].mxu0 %v88
    %v179 = vpop.f32.mrb[0].mxu0
    %v180 = vadd.f32 0.0, %v179
    %v181 = vpop.f32.mrb[0].mxu0
    %182 = vmatprep.mubr.f32.mxu0 0.0
    %183 = vmatmul.mubr.f32.gmra.mrb[0].mxu0 %v91
    %v184 = vpop.f32.mrb[0].mxu0
    %v185 = vadd.f32 0.0, %v184
    %v186 = vpop.f32.mrb[0].mxu0
    %187 = vmatprep.mubr.f32.mxu0 0.0
    %188 = vmatmul.mubr.f32.gmra.mrb[0].mxu0 %v94
    %v189 = vpop.f32.mrb[0].mxu0
    %v190 = vadd.f32 0.0, %v189
    %v191 = vpop.f32.mrb[0].mxu0
    %192 = vmatprep.mubr.f32.mxu0 0.0
    %193 = vmatmul.mubr.f32.gmra.mrb[0].mxu0 %v97
    %v194 = vpop.f32.mrb[0].mxu0
    %v195 = vadd.f32 0.0, %v194
    %v196 = vpop.f32.mrb[0].mxu0
    %197 = vmatprep.mubr.f32.mxu0 0.0
    %198 = vmatmul.mubr.f32.gmra.mrb[0].mxu0 %v100
    %v199 = vpop.f32.mrb[0].mxu0
    %v200 = vadd.f32 0.0, %v199
    %v201 = vpop.f32.mrb[0].mxu0
    %202 = vmatprep.mubr.f32.mxu0 0.0
    %203 = vmatmul.mubr.f32.gmra.mrb[0].mxu0 %v103
    %v204 = vpop.f32.mrb[0].mxu0
    %v205 = vadd.f32 0.0, %v204
    %v206 = vpop.f32.mrb[0].mxu0
    %207 = vmatprep.mubr.f32.mxu0 0.0
    %208 = vmatmul.mubr.f32.gmra.mrb[0].mxu0 %v106
    %v209 = vpop.f32.mrb[0].mxu0
    %v210 = vadd.f32 0.0, %v209
    %v211 = vpop.f32.mrb[0].mxu0
    %212 = vdwg.mxu0
    %215 = vrot.lane.b32.xlu0 %v175, 124
    %v216 = vpop.permute.xlu0 %215
    %217 = vrot.lane.b32.xlu0 %v180, 124
    %v218 = vpop.permute.xlu0 %217
    %v221 = vcombine.high %v175, 0.0
    %v223 = vunpack.c.l.s4 1983009808
    %v224 = vunpack.c.0.s8 %v223
    %v225 = vlaneseq
    %v226 = vshrl.u32 %v225, 7
    %v227 = vsub.s32 %v224, %v226
    %v228 = vrot.slane %v175, %v227
    %v230 = vunpack.c.l.s4 1983009808
    %v231 = vunpack.c.0.s8 %v230
    %v232 = vlaneseq
    %v233 = vshrl.u32 %v232, 7
    %v234 = vsub.s32 %v231, %v233
    %v235 = vrot.slane %v221, %v234
    %v236 = vcombine.high %v216, 0.0
    %v238 = vunpack.c.l.s4 1983009808
    %v239 = vunpack.c.0.s8 %v238
    %v240 = vlaneseq
    %v241 = vshrl.u32 %v240, 7
    %v242 = vsub.s32 %v239, %v241
    %v243 = vrot.slane %v216, %v242
    %v245 = vunpack.c.l.s4 1983009808
    %v246 = vunpack.c.0.s8 %v245
    %v247 = vlaneseq
    %v248 = vshrl.u32 %v247, 7
    %v249 = vsub.s32 %v246, %v248
    %v250 = vrot.slane %v236, %v249
    %v251 = vcombine.low %v228, %v243
    %v252 = vcombine.high %v228, %v243
    %v254 = vunpack.c.l.s4 1934713408
    %v255 = vunpack.c.0.s8 %v254
    %v256 = vlaneseq
    %v257 = vshrl.u32 %v256, 7
    %v258 = vsub.s32 %v255, %v257
    %v259 = vrot.slane %v251, %v258
    %v261 = vunpack.c.l.s4 1934713408
    %v262 = vunpack.c.0.s8 %v261
    %v263 = vlaneseq
    %v264 = vshrl.u32 %v263, 7
    %v265 = vsub.s32 %v262, %v264
    %v266 = vrot.slane %v252, %v265
    %v267 = vcombine.low %v235, %v250
    %v268 = vcombine.high %v235, %v250
    %v270 = vunpack.c.l.s4 1934713408
    %v271 = vunpack.c.0.s8 %v270
    %v272 = vlaneseq
    %v273 = vshrl.u32 %v272, 7
    %v274 = vsub.s32 %v271, %v273
    %v275 = vrot.slane %v267, %v274
    %v277 = vunpack.c.l.s4 1934713408
    %v278 = vunpack.c.0.s8 %v277
    %v279 = vlaneseq
    %v280 = vshrl.u32 %v279, 7
    %v281 = vsub.s32 %v278, %v280
    %v282 = vrot.slane %v268, %v281
    %v283 = vcombine.high %v259, 0.0
    %v284 = vcombine.high %v266, 0.0
    %v285 = vcombine.high %v275, 0.0
    %v286 = vcombine.high %v282, 0.0
    %v287 = vcombine.high %v180, 0.0
    %v289 = vunpack.c.l.s4 1983009808
    %v290 = vunpack.c.0.s8 %v289
    %v291 = vlaneseq
    %v292 = vshrl.u32 %v291, 7
    %v293 = vsub.s32 %v290, %v292
    %v294 = vrot.slane %v180, %v293
    %v296 = vunpack.c.l.s4 1983009808
    %v297 = vunpack.c.0.s8 %v296
    %v298 = vlaneseq
    %v299 = vshrl.u32 %v298, 7
    %v300 = vsub.s32 %v297, %v299
    %v301 = vrot.slane %v287, %v300
    %v302 = vcombine.high %v218, 0.0
    %v304 = vunpack.c.l.s4 1983009808
    %v305 = vunpack.c.0.s8 %v304
    %v306 = vlaneseq
    %v307 = vshrl.u32 %v306, 7
    %v308 = vsub.s32 %v305, %v307
    %v309 = vrot.slane %v218, %v308
    %v311 = vunpack.c.l.s4 1983009808
    %v312 = vunpack.c.0.s8 %v311
    %v313 = vlaneseq
    %v314 = vshrl.u32 %v313, 7
    %v315 = vsub.s32 %v312, %v314
    %v316 = vrot.slane %v302, %v315
    %v317 = vcombine.low %v294, %v309
    %v318 = vcombine.high %v294, %v309
    %v320 = vunpack.c.l.s4 1934713408
    %v321 = vunpack.c.0.s8 %v320
    %v322 = vlaneseq
    %v323 = vshrl.u32 %v322, 7
    %v324 = vsub.s32 %v321, %v323
    %v325 = vrot.slane %v317, %v324
    %v327 = vunpack.c.l.s4 1934713408
    %v328 = vunpack.c.0.s8 %v327
    %v329 = vlaneseq
    %v330 = vshrl.u32 %v329, 7
    %v331 = vsub.s32 %v328, %v330
    %v332 = vrot.slane %v318, %v331
    %v333 = vcombine.low %v301, %v316
    %v334 = vcombine.high %v301, %v316
    %v336 = vunpack.c.l.s4 1934713408
    %v337 = vunpack.c.0.s8 %v336
    %v338 = vlaneseq
    %v339 = vshrl.u32 %v338, 7
    %v340 = vsub.s32 %v337, %v339
    %v341 = vrot.slane %v333, %v340
    %v343 = vunpack.c.l.s4 1934713408
    %v344 = vunpack.c.0.s8 %v343
    %v345 = vlaneseq
    %v346 = vshrl.u32 %v345, 7
    %v347 = vsub.s32 %v344, %v346
    %v348 = vrot.slane %v334, %v347
    %v349 = vcombine.high %v325, 0.0
    %v350 = vcombine.high %v332, 0.0
    %v351 = vcombine.high %v341, 0.0
    %v352 = vcombine.high %v348, 0.0
    %355 = vrot.lane.b32.xlu0 %v185, 124
    %v356 = vpop.permute.xlu0 %355
    %357 = vrot.lane.b32.xlu0 %v190, 124
    %v358 = vpop.permute.xlu0 %357
    %v361 = vcombine.high %v185, 0.0
    %v363 = vunpack.c.l.s4 1983009808
    %v364 = vunpack.c.0.s8 %v363
    %v365 = vlaneseq
    %v366 = vshrl.u32 %v365, 7
    %v367 = vsub.s32 %v364, %v366
    %v368 = vrot.slane %v185, %v367
    %v370 = vunpack.c.l.s4 1983009808
    %v371 = vunpack.c.0.s8 %v370
    %v372 = vlaneseq
    %v373 = vshrl.u32 %v372, 7
    %v374 = vsub.s32 %v371, %v373
    %v375 = vrot.slane %v361, %v374
    %v376 = vcombine.high %v356, 0.0
    %v378 = vunpack.c.l.s4 1983009808
    %v379 = vunpack.c.0.s8 %v378
    %v380 = vlaneseq
    %v381 = vshrl.u32 %v380, 7
    %v382 = vsub.s32 %v379, %v381
    %v383 = vrot.slane %v356, %v382
    %v385 = vunpack.c.l.s4 1983009808
    %v386 = vunpack.c.0.s8 %v385
    %v387 = vlaneseq
    %v388 = vshrl.u32 %v387, 7
    %v389 = vsub.s32 %v386, %v388
    %v390 = vrot.slane %v376, %v389
    %v391 = vcombine.low %v368, %v383
    %v392 = vcombine.high %v368, %v383
    %v394 = vunpack.c.l.s4 1934713408
    %v395 = vunpack.c.0.s8 %v394
    %v396 = vlaneseq
    %v397 = vshrl.u32 %v396, 7
    %v398 = vsub.s32 %v395, %v397
    %v399 = vrot.slane %v391, %v398
    %v401 = vunpack.c.l.s4 1934713408
    %v402 = vunpack.c.0.s8 %v401
    %v403 = vlaneseq
    %v404 = vshrl.u32 %v403, 7
    %v405 = vsub.s32 %v402, %v404
    %v406 = vrot.slane %v392, %v405
    %v407 = vcombine.low %v375, %v390
    %v408 = vcombine.high %v375, %v390
    %v410 = vunpack.c.l.s4 1934713408
    %v411 = vunpack.c.0.s8 %v410
    %v412 = vlaneseq
    %v413 = vshrl.u32 %v412, 7
    %v414 = vsub.s32 %v411, %v413
    %v415 = vrot.slane %v407, %v414
    %v417 = vunpack.c.l.s4 1934713408
    %v418 = vunpack.c.0.s8 %v417
    %v419 = vlaneseq
    %v420 = vshrl.u32 %v419, 7
    %v421 = vsub.s32 %v418, %v420
    %v422 = vrot.slane %v408, %v421
    %v423 = vcombine.high %v399, 0.0
    %v424 = vcombine.high %v406, 0.0
    %v425 = vcombine.high %v415, 0.0
    %v426 = vcombine.high %v422, 0.0
    %v427 = vcombine.high %v190, 0.0
    %v429 = vunpack.c.l.s4 1983009808
    %v430 = vunpack.c.0.s8 %v429
    %v431 = vlaneseq
    %v432 = vshrl.u32 %v431, 7
    %v433 = vsub.s32 %v430, %v432
    %v434 = vrot.slane %v190, %v433
    %v436 = vunpack.c.l.s4 1983009808
    %v437 = vunpack.c.0.s8 %v436
    %v438 = vlaneseq
    %v439 = vshrl.u32 %v438, 7
    %v440 = vsub.s32 %v437, %v439
    %v441 = vrot.slane %v427, %v440
    %v442 = vcombine.high %v358, 0.0
    %v444 = vunpack.c.l.s4 1983009808
    %v445 = vunpack.c.0.s8 %v444
    %v446 = vlaneseq
    %v447 = vshrl.u32 %v446, 7
    %v448 = vsub.s32 %v445, %v447
    %v449 = vrot.slane %v358, %v448
    %v451 = vunpack.c.l.s4 1983009808
    %v452 = vunpack.c.0.s8 %v451
    %v453 = vlaneseq
    %v454 = vshrl.u32 %v453, 7
    %v455 = vsub.s32 %v452, %v454
    %v456 = vrot.slane %v442, %v455
    %v457 = vcombine.low %v434, %v449
    %v458 = vcombine.high %v434, %v449
    %v460 = vunpack.c.l.s4 1934713408
    %v461 = vunpack.c.0.s8 %v460
    %v462 = vlaneseq
    %v463 = vshrl.u32 %v462, 7
    %v464 = vsub.s32 %v461, %v463
    %v465 = vrot.slane %v457, %v464
    %v467 = vunpack.c.l.s4 1934713408
    %v468 = vunpack.c.0.s8 %v467
    %v469 = vlaneseq
    %v470 = vshrl.u32 %v469, 7
    %v471 = vsub.s32 %v468, %v470
    %v472 = vrot.slane %v458, %v471
    %v473 = vcombine.low %v441, %v456
    %v474 = vcombine.high %v441, %v456
    %v476 = vunpack.c.l.s4 1934713408
    %v477 = vunpack.c.0.s8 %v476
    %v478 = vlaneseq
    %v479 = vshrl.u32 %v478, 7
    %v480 = vsub.s32 %v477, %v479
    %v481 = vrot.slane %v473, %v480
    %v483 = vunpack.c.l.s4 1934713408
    %v484 = vunpack.c.0.s8 %v483
    %v485 = vlaneseq
    %v486 = vshrl.u32 %v485, 7
    %v487 = vsub.s32 %v484, %v486
    %v488 = vrot.slane %v474, %v487
    %v489 = vcombine.high %v465, 0.0
    %v490 = vcombine.high %v472, 0.0
    %v491 = vcombine.high %v481, 0.0
    %v492 = vcombine.high %v488, 0.0
    %495 = vrot.lane.b32.xlu0 %v195, 124
    %v496 = vpop.permute.xlu0 %495
    %497 = vrot.lane.b32.xlu0 %v200, 124
    %v498 = vpop.permute.xlu0 %497
    %v501 = vcombine.high %v195, 0.0
    %v503 = vunpack.c.l.s4 1983009808
    %v504 = vunpack.c.0.s8 %v503
    %v505 = vlaneseq
    %v506 = vshrl.u32 %v505, 7
    %v507 = vsub.s32 %v504, %v506
    %v508 = vrot.slane %v195, %v507
    %v510 = vunpack.c.l.s4 1983009808
    %v511 = vunpack.c.0.s8 %v510
    %v512 = vlaneseq
    %v513 = vshrl.u32 %v512, 7
    %v514 = vsub.s32 %v511, %v513
    %v515 = vrot.slane %v501, %v514
    %v516 = vcombine.high %v496, 0.0
    %v518 = vunpack.c.l.s4 1983009808
    %v519 = vunpack.c.0.s8 %v518
    %v520 = vlaneseq
    %v521 = vshrl.u32 %v520, 7
    %v522 = vsub.s32 %v519, %v521
    %v523 = vrot.slane %v496, %v522
    %v525 = vunpack.c.l.s4 1983009808
    %v526 = vunpack.c.0.s8 %v525
    %v527 = vlaneseq
    %v528 = vshrl.u32 %v527, 7
    %v529 = vsub.s32 %v526, %v528
    %v530 = vrot.slane %v516, %v529
    %v531 = vcombine.low %v508, %v523
    %v532 = vcombine.high %v508, %v523
    %v534 = vunpack.c.l.s4 1934713408
    %v535 = vunpack.c.0.s8 %v534
    %v536 = vlaneseq
    %v537 = vshrl.u32 %v536, 7
    %v538 = vsub.s32 %v535, %v537
    %v539 = vrot.slane %v531, %v538
    %v541 = vunpack.c.l.s4 1934713408
    %v542 = vunpack.c.0.s8 %v541
    %v543 = vlaneseq
    %v544 = vshrl.u32 %v543, 7
    %v545 = vsub.s32 %v542, %v544
    %v546 = vrot.slane %v532, %v545
    %v547 = vcombine.low %v515, %v530
    %v548 = vcombine.high %v515, %v530
    %v550 = vunpack.c.l.s4 1934713408
    %v551 = vunpack.c.0.s8 %v550
    %v552 = vlaneseq
    %v553 = vshrl.u32 %v552, 7
    %v554 = vsub.s32 %v551, %v553
    %v555 = vrot.slane %v547, %v554
    %v557 = vunpack.c.l.s4 1934713408
    %v558 = vunpack.c.0.s8 %v557
    %v559 = vlaneseq
    %v560 = vshrl.u32 %v559, 7
    %v561 = vsub.s32 %v558, %v560
    %v562 = vrot.slane %v548, %v561
    %v563 = vcombine.high %v539, 0.0
    %v564 = vcombine.high %v546, 0.0
    %v565 = vcombine.high %v555, 0.0
    %v566 = vcombine.high %v562, 0.0
    %v567 = vcombine.high %v200, 0.0
    %v569 = vunpack.c.l.s4 1983009808
    %v570 = vunpack.c.0.s8 %v569
    %v571 = vlaneseq
    %v572 = vshrl.u32 %v571, 7
    %v573 = vsub.s32 %v570, %v572
    %v574 = vrot.slane %v200, %v573
    %v576 = vunpack.c.l.s4 1983009808
    %v577 = vunpack.c.0.s8 %v576
    %v578 = vlaneseq
    %v579 = vshrl.u32 %v578, 7
    %v580 = vsub.s32 %v577, %v579
    %v581 = vrot.slane %v567, %v580
    %v582 = vcombine.high %v498, 0.0
    %v584 = vunpack.c.l.s4 1983009808
    %v585 = vunpack.c.0.s8 %v584
    %v586 = vlaneseq
    %v587 = vshrl.u32 %v586, 7
    %v588 = vsub.s32 %v585, %v587
    %v589 = vrot.slane %v498, %v588
    %v591 = vunpack.c.l.s4 1983009808
    %v592 = vunpack.c.0.s8 %v591
    %v593 = vlaneseq
    %v594 = vshrl.u32 %v593, 7
    %v595 = vsub.s32 %v592, %v594
    %v596 = vrot.slane %v582, %v595
    %v597 = vcombine.low %v574, %v589
    %v598 = vcombine.high %v574, %v589
    %v600 = vunpack.c.l.s4 1934713408
    %v601 = vunpack.c.0.s8 %v600
    %v602 = vlaneseq
    %v603 = vshrl.u32 %v602, 7
    %v604 = vsub.s32 %v601, %v603
    %v605 = vrot.slane %v597, %v604
    %v607 = vunpack.c.l.s4 1934713408
    %v608 = vunpack.c.0.s8 %v607
    %v609 = vlaneseq
    %v610 = vshrl.u32 %v609, 7
    %v611 = vsub.s32 %v608, %v610
    %v612 = vrot.slane %v598, %v611
    %v613 = vcombine.low %v581, %v596
    %v614 = vcombine.high %v581, %v596
    %v616 = vunpack.c.l.s4 1934713408
    %v617 = vunpack.c.0.s8 %v616
    %v618 = vlaneseq
    %v619 = vshrl.u32 %v618, 7
    %v620 = vsub.s32 %v617, %v619
    %v621 = vrot.slane %v613, %v620
    %v623 = vunpack.c.l.s4 1934713408
    %v624 = vunpack.c.0.s8 %v623
    %v625 = vlaneseq
    %v626 = vshrl.u32 %v625, 7
    %v627 = vsub.s32 %v624, %v626
    %v628 = vrot.slane %v614, %v627
    %v629 = vcombine.high %v605, 0.0
    %v630 = vcombine.high %v612, 0.0
    %v631 = vcombine.high %v621, 0.0
    %v632 = vcombine.high %v628, 0.0
    %635 = vrot.lane.b32.xlu0 %v205, 124
    %v636 = vpop.permute.xlu0 %635
    %637 = vrot.lane.b32.xlu0 %v210, 124
    %v638 = vpop.permute.xlu0 %637
    %v641 = vcombine.high %v205, 0.0
    %v643 = vunpack.c.l.s4 1983009808
    %v644 = vunpack.c.0.s8 %v643
    %v645 = vlaneseq
    %v646 = vshrl.u32 %v645, 7
    %v647 = vsub.s32 %v644, %v646
    %v648 = vrot.slane %v205, %v647
    %v650 = vunpack.c.l.s4 1983009808
    %v651 = vunpack.c.0.s8 %v650
    %v652 = vlaneseq
    %v653 = vshrl.u32 %v652, 7
    %v654 = vsub.s32 %v651, %v653
    %v655 = vrot.slane %v641, %v654
    %v656 = vcombine.high %v636, 0.0
    %v658 = vunpack.c.l.s4 1983009808
    %v659 = vunpack.c.0.s8 %v658
    %v660 = vlaneseq
    %v661 = vshrl.u32 %v660, 7
    %v662 = vsub.s32 %v659, %v661
    %v663 = vrot.slane %v636, %v662
    %v665 = vunpack.c.l.s4 1983009808
    %v666 = vunpack.c.0.s8 %v665
    %v667 = vlaneseq
    %v668 = vshrl.u32 %v667, 7
    %v669 = vsub.s32 %v666, %v668
    %v670 = vrot.slane %v656, %v669
    %v671 = vcombine.low %v648, %v663
    %v672 = vcombine.high %v648, %v663
    %v674 = vunpack.c.l.s4 1934713408
    %v675 = vunpack.c.0.s8 %v674
    %v676 = vlaneseq
    %v677 = vshrl.u32 %v676, 7
    %v678 = vsub.s32 %v675, %v677
    %v679 = vrot.slane %v671, %v678
    %v681 = vunpack.c.l.s4 1934713408
    %v682 = vunpack.c.0.s8 %v681
    %v683 = vlaneseq
    %v684 = vshrl.u32 %v683, 7
    %v685 = vsub.s32 %v682, %v684
    %v686 = vrot.slane %v672, %v685
    %v687 = vcombine.low %v655, %v670
    %v688 = vcombine.high %v655, %v670
    %v690 = vunpack.c.l.s4 1934713408
    %v691 = vunpack.c.0.s8 %v690
    %v692 = vlaneseq
    %v693 = vshrl.u32 %v692, 7
    %v694 = vsub.s32 %v691, %v693
    %v695 = vrot.slane %v687, %v694
    %v697 = vunpack.c.l.s4 1934713408
    %v698 = vunpack.c.0.s8 %v697
    %v699 = vlaneseq
    %v700 = vshrl.u32 %v699, 7
    %v701 = vsub.s32 %v698, %v700
    %v702 = vrot.slane %v688, %v701
    %v703 = vcombine.high %v679, 0.0
    %v704 = vcombine.high %v686, 0.0
    %v705 = vcombine.high %v695, 0.0
    %v706 = vcombine.high %v702, 0.0
    %v707 = vcombine.high %v210, 0.0
    %v709 = vunpack.c.l.s4 1983009808
    %v710 = vunpack.c.0.s8 %v709
    %v711 = vlaneseq
    %v712 = vshrl.u32 %v711, 7
    %v713 = vsub.s32 %v710, %v712
    %v714 = vrot.slane %v210, %v713
    %v716 = vunpack.c.l.s4 1983009808
    %v717 = vunpack.c.0.s8 %v716
    %v718 = vlaneseq
    %v719 = vshrl.u32 %v718, 7
    %v720 = vsub.s32 %v717, %v719
    %v721 = vrot.slane %v707, %v720
    %v722 = vcombine.high %v638, 0.0
    %v724 = vunpack.c.l.s4 1983009808
    %v725 = vunpack.c.0.s8 %v724
    %v726 = vlaneseq
    %v727 = vshrl.u32 %v726, 7
    %v728 = vsub.s32 %v725, %v727
    %v729 = vrot.slane %v638, %v728
    %v731 = vunpack.c.l.s4 1983009808
    %v732 = vunpack.c.0.s8 %v731
    %v733 = vlaneseq
    %v734 = vshrl.u32 %v733, 7
    %v735 = vsub.s32 %v732, %v734
    %v736 = vrot.slane %v722, %v735
    %v737 = vcombine.low %v714, %v729
    %v738 = vcombine.high %v714, %v729
    %v740 = vunpack.c.l.s4 1934713408
    %v741 = vunpack.c.0.s8 %v740
    %v742 = vlaneseq
    %v743 = vshrl.u32 %v742, 7
    %v744 = vsub.s32 %v741, %v743
    %v745 = vrot.slane %v737, %v744
    %v747 = vunpack.c.l.s4 1934713408
    %v748 = vunpack.c.0.s8 %v747
    %v749 = vlaneseq
    %v750 = vshrl.u32 %v749, 7
    %v751 = vsub.s32 %v748, %v750
    %v752 = vrot.slane %v738, %v751
    %v753 = vcombine.low %v721, %v736
    %v754 = vcombine.high %v721, %v736
    %v756 = vunpack.c.l.s4 1934713408
    %v757 = vunpack.c.0.s8 %v756
    %v758 = vlaneseq
    %v759 = vshrl.u32 %v758, 7
    %v760 = vsub.s32 %v757, %v759
    %v761 = vrot.slane %v753, %v760
    %v763 = vunpack.c.l.s4 1934713408
    %v764 = vunpack.c.0.s8 %v763
    %v765 = vlaneseq
    %v766 = vshrl.u32 %v765, 7
    %v767 = vsub.s32 %v764, %v766
    %v768 = vrot.slane %v754, %v767
    %v769 = vcombine.high %v745, 0.0
    %v770 = vcombine.high %v752, 0.0
    %v771 = vcombine.high %v761, 0.0
    %v772 = vcombine.high %v768, 0.0
    %789 = vrot.lane.b32.xlu0 %v399, 4
    %v790 = vpop.permute.xlu0 %789
    %791 = vrot.lane.b32.xlu0 %v423, 4
    %v792 = vpop.permute.xlu0 %791
    %793 = vrot.lane.b32.xlu0 %v406, 4
    %v794 = vpop.permute.xlu0 %793
    %795 = vrot.lane.b32.xlu0 %v424, 4
    %v796 = vpop.permute.xlu0 %795
    %797 = vrot.lane.b32.xlu0 %v415, 4
    %v798 = vpop.permute.xlu0 %797
    %799 = vrot.lane.b32.xlu0 %v425, 4
    %v800 = vpop.permute.xlu0 %799
    %801 = vrot.lane.b32.xlu0 %v422, 4
    %v802 = vpop.permute.xlu0 %801
    %803 = vrot.lane.b32.xlu0 %v426, 4
    %v804 = vpop.permute.xlu0 %803
    %805 = vrot.lane.b32.xlu0 %v465, 4
    %v806 = vpop.permute.xlu0 %805
    %807 = vrot.lane.b32.xlu0 %v489, 4
    %v808 = vpop.permute.xlu0 %807
    %809 = vrot.lane.b32.xlu0 %v472, 4
    %v810 = vpop.permute.xlu0 %809
    %811 = vrot.lane.b32.xlu0 %v490, 4
    %v812 = vpop.permute.xlu0 %811
    %813 = vrot.lane.b32.xlu0 %v481, 4
    %v814 = vpop.permute.xlu0 %813
    %815 = vrot.lane.b32.xlu0 %v491, 4
    %v816 = vpop.permute.xlu0 %815
    %817 = vrot.lane.b32.xlu0 %v488, 4
    %v818 = vpop.permute.xlu0 %817
    %819 = vrot.lane.b32.xlu0 %v492, 4
    %v820 = vpop.permute.xlu0 %819
    %853 = vrot.lane.b32.xlu0 %v539, 8
    %v854 = vpop.permute.xlu0 %853
    %855 = vrot.lane.b32.xlu0 %v563, 8
    %v856 = vpop.permute.xlu0 %855
    %857 = vrot.lane.b32.xlu0 %v546, 8
    %v858 = vpop.permute.xlu0 %857
    %859 = vrot.lane.b32.xlu0 %v564, 8
    %v860 = vpop.permute.xlu0 %859
    %861 = vrot.lane.b32.xlu0 %v555, 8
    %v862 = vpop.permute.xlu0 %861
    %863 = vrot.lane.b32.xlu0 %v565, 8
    %v864 = vpop.permute.xlu0 %863
    %865 = vrot.lane.b32.xlu0 %v562, 8
    %v866 = vpop.permute.xlu0 %865
    %867 = vrot.lane.b32.xlu0 %v566, 8
    %v868 = vpop.permute.xlu0 %867
    %869 = vrot.lane.b32.xlu0 %v605, 8
    %v870 = vpop.permute.xlu0 %869
    %871 = vrot.lane.b32.xlu0 %v629, 8
    %v872 = vpop.permute.xlu0 %871
    %873 = vrot.lane.b32.xlu0 %v612, 8
    %v874 = vpop.permute.xlu0 %873
    %875 = vrot.lane.b32.xlu0 %v630, 8
    %v876 = vpop.permute.xlu0 %875
    %877 = vrot.lane.b32.xlu0 %v621, 8
    %v878 = vpop.permute.xlu0 %877
    %879 = vrot.lane.b32.xlu0 %v631, 8
    %v880 = vpop.permute.xlu0 %879
    %881 = vrot.lane.b32.xlu0 %v628, 8
    %v882 = vpop.permute.xlu0 %881
    %883 = vrot.lane.b32.xlu0 %v632, 8
    %v884 = vpop.permute.xlu0 %883
    %917 = vrot.lane.b32.xlu0 %v679, 12
    %v918 = vpop.permute.xlu0 %917
    %919 = vrot.lane.b32.xlu0 %v703, 12
    %v920 = vpop.permute.xlu0 %919
    %921 = vrot.lane.b32.xlu0 %v686, 12
    %v922 = vpop.permute.xlu0 %921
    %923 = vrot.lane.b32.xlu0 %v704, 12
    %v924 = vpop.permute.xlu0 %923
    %925 = vrot.lane.b32.xlu0 %v695, 12
    %v926 = vpop.permute.xlu0 %925
    %927 = vrot.lane.b32.xlu0 %v705, 12
    %v928 = vpop.permute.xlu0 %927
    %929 = vrot.lane.b32.xlu0 %v702, 12
    %v930 = vpop.permute.xlu0 %929
    %931 = vrot.lane.b32.xlu0 %v706, 12
    %v932 = vpop.permute.xlu0 %931
    %933 = vrot.lane.b32.xlu0 %v745, 12
    %v934 = vpop.permute.xlu0 %933
    %935 = vrot.lane.b32.xlu0 %v769, 12
    %v936 = vpop.permute.xlu0 %935
    %937 = vrot.lane.b32.xlu0 %v752, 12
    %v938 = vpop.permute.xlu0 %937
    %939 = vrot.lane.b32.xlu0 %v770, 12
    %v940 = vpop.permute.xlu0 %939
    %941 = vrot.lane.b32.xlu0 %v761, 12
    %v942 = vpop.permute.xlu0 %941
    %943 = vrot.lane.b32.xlu0 %v771, 12
    %v944 = vpop.permute.xlu0 %943
    %945 = vrot.lane.b32.xlu0 %v768, 12
    %v946 = vpop.permute.xlu0 %945
    %947 = vrot.lane.b32.xlu0 %v772, 12
    %v948 = vpop.permute.xlu0 %947
    %vm965 = vcmask 31744
    %v966 = vsel %vm965, %v259, %v790
    %v967 = vsel %vm965, %v283, %v792
    %v968 = vsel %vm965, %v266, %v794
    %v969 = vsel %vm965, %v284, %v796
    %v970 = vsel %vm965, %v275, %v798
    %v971 = vsel %vm965, %v285, %v800
    %v972 = vsel %vm965, %v282, %v802
    %v973 = vsel %vm965, %v286, %v804
    %v974 = vsel %vm965, %v325, %v806
    %v975 = vsel %vm965, %v349, %v808
    %v976 = vsel %vm965, %v332, %v810
    %v977 = vsel %vm965, %v350, %v812
    %v978 = vsel %vm965, %v341, %v814
    %v979 = vsel %vm965, %v351, %v816
    %v980 = vsel %vm965, %v348, %v818
    %v981 = vsel %vm965, %v352, %v820
    %vm982 = vcmask 64512
    %v983 = vsel %vm982, %v966, %v854
    %v984 = vsel %vm982, %v967, %v856
    %v985 = vsel %vm982, %v968, %v858
    %v986 = vsel %vm982, %v969, %v860
    %v987 = vsel %vm982, %v970, %v862
    %v988 = vsel %vm982, %v971, %v864
    %v989 = vsel %vm982, %v972, %v866
    %v990 = vsel %vm982, %v973, %v868
    %v991 = vsel %vm982, %v974, %v870
    %v992 = vsel %vm982, %v975, %v872
    %v993 = vsel %vm982, %v976, %v874
    %v994 = vsel %vm982, %v977, %v876
    %v995 = vsel %vm982, %v978, %v878
    %v996 = vsel %vm982, %v979, %v880
    %v997 = vsel %vm982, %v980, %v882
    %v998 = vsel %vm982, %v981, %v884
    %vm999 = vcmask 97280
    %v1000 = vsel %vm999, %v983, %v918
    %v1001 = vsel %vm999, %v984, %v920
    %v1002 = vsel %vm999, %v985, %v922
    %v1003 = vsel %vm999, %v986, %v924
    %v1004 = vsel %vm999, %v987, %v926
    %v1005 = vsel %vm999, %v988, %v928
    %v1006 = vsel %vm999, %v989, %v930
    %v1007 = vsel %vm999, %v990, %v932
    %v1008 = vsel %vm999, %v991, %v934
    %v1009 = vsel %vm999, %v992, %v936
    %v1010 = vsel %vm999, %v993, %v938
    %v1011 = vsel %vm999, %v994, %v940
    %v1012 = vsel %vm999, %v995, %v942
    %v1013 = vsel %vm999, %v996, %v944
    %v1014 = vsel %vm999, %v997, %v946
    %v1015 = vsel %vm999, %v998, %v948
    %v1016 = vld [vmem:[#allocation7] sm:$0xff]
    %v1017 = vld [vmem:[#allocation7 + $0x8] sm:$0xff]
    %v1018 = vld [vmem:[#allocation7 + $0x10] sm:$0xff]
    %v1019 = vld [vmem:[#allocation7 + $0x18] sm:$0xff]
    %v1020 = vld [vmem:[#allocation7 + $0x20] sm:$0xff]
    %v1021 = vld [vmem:[#allocation7 + $0x28] sm:$0xff]
    %v1022 = vld [vmem:[#allocation7 + $0x30] sm:$0xff]
    %v1023 = vld [vmem:[#allocation7 + $0x38] sm:$0xff]
    %v1024 = vld [vmem:[#allocation7 + $0x40] sm:$0xff]
    %v1025 = vld [vmem:[#allocation7 + $0x48] sm:$0xff]
    %v1026 = vld [vmem:[#allocation7 + $0x50] sm:$0xff]
    %v1027 = vld [vmem:[#allocation7 + $0x58] sm:$0xff]
    %v1028 = vld [vmem:[#allocation7 + $0x60] sm:$0xff]
    %v1029 = vld [vmem:[#allocation7 + $0x68] sm:$0xff]
    %v1030 = vld [vmem:[#allocation7 + $0x70] sm:$0xff]
    %v1031 = vld [vmem:[#allocation7 + $0x78] sm:$0xff]
    %v1032 = vld [vmem:[#allocation7 + $0x80] sm:$0xff]
    %v1033 = vld [vmem:[#allocation7 + $0x88] sm:$0xff]
    %v1034 = vld [vmem:[#allocation7 + $0x90] sm:$0xff]
    %v1035 = vld [vmem:[#allocation7 + $0x98] sm:$0xff]
    %v1036 = vld [vmem:[#allocation7 + $0xa0] sm:$0xff]
    %v1037 = vld [vmem:[#allocation7 + $0xa8] sm:$0xff]
    %v1038 = vld [vmem:[#allocation7 + $0xb0] sm:$0xff]
    %v1039 = vld [vmem:[#allocation7 + $0xb8] sm:$0xff]
    %v1040 = vld [vmem:[#allocation7 + $0xc0] sm:$0xff]
    %v1041 = vld [vmem:[#allocation7 + $0xc8] sm:$0xff]
    %v1042 = vld [vmem:[#allocation7 + $0xd0] sm:$0xff]
    %v1043 = vld [vmem:[#allocation7 + $0xd8] sm:$0xff]
    %v1044 = vld [vmem:[#allocation7 + $0xe0] sm:$0xff]
    %v1045 = vld [vmem:[#allocation7 + $0xe8] sm:$0xff]
    %v1046 = vld [vmem:[#allocation7 + $0xf0] sm:$0xff]
    %v1047 = vld [vmem:[#allocation7 + $0xf8] sm:$0xff]
    %v1048 = vld [vmem:[#allocation8] sm:$0xff]
    %v1049 = vld [vmem:[#allocation8 + $0x8] sm:$0xff]
    %v1052 = vcombine.high %v1048, %v1048
    %v1054 = vunpack.c.l.s4 1966171168
    %v1055 = vunpack.c.0.s8 %v1054
    %v1056 = vlaneseq
    %v1057 = vshrl.u32 %v1056, 7
    %v1058 = vsub.s32 %v1055, %v1057
    %v1059 = vrot.slane %v1048, %v1058
    %v1061 = vunpack.c.l.s4 1966171168
    %v1062 = vunpack.c.0.s8 %v1061
    %v1063 = vlaneseq
    %v1064 = vshrl.u32 %v1063, 7
    %v1065 = vsub.s32 %v1062, %v1064
    %v1066 = vrot.slane %v1052, %v1065
    %v1067 = vcombine.high %v1059, %v1059
    %v1068 = vcombine.high %v1066, %v1066
    %v1070 = vunpack.c.l.s4 1966171168
    %v1071 = vunpack.c.0.s8 %v1070
    %v1072 = vlaneseq
    %v1073 = vshrl.u32 %v1072, 7
    %v1074 = vsub.s32 %v1071, %v1073
    %v1075 = vrot.slane %v1059, %v1074
    %v1077 = vunpack.c.l.s4 1966171168
    %v1078 = vunpack.c.0.s8 %v1077
    %v1079 = vlaneseq
    %v1080 = vshrl.u32 %v1079, 7
    %v1081 = vsub.s32 %v1078, %v1080
    %v1082 = vrot.slane %v1066, %v1081
    %v1084 = vunpack.c.l.s4 1966171168
    %v1085 = vunpack.c.0.s8 %v1084
    %v1086 = vlaneseq
    %v1087 = vshrl.u32 %v1086, 7
    %v1088 = vsub.s32 %v1085, %v1087
    %v1089 = vrot.slane %v1067, %v1088
    %v1091 = vunpack.c.l.s4 1966171168
    %v1092 = vunpack.c.0.s8 %v1091
    %v1093 = vlaneseq
    %v1094 = vshrl.u32 %v1093, 7
    %v1095 = vsub.s32 %v1092, %v1094
    %v1096 = vrot.slane %v1068, %v1095
    %v1097 = vcombine.high %v1075, %v1075
    %v1098 = vcombine.high %v1082, %v1082
    %v1099 = vcombine.high %v1089, %v1089
    %v1100 = vcombine.high %v1096, %v1096
    %v1101 = vcombine.high %v1049, %v1049
    %v1103 = vunpack.c.l.s4 1966171168
    %v1104 = vunpack.c.0.s8 %v1103
    %v1105 = vlaneseq
    %v1106 = vshrl.u32 %v1105, 7
    %v1107 = vsub.s32 %v1104, %v1106
    %v1108 = vrot.slane %v1049, %v1107
    %v1110 = vunpack.c.l.s4 1966171168
    %v1111 = vunpack.c.0.s8 %v1110
    %v1112 = vlaneseq
    %v1113 = vshrl.u32 %v1112, 7
    %v1114 = vsub.s32 %v1111, %v1113
    %v1115 = vrot.slane %v1101, %v1114
    %v1116 = vcombine.high %v1108, %v1108
    %v1117 = vcombine.high %v1115, %v1115
    %v1119 = vunpack.c.l.s4 1966171168
    %v1120 = vunpack.c.0.s8 %v1119
    %v1121 = vlaneseq
    %v1122 = vshrl.u32 %v1121, 7
    %v1123 = vsub.s32 %v1120, %v1122
    %v1124 = vrot.slane %v1108, %v1123
    %v1126 = vunpack.c.l.s4 1966171168
    %v1127 = vunpack.c.0.s8 %v1126
    %v1128 = vlaneseq
    %v1129 = vshrl.u32 %v1128, 7
    %v1130 = vsub.s32 %v1127, %v1129
    %v1131 = vrot.slane %v1115, %v1130
    %v1133 = vunpack.c.l.s4 1966171168
    %v1134 = vunpack.c.0.s8 %v1133
    %v1135 = vlaneseq
    %v1136 = vshrl.u32 %v1135, 7
    %v1137 = vsub.s32 %v1134, %v1136
    %v1138 = vrot.slane %v1116, %v1137
    %v1140 = vunpack.c.l.s4 1966171168
    %v1141 = vunpack.c.0.s8 %v1140
    %v1142 = vlaneseq
    %v1143 = vshrl.u32 %v1142, 7
    %v1144 = vsub.s32 %v1141, %v1143
    %v1145 = vrot.slane %v1117, %v1144
    %v1146 = vcombine.high %v1124, %v1124
    %v1147 = vcombine.high %v1131, %v1131
    %v1148 = vcombine.high %v1138, %v1138
    %v1149 = vcombine.high %v1145, %v1145
    %v1150 = vlaneseq
    %v1151 = vshrl.u32 %v1150, 7
    %v1152 = vsub.s32 0, %v1151
    %v1153 = vrot.slane %v1075, %v1152
    %v1154 = vlaneseq
    %v1155 = vshrl.u32 %v1154, 7
    %v1156 = vsub.s32 0, %v1155
    %v1157 = vrot.slane %v1089, %v1156
    %v1158 = vlaneseq
    %v1159 = vshrl.u32 %v1158, 7
    %v1160 = vsub.s32 0, %v1159
    %v1161 = vrot.slane %v1097, %v1160
    %v1162 = vlaneseq
    %v1163 = vshrl.u32 %v1162, 7
    %v1164 = vsub.s32 0, %v1163
    %v1165 = vrot.slane %v1099, %v1164
    %v1166 = vlaneseq
    %v1167 = vshrl.u32 %v1166, 7
    %v1168 = vsub.s32 0, %v1167
    %v1169 = vrot.slane %v1082, %v1168
    %v1170 = vlaneseq
    %v1171 = vshrl.u32 %v1170, 7
    %v1172 = vsub.s32 0, %v1171
    %v1173 = vrot.slane %v1096, %v1172
    %v1174 = vlaneseq
    %v1175 = vshrl.u32 %v1174, 7
    %v1176 = vsub.s32 0, %v1175
    %v1177 = vrot.slane %v1098, %v1176
    %v1178 = vlaneseq
    %v1179 = vshrl.u32 %v1178, 7
    %v1180 = vsub.s32 0, %v1179
    %v1181 = vrot.slane %v1100, %v1180
    %v1182 = vlaneseq
    %v1183 = vshrl.u32 %v1182, 7
    %v1184 = vsub.s32 0, %v1183
    %v1185 = vrot.slane %v1124, %v1184
    %v1186 = vlaneseq
    %v1187 = vshrl.u32 %v1186, 7
    %v1188 = vsub.s32 0, %v1187
    %v1189 = vrot.slane %v1138, %v1188
    %v1190 = vlaneseq
    %v1191 = vshrl.u32 %v1190, 7
    %v1192 = vsub.s32 0, %v1191
    %v1193 = vrot.slane %v1146, %v1192
    %v1194 = vlaneseq
    %v1195 = vshrl.u32 %v1194, 7
    %v1196 = vsub.s32 0, %v1195
    %v1197 = vrot.slane %v1148, %v1196
    %v1198 = vlaneseq
    %v1199 = vshrl.u32 %v1198, 7
    %v1200 = vsub.s32 0, %v1199
    %v1201 = vrot.slane %v1131, %v1200
    %v1202 = vlaneseq
    %v1203 = vshrl.u32 %v1202, 7
    %v1204 = vsub.s32 0, %v1203
    %v1205 = vrot.slane %v1145, %v1204
    %v1206 = vlaneseq
    %v1207 = vshrl.u32 %v1206, 7
    %v1208 = vsub.s32 0, %v1207
    %v1209 = vrot.slane %v1147, %v1208
    %v1210 = vlaneseq
    %v1211 = vshrl.u32 %v1210, 7
    %v1212 = vsub.s32 0, %v1211
    %v1213 = vrot.slane %v1149, %v1212
    %v1231 = vsel %vm83, %v1000, 0
    %1233 = vmatprep.subr.mxu0 0.0
    %1234 = vmatpush1.msra.mxu0 %v1016
    %1235 = vmatprep.subr.mxu0 0.0
    %1236 = vmatpush1.msra.mxu0 %v1017
    %1237 = vmatprep.subr.mxu0 0.0
    %1238 = vmatpush1.msra.mxu0 0.0
    %1239 = vmatprep.subr.mxu0 0.0
    %1240 = vmatpush1.msra.mxu0 0.0
    %1241 = vmatprep.subr.mxu0 0.0
    %1242 = vmatpush1.msra.mxu0 0.0
    %1243 = vmatprep.subr.mxu0 0.0
    %1244 = vmatpush1.msra.mxu0 0.0
    %1245 = vmatprep.subr.mxu0 0.0
    %1246 = vmatpush1.msra.mxu0 0.0
    %1247 = vmatprep.subr.mxu0 0.0
    %1248 = vmatpush1.msra.mxu0 0.0
    %1249 = vmatprep.subr.mxu0 0.0
    %1250 = vmatpush1.msra.mxu0 0.0
    %1251 = vmatprep.subr.mxu0 0.0
    %1252 = vmatpush1.msra.mxu0 0.0
    %1253 = vmatprep.subr.mxu0 0.0
    %1254 = vmatpush1.msra.mxu0 0.0
    %1255 = vmatprep.subr.mxu0 0.0
    %1256 = vmatpush1.msra.mxu0 0.0
    %1257 = vmatprep.subr.mxu0 0.0
    %1258 = vmatpush1.msra.mxu0 0.0
    %1259 = vmatprep.subr.mxu0 0.0
    %1260 = vmatpush1.msra.mxu0 0.0
    %1261 = vmatprep.subr.mxu0 0.0
    %1262 = vmatpush1.msra.mxu0 0.0
    %1263 = vmatprep.subr.mxu0 0.0
    %1264 = vmatpush1.msra.mxu0 0.0
    %1265 = vmatprep.subr.mxu0 0.0
    %1266 = vmatpush1.msra.mxu0 0.0
    %1267 = vmatprep.subr.mxu0 0.0
    %1268 = vmatpush1.msra.mxu0 0.0
    %1269 = vmatprep.subr.mxu0 0.0
    %1270 = vmatpush1.msra.mxu0 0.0
    %1271 = vmatprep.subr.mxu0 0.0
    %1272 = vmatpush1.msra.mxu0 0.0
    %1273 = vmatprep.subr.mxu0 0.0
    %1274 = vmatpush1.msra.mxu0 0.0
    %1275 = vmatprep.subr.mxu0 0.0
    %1276 = vmatpush1.msra.mxu0 0.0
    %1277 = vmatprep.subr.mxu0 0.0
    %1278 = vmatpush1.msra.mxu0 0.0
    %1279 = vmatprep.subr.mxu0 0.0
    %1280 = vmatpush1.msra.mxu0 0.0
    %1281 = vmatprep.subr.mxu0 0.0
    %1282 = vmatpush1.msra.mxu0 0.0
    %1283 = vmatprep.subr.mxu0 0.0
    %1284 = vmatpush1.msra.mxu0 0.0
    %1285 = vmatprep.subr.mxu0 0.0
    %1286 = vmatpush1.msra.mxu0 0.0
    %1287 = vmatprep.subr.mxu0 0.0
    %1288 = vmatpush1.msra.mxu0 0.0
    %1289 = vmatprep.subr.mxu0 0.0
    %1290 = vmatpush1.msra.mxu0 0.0
    %1291 = vmatprep.subr.mxu0 0.0
    %1292 = vmatpush1.msra.mxu0 0.0
    %1293 = vmatprep.subr.mxu0 0.0
    %1294 = vmatpush1.msra.mxu0 0.0
    %1295 = vmatprep.subr.mxu0 0.0
    %1296 = vmatpush1.msra.mxu0 0.0
    %1297 = vmatprep.mubr.f32.mxu0 0.0
    %1298 = vmatmul.mubr.f32.gmra.mrb[0].mxu0 %v1231
    %v1299 = vpop.f32.mrb[0].mxu0
    %v1300 = vadd.f32 %v1153, %v1299
    %v1301 = vpop.f32.mrb[0].mxu0
    %1302 = vdwg.mxu0
    %v1304 = vsel %vm83, %v1001, 0
    %1306 = vmatprep.subr.mxu0 0.0
    %1307 = vmatpush1.msra.mxu0 %v1018
    %1308 = vmatprep.subr.mxu0 0.0
    %1309 = vmatpush1.msra.mxu0 %v1019
    %1310 = vmatprep.subr.mxu0 0.0
    %1311 = vmatpush1.msra.mxu0 0.0
    %1312 = vmatprep.subr.mxu0 0.0
    %1313 = vmatpush1.msra.mxu0 0.0
    %1314 = vmatprep.subr.mxu0 0.0
    %1315 = vmatpush1.msra.mxu0 0.0
    %1316 = vmatprep.subr.mxu0 0.0
    %1317 = vmatpush1.msra.mxu0 0.0
    %1318 = vmatprep.subr.mxu0 0.0
    %1319 = vmatpush1.msra.mxu0 0.0
    %1320 = vmatprep.subr.mxu0 0.0
    %1321 = vmatpush1.msra.mxu0 0.0
    %1322 = vmatprep.subr.mxu0 0.0
    %1323 = vmatpush1.msra.mxu0 0.0
    %1324 = vmatprep.subr.mxu0 0.0
    %1325 = vmatpush1.msra.mxu0 0.0
    %1326 = vmatprep.subr.mxu0 0.0
    %1327 = vmatpush1.msra.mxu0 0.0
    %1328 = vmatprep.subr.mxu0 0.0
    %1329 = vmatpush1.msra.mxu0 0.0
    %1330 = vmatprep.subr.mxu0 0.0
    %1331 = vmatpush1.msra.mxu0 0.0
    %1332 = vmatprep.subr.mxu0 0.0
    %1333 = vmatpush1.msra.mxu0 0.0
    %1334 = vmatprep.subr.mxu0 0.0
    %1335 = vmatpush1.msra.mxu0 0.0
    %1336 = vmatprep.subr.mxu0 0.0
    %1337 = vmatpush1.msra.mxu0 0.0
    %1338 = vmatprep.subr.mxu0 0.0
    %1339 = vmatpush1.msra.mxu0 0.0
    %1340 = vmatprep.subr.mxu0 0.0
    %1341 = vmatpush1.msra.mxu0 0.0
    %1342 = vmatprep.subr.mxu0 0.0
    %1343 = vmatpush1.msra.mxu0 0.0
    %1344 = vmatprep.subr.mxu0 0.0
    %1345 = vmatpush1.msra.mxu0 0.0
    %1346 = vmatprep.subr.mxu0 0.0
    %1347 = vmatpush1.msra.mxu0 0.0
    %1348 = vmatprep.subr.mxu0 0.0
    %1349 = vmatpush1.msra.mxu0 0.0
    %1350 = vmatprep.subr.mxu0 0.0
    %1351 = vmatpush1.msra.mxu0 0.0
    %1352 = vmatprep.subr.mxu0 0.0
    %1353 = vmatpush1.msra.mxu0 0.0
    %1354 = vmatprep.subr.mxu0 0.0
    %1355 = vmatpush1.msra.mxu0 0.0
    %1356 = vmatprep.subr.mxu0 0.0
    %1357 = vmatpush1.msra.mxu0 0.0
    %1358 = vmatprep.subr.mxu0 0.0
    %1359 = vmatpush1.msra.mxu0 0.0
    %1360 = vmatprep.subr.mxu0 0.0
    %1361 = vmatpush1.msra.mxu0 0.0
    %1362 = vmatprep.subr.mxu0 0.0
    %1363 = vmatpush1.msra.mxu0 0.0
    %1364 = vmatprep.subr.mxu0 0.0
    %1365 = vmatpush1.msra.mxu0 0.0
    %1366 = vmatprep.subr.mxu0 0.0
    %1367 = vmatpush1.msra.mxu0 0.0
    %1368 = vmatprep.subr.mxu0 0.0
    %1369 = vmatpush1.msra.mxu0 0.0
    %1370 = vmatprep.mubr.f32.mxu0 0.0
    %1371 = vmatmul.mubr.f32.gmra.mrb[0].mxu0 %v1304
    %v1372 = vpop.f32.mrb[0].mxu0
    %v1373 = vadd.f32 %v1157, %v1372
    %v1374 = vpop.f32.mrb[0].mxu0
    %1375 = vdwg.mxu0
    %v1377 = vsel %vm83, %v1002, 0
    %1379 = vmatprep.subr.mxu0 0.0
    %1380 = vmatpush1.msra.mxu0 %v1020
    %1381 = vmatprep.subr.mxu0 0.0
    %1382 = vmatpush1.msra.mxu0 %v1021
    %1383 = vmatprep.subr.mxu0 0.0
    %1384 = vmatpush1.msra.mxu0 0.0
    %1385 = vmatprep.subr.mxu0 0.0
    %1386 = vmatpush1.msra.mxu0 0.0
    %1387 = vmatprep.subr.mxu0 0.0
    %1388 = vmatpush1.msra.mxu0 0.0
    %1389 = vmatprep.subr.mxu0 0.0
    %1390 = vmatpush1.msra.mxu0 0.0
    %1391 = vmatprep.subr.mxu0 0.0
    %1392 = vmatpush1.msra.mxu0 0.0
    %1393 = vmatprep.subr.mxu0 0.0
    %1394 = vmatpush1.msra.mxu0 0.0
    %1395 = vmatprep.subr.mxu0 0.0
    %1396 = vmatpush1.msra.mxu0 0.0
    %1397 = vmatprep.subr.mxu0 0.0
    %1398 = vmatpush1.msra.mxu0 0.0
    %1399 = vmatprep.subr.mxu0 0.0
    %1400 = vmatpush1.msra.mxu0 0.0
    %1401 = vmatprep.subr.mxu0 0.0
    %1402 = vmatpush1.msra.mxu0 0.0
    %1403 = vmatprep.subr.mxu0 0.0
    %1404 = vmatpush1.msra.mxu0 0.0
    %1405 = vmatprep.subr.mxu0 0.0
    %1406 = vmatpush1.msra.mxu0 0.0
    %1407 = vmatprep.subr.mxu0 0.0
    %1408 = vmatpush1.msra.mxu0 0.0
    %1409 = vmatprep.subr.mxu0 0.0
    %1410 = vmatpush1.msra.mxu0 0.0
    %1411 = vmatprep.subr.mxu0 0.0
    %1412 = vmatpush1.msra.mxu0 0.0
    %1413 = vmatprep.subr.mxu0 0.0
    %1414 = vmatpush1.msra.mxu0 0.0
    %1415 = vmatprep.subr.mxu0 0.0
    %1416 = vmatpush1.msra.mxu0 0.0
    %1417 = vmatprep.subr.mxu0 0.0
    %1418 = vmatpush1.msra.mxu0 0.0
    %1419 = vmatprep.subr.mxu0 0.0
    %1420 = vmatpush1.msra.mxu0 0.0
    %1421 = vmatprep.subr.mxu0 0.0
    %1422 = vmatpush1.msra.mxu0 0.0
    %1423 = vmatprep.subr.mxu0 0.0
    %1424 = vmatpush1.msra.mxu0 0.0
    %1425 = vmatprep.subr.mxu0 0.0
    %1426 = vmatpush1.msra.mxu0 0.0
    %1427 = vmatprep.subr.mxu0 0.0
    %1428 = vmatpush1.msra.mxu0 0.0
    %1429 = vmatprep.subr.mxu0 0.0
    %1430 = vmatpush1.msra.mxu0 0.0
    %1431 = vmatprep.subr.mxu0 0.0
    %1432 = vmatpush1.msra.mxu0 0.0
    %1433 = vmatprep.subr.mxu0 0.0
    %1434 = vmatpush1.msra.mxu0 0.0
    %1435 = vmatprep.subr.mxu0 0.0
    %1436 = vmatpush1.msra.mxu0 0.0
    %1437 = vmatprep.subr.mxu0 0.0
    %1438 = vmatpush1.msra.mxu0 0.0
    %1439 = vmatprep.subr.mxu0 0.0
    %1440 = vmatpush1.msra.mxu0 0.0
    %1441 = vmatprep.subr.mxu0 0.0
    %1442 = vmatpush1.msra.mxu0 0.0
    %1443 = vmatprep.mubr.f32.mxu0 0.0
    %1444 = vmatmul.mubr.f32.gmra.mrb[0].mxu0 %v1377
    %v1445 = vpop.f32.mrb[0].mxu0
    %v1446 = vadd.f32 %v1161, %v1445
    %v1447 = vpop.f32.mrb[0].mxu0
    %1448 = vdwg.mxu0
    %v1450 = vsel %vm83, %v1003, 0
    %1452 = vmatprep.subr.mxu0 0.0
    %1453 = vmatpush1.msra.mxu0 %v1022
    %1454 = vmatprep.subr.mxu0 0.0
    %1455 = vmatpush1.msra.mxu0 %v1023
    %1456 = vmatprep.subr.mxu0 0.0
    %1457 = vmatpush1.msra.mxu0 0.0
    %1458 = vmatprep.subr.mxu0 0.0
    %1459 = vmatpush1.msra.mxu0 0.0
    %1460 = vmatprep.subr.mxu0 0.0
    %1461 = vmatpush1.msra.mxu0 0.0
    %1462 = vmatprep.subr.mxu0 0.0
    %1463 = vmatpush1.msra.mxu0 0.0
    %1464 = vmatprep.subr.mxu0 0.0
    %1465 = vmatpush1.msra.mxu0 0.0
    %1466 = vmatprep.subr.mxu0 0.0
    %1467 = vmatpush1.msra.mxu0 0.0
    %1468 = vmatprep.subr.mxu0 0.0
    %1469 = vmatpush1.msra.mxu0 0.0
    %1470 = vmatprep.subr.mxu0 0.0
    %1471 = vmatpush1.msra.mxu0 0.0
    %1472 = vmatprep.subr.mxu0 0.0
    %1473 = vmatpush1.msra.mxu0 0.0
    %1474 = vmatprep.subr.mxu0 0.0
    %1475 = vmatpush1.msra.mxu0 0.0
    %1476 = vmatprep.subr.mxu0 0.0
    %1477 = vmatpush1.msra.mxu0 0.0
    %1478 = vmatprep.subr.mxu0 0.0
    %1479 = vmatpush1.msra.mxu0 0.0
    %1480 = vmatprep.subr.mxu0 0.0
    %1481 = vmatpush1.msra.mxu0 0.0
    %1482 = vmatprep.subr.mxu0 0.0
    %1483 = vmatpush1.msra.mxu0 0.0
    %1484 = vmatprep.subr.mxu0 0.0
    %1485 = vmatpush1.msra.mxu0 0.0
    %1486 = vmatprep.subr.mxu0 0.0
    %1487 = vmatpush1.msra.mxu0 0.0
    %1488 = vmatprep.subr.mxu0 0.0
    %1489 = vmatpush1.msra.mxu0 0.0
    %1490 = vmatprep.subr.mxu0 0.0
    %1491 = vmatpush1.msra.mxu0 0.0
    %1492 = vmatprep.subr.mxu0 0.0
    %1493 = vmatpush1.msra.mxu0 0.0
    %1494 = vmatprep.subr.mxu0 0.0
    %1495 = vmatpush1.msra.mxu0 0.0
    %1496 = vmatprep.subr.mxu0 0.0
    %1497 = vmatpush1.msra.mxu0 0.0
    %1498 = vmatprep.subr.mxu0 0.0
    %1499 = vmatpush1.msra.mxu0 0.0
    %1500 = vmatprep.subr.mxu0 0.0
    %1501 = vmatpush1.msra.mxu0 0.0
    %1502 = vmatprep.subr.mxu0 0.0
    %1503 = vmatpush1.msra.mxu0 0.0
    %1504 = vmatprep.subr.mxu0 0.0
    %1505 = vmatpush1.msra.mxu0 0.0
    %1506 = vmatprep.subr.mxu0 0.0
    %1507 = vmatpush1.msra.mxu0 0.0
    %1508 = vmatprep.subr.mxu0 0.0
    %1509 = vmatpush1.msra.mxu0 0.0
    %1510 = vmatprep.subr.mxu0 0.0
    %1511 = vmatpush1.msra.mxu0 0.0
    %1512 = vmatprep.subr.mxu0 0.0
    %1513 = vmatpush1.msra.mxu0 0.0
    %1514 = vmatprep.subr.mxu0 0.0
    %1515 = vmatpush1.msra.mxu0 0.0
    %1516 = vmatprep.mubr.f32.mxu0 0.0
    %1517 = vmatmul.mubr.f32.gmra.mrb[0].mxu0 %v1450
    %v1518 = vpop.f32.mrb[0].mxu0
    %v1519 = vadd.f32 %v1165, %v1518
    %v1520 = vpop.f32.mrb[0].mxu0
    %1521 = vdwg.mxu0
    %v1523 = vsel %vm83, %v1004, 0
    %1525 = vmatprep.subr.mxu0 0.0
    %1526 = vmatpush1.msra.mxu0 %v1024
    %1527 = vmatprep.subr.mxu0 0.0
    %1528 = vmatpush1.msra.mxu0 %v1025
    %1529 = vmatprep.subr.mxu0 0.0
    %1530 = vmatpush1.msra.mxu0 0.0
    %1531 = vmatprep.subr.mxu0 0.0
    %1532 = vmatpush1.msra.mxu0 0.0
    %1533 = vmatprep.subr.mxu0 0.0
    %1534 = vmatpush1.msra.mxu0 0.0
    %1535 = vmatprep.subr.mxu0 0.0
    %1536 = vmatpush1.msra.mxu0 0.0
    %1537 = vmatprep.subr.mxu0 0.0
    %1538 = vmatpush1.msra.mxu0 0.0
    %1539 = vmatprep.subr.mxu0 0.0
    %1540 = vmatpush1.msra.mxu0 0.0
    %1541 = vmatprep.subr.mxu0 0.0
    %1542 = vmatpush1.msra.mxu0 0.0
    %1543 = vmatprep.subr.mxu0 0.0
    %1544 = vmatpush1.msra.mxu0 0.0
    %1545 = vmatprep.subr.mxu0 0.0
    %1546 = vmatpush1.msra.mxu0 0.0
    %1547 = vmatprep.subr.mxu0 0.0
    %1548 = vmatpush1.msra.mxu0 0.0
    %1549 = vmatprep.subr.mxu0 0.0
    %1550 = vmatpush1.msra.mxu0 0.0
    %1551 = vmatprep.subr.mxu0 0.0
    %1552 = vmatpush1.msra.mxu0 0.0
    %1553 = vmatprep.subr.mxu0 0.0
    %1554 = vmatpush1.msra.mxu0 0.0
    %1555 = vmatprep.subr.mxu0 0.0
    %1556 = vmatpush1.msra.mxu0 0.0
    %1557 = vmatprep.subr.mxu0 0.0
    %1558 = vmatpush1.msra.mxu0 0.0
    %1559 = vmatprep.subr.mxu0 0.0
    %1560 = vmatpush1.msra.mxu0 0.0
    %1561 = vmatprep.subr.mxu0 0.0
    %1562 = vmatpush1.msra.mxu0 0.0
    %1563 = vmatprep.subr.mxu0 0.0
    %1564 = vmatpush1.msra.mxu0 0.0
    %1565 = vmatprep.subr.mxu0 0.0
    %1566 = vmatpush1.msra.mxu0 0.0
    %1567 = vmatprep.subr.mxu0 0.0
    %1568 = vmatpush1.msra.mxu0 0.0
    %1569 = vmatprep.subr.mxu0 0.0
    %1570 = vmatpush1.msra.mxu0 0.0
    %1571 = vmatprep.subr.mxu0 0.0
    %1572 = vmatpush1.msra.mxu0 0.0
    %1573 = vmatprep.subr.mxu0 0.0
    %1574 = vmatpush1.msra.mxu0 0.0
    %1575 = vmatprep.subr.mxu0 0.0
    %1576 = vmatpush1.msra.mxu0 0.0
    %1577 = vmatprep.subr.mxu0 0.0
    %1578 = vmatpush1.msra.mxu0 0.0
    %1579 = vmatprep.subr.mxu0 0.0
    %1580 = vmatpush1.msra.mxu0 0.0
    %1581 = vmatprep.subr.mxu0 0.0
    %1582 = vmatpush1.msra.mxu0 0.0
    %1583 = vmatprep.subr.mxu0 0.0
    %1584 = vmatpush1.msra.mxu0 0.0
    %1585 = vmatprep.subr.mxu0 0.0
    %1586 = vmatpush1.msra.mxu0 0.0
    %1587 = vmatprep.subr.mxu0 0.0
    %1588 = vmatpush1.msra.mxu0 0.0
    %1589 = vmatprep.mubr.f32.mxu0 0.0
    %1590 = vmatmul.mubr.f32.gmra.mrb[0].mxu0 %v1523
    %v1591 = vpop.f32.mrb[0].mxu0
    %v1592 = vadd.f32 %v1169, %v1591
    %v1593 = vpop.f32.mrb[0].mxu0
    %1594 = vdwg.mxu0
    %v1596 = vsel %vm83, %v1005, 0
    %1598 = vmatprep.subr.mxu0 0.0
    %1599 = vmatpush1.msra.mxu0 %v1026
    %1600 = vmatprep.subr.mxu0 0.0
    %1601 = vmatpush1.msra.mxu0 %v1027
    %1602 = vmatprep.subr.mxu0 0.0
    %1603 = vmatpush1.msra.mxu0 0.0
    %1604 = vmatprep.subr.mxu0 0.0
    %1605 = vmatpush1.msra.mxu0 0.0
    %1606 = vmatprep.subr.mxu0 0.0
    %1607 = vmatpush1.msra.mxu0 0.0
    %1608 = vmatprep.subr.mxu0 0.0
    %1609 = vmatpush1.msra.mxu0 0.0
    %1610 = vmatprep.subr.mxu0 0.0
    %1611 = vmatpush1.msra.mxu0 0.0
    %1612 = vmatprep.subr.mxu0 0.0
    %1613 = vmatpush1.msra.mxu0 0.0
    %1614 = vmatprep.subr.mxu0 0.0
    %1615 = vmatpush1.msra.mxu0 0.0
    %1616 = vmatprep.subr.mxu0 0.0
    %1617 = vmatpush1.msra.mxu0 0.0
    %1618 = vmatprep.subr.mxu0 0.0
    %1619 = vmatpush1.msra.mxu0 0.0
    %1620 = vmatprep.subr.mxu0 0.0
    %1621 = vmatpush1.msra.mxu0 0.0
    %1622 = vmatprep.subr.mxu0 0.0
    %1623 = vmatpush1.msra.mxu0 0.0
    %1624 = vmatprep.subr.mxu0 0.0
    %1625 = vmatpush1.msra.mxu0 0.0
    %1626 = vmatprep.subr.mxu0 0.0
    %1627 = vmatpush1.msra.mxu0 0.0
    %1628 = vmatprep.subr.mxu0 0.0
    %1629 = vmatpush1.msra.mxu0 0.0
    %1630 = vmatprep.subr.mxu0 0.0
    %1631 = vmatpush1.msra.mxu0 0.0
    %1632 = vmatprep.subr.mxu0 0.0
    %1633 = vmatpush1.msra.mxu0 0.0
    %1634 = vmatprep.subr.mxu0 0.0
    %1635 = vmatpush1.msra.mxu0 0.0
    %1636 = vmatprep.subr.mxu0 0.0
    %1637 = vmatpush1.msra.mxu0 0.0
    %1638 = vmatprep.subr.mxu0 0.0
    %1639 = vmatpush1.msra.mxu0 0.0
    %1640 = vmatprep.subr.mxu0 0.0
    %1641 = vmatpush1.msra.mxu0 0.0
    %1642 = vmatprep.subr.mxu0 0.0
    %1643 = vmatpush1.msra.mxu0 0.0
    %1644 = vmatprep.subr.mxu0 0.0
    %1645 = vmatpush1.msra.mxu0 0.0
    %1646 = vmatprep.subr.mxu0 0.0
    %1647 = vmatpush1.msra.mxu0 0.0
    %1648 = vmatprep.subr.mxu0 0.0
    %1649 = vmatpush1.msra.mxu0 0.0
    %1650 = vmatprep.subr.mxu0 0.0
    %1651 = vmatpush1.msra.mxu0 0.0
    %1652 = vmatprep.subr.mxu0 0.0
    %1653 = vmatpush1.msra.mxu0 0.0
    %1654 = vmatprep.subr.mxu0 0.0
    %1655 = vmatpush1.msra.mxu0 0.0
    %1656 = vmatprep.subr.mxu0 0.0
    %1657 = vmatpush1.msra.mxu0 0.0
    %1658 = vmatprep.subr.mxu0 0.0
    %1659 = vmatpush1.msra.mxu0 0.0
    %1660 = vmatprep.subr.mxu0 0.0
    %1661 = vmatpush1.msra.mxu0 0.0
    %1662 = vmatprep.mubr.f32.mxu0 0.0
    %1663 = vmatmul.mubr.f32.gmra.mrb[0].mxu0 %v1596
    %v1664 = vpop.f32.mrb[0].mxu0
    %v1665 = vadd.f32 %v1173, %v1664
    %v1666 = vpop.f32.mrb[0].mxu0
    %1667 = vdwg.mxu0
    %v1669 = vsel %vm83, %v1006, 0
    %1671 = vmatprep.subr.mxu0 0.0
    %1672 = vmatpush1.msra.mxu0 %v1028
    %1673 = vmatprep.subr.mxu0 0.0
    %1674 = vmatpush1.msra.mxu0 %v1029
    %1675 = vmatprep.subr.mxu0 0.0
    %1676 = vmatpush1.msra.mxu0 0.0
    %1677 = vmatprep.subr.mxu0 0.0
    %1678 = vmatpush1.msra.mxu0 0.0
    %1679 = vmatprep.subr.mxu0 0.0
    %1680 = vmatpush1.msra.mxu0 0.0
    %1681 = vmatprep.subr.mxu0 0.0
    %1682 = vmatpush1.msra.mxu0 0.0
    %1683 = vmatprep.subr.mxu0 0.0
    %1684 = vmatpush1.msra.mxu0 0.0
    %1685 = vmatprep.subr.mxu0 0.0
    %1686 = vmatpush1.msra.mxu0 0.0
    %1687 = vmatprep.subr.mxu0 0.0
    %1688 = vmatpush1.msra.mxu0 0.0
    %1689 = vmatprep.subr.mxu0 0.0
    %1690 = vmatpush1.msra.mxu0 0.0
    %1691 = vmatprep.subr.mxu0 0.0
    %1692 = vmatpush1.msra.mxu0 0.0
    %1693 = vmatprep.subr.mxu0 0.0
    %1694 = vmatpush1.msra.mxu0 0.0
    %1695 = vmatprep.subr.mxu0 0.0
    %1696 = vmatpush1.msra.mxu0 0.0
    %1697 = vmatprep.subr.mxu0 0.0
    %1698 = vmatpush1.msra.mxu0 0.0
    %1699 = vmatprep.subr.mxu0 0.0
    %1700 = vmatpush1.msra.mxu0 0.0
    %1701 = vmatprep.subr.mxu0 0.0
    %1702 = vmatpush1.msra.mxu0 0.0
    %1703 = vmatprep.subr.mxu0 0.0
    %1704 = vmatpush1.msra.mxu0 0.0
    %1705 = vmatprep.subr.mxu0 0.0
    %1706 = vmatpush1.msra.mxu0 0.0
    %1707 = vmatprep.subr.mxu0 0.0
    %1708 = vmatpush1.msra.mxu0 0.0
    %1709 = vmatprep.subr.mxu0 0.0
    %1710 = vmatpush1.msra.mxu0 0.0
    %1711 = vmatprep.subr.mxu0 0.0
    %1712 = vmatpush1.msra.mxu0 0.0
    %1713 = vmatprep.subr.mxu0 0.0
    %1714 = vmatpush1.msra.mxu0 0.0
    %1715 = vmatprep.subr.mxu0 0.0
    %1716 = vmatpush1.msra.mxu0 0.0
    %1717 = vmatprep.subr.mxu0 0.0
    %1718 = vmatpush1.msra.mxu0 0.0
    %1719 = vmatprep.subr.mxu0 0.0
    %1720 = vmatpush1.msra.mxu0 0.0
    %1721 = vmatprep.subr.mxu0 0.0
    %1722 = vmatpush1.msra.mxu0 0.0
    %1723 = vmatprep.subr.mxu0 0.0
    %1724 = vmatpush1.msra.mxu0 0.0
    %1725 = vmatprep.subr.mxu0 0.0
    %1726 = vmatpush1.msra.mxu0 0.0
    %1727 = vmatprep.subr.mxu0 0.0
    %1728 = vmatpush1.msra.mxu0 0.0
    %1729 = vmatprep.subr.mxu0 0.0
    %1730 = vmatpush1.msra.mxu0 0.0
    %1731 = vmatprep.subr.mxu0 0.0
    %1732 = vmatpush1.msra.mxu0 0.0
    %1733 = vmatprep.subr.mxu0 0.0
    %1734 = vmatpush1.msra.mxu0 0.0
    %1735 = vmatprep.mubr.f32.mxu0 0.0
    %1736 = vmatmul.mubr.f32.gmra.mrb[0].mxu0 %v1669
    %v1737 = vpop.f32.mrb[0].mxu0
    %v1738 = vadd.f32 %v1177, %v1737
    %v1739 = vpop.f32.mrb[0].mxu0
    %1740 = vdwg.mxu0
    %v1742 = vsel %vm83, %v1007, 0
    %1744 = vmatprep.subr.mxu0 0.0
    %1745 = vmatpush1.msra.mxu0 %v1030
    %1746 = vmatprep.subr.mxu0 0.0
    %1747 = vmatpush1.msra.mxu0 %v1031
    %1748 = vmatprep.subr.mxu0 0.0
    %1749 = vmatpush1.msra.mxu0 0.0
    %1750 = vmatprep.subr.mxu0 0.0
    %1751 = vmatpush1.msra.mxu0 0.0
    %1752 = vmatprep.subr.mxu0 0.0
    %1753 = vmatpush1.msra.mxu0 0.0
    %1754 = vmatprep.subr.mxu0 0.0
    %1755 = vmatpush1.msra.mxu0 0.0
    %1756 = vmatprep.subr.mxu0 0.0
    %1757 = vmatpush1.msra.mxu0 0.0
    %1758 = vmatprep.subr.mxu0 0.0
    %1759 = vmatpush1.msra.mxu0 0.0
    %1760 = vmatprep.subr.mxu0 0.0
    %1761 = vmatpush1.msra.mxu0 0.0
    %1762 = vmatprep.subr.mxu0 0.0
    %1763 = vmatpush1.msra.mxu0 0.0
    %1764 = vmatprep.subr.mxu0 0.0
    %1765 = vmatpush1.msra.mxu0 0.0
    %1766 = vmatprep.subr.mxu0 0.0
    %1767 = vmatpush1.msra.mxu0 0.0
    %1768 = vmatprep.subr.mxu0 0.0
    %1769 = vmatpush1.msra.mxu0 0.0
    %1770 = vmatprep.subr.mxu0 0.0
    %1771 = vmatpush1.msra.mxu0 0.0
    %1772 = vmatprep.subr.mxu0 0.0
    %1773 = vmatpush1.msra.mxu0 0.0
    %1774 = vmatprep.subr.mxu0 0.0
    %1775 = vmatpush1.msra.mxu0 0.0
    %1776 = vmatprep.subr.mxu0 0.0
    %1777 = vmatpush1.msra.mxu0 0.0
    %1778 = vmatprep.subr.mxu0 0.0
    %1779 = vmatpush1.msra.mxu0 0.0
    %1780 = vmatprep.subr.mxu0 0.0
    %1781 = vmatpush1.msra.mxu0 0.0
    %1782 = vmatprep.subr.mxu0 0.0
    %1783 = vmatpush1.msra.mxu0 0.0
    %1784 = vmatprep.subr.mxu0 0.0
    %1785 = vmatpush1.msra.mxu0 0.0
    %1786 = vmatprep.subr.mxu0 0.0
    %1787 = vmatpush1.msra.mxu0 0.0
    %1788 = vmatprep.subr.mxu0 0.0
    %1789 = vmatpush1.msra.mxu0 0.0
    %1790 = vmatprep.subr.mxu0 0.0
    %1791 = vmatpush1.msra.mxu0 0.0
    %1792 = vmatprep.subr.mxu0 0.0
    %1793 = vmatpush1.msra.mxu0 0.0
    %1794 = vmatprep.subr.mxu0 0.0
    %1795 = vmatpush1.msra.mxu0 0.0
    %1796 = vmatprep.subr.mxu0 0.0
    %1797 = vmatpush1.msra.mxu0 0.0
    %1798 = vmatprep.subr.mxu0 0.0
    %1799 = vmatpush1.msra.mxu0 0.0
    %1800 = vmatprep.subr.mxu0 0.0
    %1801 = vmatpush1.msra.mxu0 0.0
    %1802 = vmatprep.subr.mxu0 0.0
    %1803 = vmatpush1.msra.mxu0 0.0
    %1804 = vmatprep.subr.mxu0 0.0
    %1805 = vmatpush1.msra.mxu0 0.0
    %1806 = vmatprep.subr.mxu0 0.0
    %1807 = vmatpush1.msra.mxu0 0.0
    %1808 = vmatprep.mubr.f32.mxu0 0.0
    %1809 = vmatmul.mubr.f32.gmra.mrb[0].mxu0 %v1742
    %v1810 = vpop.f32.mrb[0].mxu0
    %v1811 = vadd.f32 %v1181, %v1810
    %v1812 = vpop.f32.mrb[0].mxu0
    %1813 = vdwg.mxu0
    %v1815 = vsel %vm83, %v1008, 0
    %1817 = vmatprep.subr.mxu0 0.0
    %1818 = vmatpush1.msra.mxu0 %v1032
    %1819 = vmatprep.subr.mxu0 0.0
    %1820 = vmatpush1.msra.mxu0 %v1033
    %1821 = vmatprep.subr.mxu0 0.0
    %1822 = vmatpush1.msra.mxu0 0.0
    %1823 = vmatprep.subr.mxu0 0.0
    %1824 = vmatpush1.msra.mxu0 0.0
    %1825 = vmatprep.subr.mxu0 0.0
    %1826 = vmatpush1.msra.mxu0 0.0
    %1827 = vmatprep.subr.mxu0 0.0
    %1828 = vmatpush1.msra.mxu0 0.0
    %1829 = vmatprep.subr.mxu0 0.0
    %1830 = vmatpush1.msra.mxu0 0.0
    %1831 = vmatprep.subr.mxu0 0.0
    %1832 = vmatpush1.msra.mxu0 0.0
    %1833 = vmatprep.subr.mxu0 0.0
    %1834 = vmatpush1.msra.mxu0 0.0
    %1835 = vmatprep.subr.mxu0 0.0
    %1836 = vmatpush1.msra.mxu0 0.0
    %1837 = vmatprep.subr.mxu0 0.0
    %1838 = vmatpush1.msra.mxu0 0.0
    %1839 = vmatprep.subr.mxu0 0.0
    %1840 = vmatpush1.msra.mxu0 0.0
    %1841 = vmatprep.subr.mxu0 0.0
    %1842 = vmatpush1.msra.mxu0 0.0
    %1843 = vmatprep.subr.mxu0 0.0
    %1844 = vmatpush1.msra.mxu0 0.0
    %1845 = vmatprep.subr.mxu0 0.0
    %1846 = vmatpush1.msra.mxu0 0.0
    %1847 = vmatprep.subr.mxu0 0.0
    %1848 = vmatpush1.msra.mxu0 0.0
    %1849 = vmatprep.subr.mxu0 0.0
    %1850 = vmatpush1.msra.mxu0 0.0
    %1851 = vmatprep.subr.mxu0 0.0
    %1852 = vmatpush1.msra.mxu0 0.0
    %1853 = vmatprep.subr.mxu0 0.0
    %1854 = vmatpush1.msra.mxu0 0.0
    %1855 = vmatprep.subr.mxu0 0.0
    %1856 = vmatpush1.msra.mxu0 0.0
    %1857 = vmatprep.subr.mxu0 0.0
    %1858 = vmatpush1.msra.mxu0 0.0
    %1859 = vmatprep.subr.mxu0 0.0
    %1860 = vmatpush1.msra.mxu0 0.0
    %1861 = vmatprep.subr.mxu0 0.0
    %1862 = vmatpush1.msra.mxu0 0.0
    %1863 = vmatprep.subr.mxu0 0.0
    %1864 = vmatpush1.msra.mxu0 0.0
    %1865 = vmatprep.subr.mxu0 0.0
    %1866 = vmatpush1.msra.mxu0 0.0
    %1867 = vmatprep.subr.mxu0 0.0
    %1868 = vmatpush1.msra.mxu0 0.0
    %1869 = vmatprep.subr.mxu0 0.0
    %1870 = vmatpush1.msra.mxu0 0.0
    %1871 = vmatprep.subr.mxu0 0.0
    %1872 = vmatpush1.msra.mxu0 0.0
    %1873 = vmatprep.subr.mxu0 0.0
    %1874 = vmatpush1.msra.mxu0 0.0
    %1875 = vmatprep.subr.mxu0 0.0
    %1876 = vmatpush1.msra.mxu0 0.0
    %1877 = vmatprep.subr.mxu0 0.0
    %1878 = vmatpush1.msra.mxu0 0.0
    %1879 = vmatprep.subr.mxu0 0.0
    %1880 = vmatpush1.msra.mxu0 0.0
    %1881 = vmatprep.mubr.f32.mxu0 0.0
    %1882 = vmatmul.mubr.f32.gmra.mrb[0].mxu0 %v1815
    %v1883 = vpop.f32.mrb[0].mxu0
    %v1884 = vadd.f32 %v1185, %v1883
    %v1885 = vpop.f32.mrb[0].mxu0
    %1886 = vdwg.mxu0
    %v1888 = vsel %vm83, %v1009, 0
    %1890 = vmatprep.subr.mxu0 0.0
    %1891 = vmatpush1.msra.mxu0 %v1034
    %1892 = vmatprep.subr.mxu0 0.0
    %1893 = vmatpush1.msra.mxu0 %v1035
    %1894 = vmatprep.subr.mxu0 0.0
    %1895 = vmatpush1.msra.mxu0 0.0
    %1896 = vmatprep.subr.mxu0 0.0
    %1897 = vmatpush1.msra.mxu0 0.0
    %1898 = vmatprep.subr.mxu0 0.0
    %1899 = vmatpush1.msra.mxu0 0.0
    %1900 = vmatprep.subr.mxu0 0.0
    %1901 = vmatpush1.msra.mxu0 0.0
    %1902 = vmatprep.subr.mxu0 0.0
    %1903 = vmatpush1.msra.mxu0 0.0
    %1904 = vmatprep.subr.mxu0 0.0
    %1905 = vmatpush1.msra.mxu0 0.0
    %1906 = vmatprep.subr.mxu0 0.0
    %1907 = vmatpush1.msra.mxu0 0.0
    %1908 = vmatprep.subr.mxu0 0.0
    %1909 = vmatpush1.msra.mxu0 0.0
    %1910 = vmatprep.subr.mxu0 0.0
    %1911 = vmatpush1.msra.mxu0 0.0
    %1912 = vmatprep.subr.mxu0 0.0
    %1913 = vmatpush1.msra.mxu0 0.0
    %1914 = vmatprep.subr.mxu0 0.0
    %1915 = vmatpush1.msra.mxu0 0.0
    %1916 = vmatprep.subr.mxu0 0.0
    %1917 = vmatpush1.msra.mxu0 0.0
    %1918 = vmatprep.subr.mxu0 0.0
    %1919 = vmatpush1.msra.mxu0 0.0
    %1920 = vmatprep.subr.mxu0 0.0
    %1921 = vmatpush1.msra.mxu0 0.0
    %1922 = vmatprep.subr.mxu0 0.0
    %1923 = vmatpush1.msra.mxu0 0.0
    %1924 = vmatprep.subr.mxu0 0.0
    %1925 = vmatpush1.msra.mxu0 0.0
    %1926 = vmatprep.subr.mxu0 0.0
    %1927 = vmatpush1.msra.mxu0 0.0
    %1928 = vmatprep.subr.mxu0 0.0
    %1929 = vmatpush1.msra.mxu0 0.0
    %1930 = vmatprep.subr.mxu0 0.0
    %1931 = vmatpush1.msra.mxu0 0.0
    %1932 = vmatprep.subr.mxu0 0.0
    %1933 = vmatpush1.msra.mxu0 0.0
    %1934 = vmatprep.subr.mxu0 0.0
    %1935 = vmatpush1.msra.mxu0 0.0
    %1936 = vmatprep.subr.mxu0 0.0
    %1937 = vmatpush1.msra.mxu0 0.0
    %1938 = vmatprep.subr.mxu0 0.0
    %1939 = vmatpush1.msra.mxu0 0.0
    %1940 = vmatprep.subr.mxu0 0.0
    %1941 = vmatpush1.msra.mxu0 0.0
    %1942 = vmatprep.subr.mxu0 0.0
    %1943 = vmatpush1.msra.mxu0 0.0
    %1944 = vmatprep.subr.mxu0 0.0
    %1945 = vmatpush1.msra.mxu0 0.0
    %1946 = vmatprep.subr.mxu0 0.0
    %1947 = vmatpush1.msra.mxu0 0.0
    %1948 = vmatprep.subr.mxu0 0.0
    %1949 = vmatpush1.msra.mxu0 0.0
    %1950 = vmatprep.subr.mxu0 0.0
    %1951 = vmatpush1.msra.mxu0 0.0
    %1952 = vmatprep.subr.mxu0 0.0
    %1953 = vmatpush1.msra.mxu0 0.0
    %1954 = vmatprep.mubr.f32.mxu0 0.0
    %1955 = vmatmul.mubr.f32.gmra.mrb[0].mxu0 %v1888
    %v1956 = vpop.f32.mrb[0].mxu0
    %v1957 = vadd.f32 %v1189, %v1956
    %v1958 = vpop.f32.mrb[0].mxu0
    %1959 = vdwg.mxu0
    %v1961 = vsel %vm83, %v1010, 0
    %1963 = vmatprep.subr.mxu0 0.0
    %1964 = vmatpush1.msra.mxu0 %v1036
    %1965 = vmatprep.subr.mxu0 0.0
    %1966 = vmatpush1.msra.mxu0 %v1037
    %1967 = vmatprep.subr.mxu0 0.0
    %1968 = vmatpush1.msra.mxu0 0.0
    %1969 = vmatprep.subr.mxu0 0.0
    %1970 = vmatpush1.msra.mxu0 0.0
    %1971 = vmatprep.subr.mxu0 0.0
    %1972 = vmatpush1.msra.mxu0 0.0
    %1973 = vmatprep.subr.mxu0 0.0
    %1974 = vmatpush1.msra.mxu0 0.0
    %1975 = vmatprep.subr.mxu0 0.0
    %1976 = vmatpush1.msra.mxu0 0.0
    %1977 = vmatprep.subr.mxu0 0.0
    %1978 = vmatpush1.msra.mxu0 0.0
    %1979 = vmatprep.subr.mxu0 0.0
    %1980 = vmatpush1.msra.mxu0 0.0
    %1981 = vmatprep.subr.mxu0 0.0
    %1982 = vmatpush1.msra.mxu0 0.0
    %1983 = vmatprep.subr.mxu0 0.0
    %1984 = vmatpush1.msra.mxu0 0.0
    %1985 = vmatprep.subr.mxu0 0.0
    %1986 = vmatpush1.msra.mxu0 0.0
    %1987 = vmatprep.subr.mxu0 0.0
    %1988 = vmatpush1.msra.mxu0 0.0
    %1989 = vmatprep.subr.mxu0 0.0
    %1990 = vmatpush1.msra.mxu0 0.0
    %1991 = vmatprep.subr.mxu0 0.0
    %1992 = vmatpush1.msra.mxu0 0.0
    %1993 = vmatprep.subr.mxu0 0.0
    %1994 = vmatpush1.msra.mxu0 0.0
    %1995 = vmatprep.subr.mxu0 0.0
    %1996 = vmatpush1.msra.mxu0 0.0
    %1997 = vmatprep.subr.mxu0 0.0
    %1998 = vmatpush1.msra.mxu0 0.0
    %1999 = vmatprep.subr.mxu0 0.0
    %2000 = vmatpush1.msra.mxu0 0.0
    %2001 = vmatprep.subr.mxu0 0.0
    %2002 = vmatpush1.msra.mxu0 0.0
    %2003 = vmatprep.subr.mxu0 0.0
    %2004 = vmatpush1.msra.mxu0 0.0
    %2005 = vmatprep.subr.mxu0 0.0
    %2006 = vmatpush1.msra.mxu0 0.0
    %2007 = vmatprep.subr.mxu0 0.0
    %2008 = vmatpush1.msra.mxu0 0.0
    %2009 = vmatprep.subr.mxu0 0.0
    %2010 = vmatpush1.msra.mxu0 0.0
    %2011 = vmatprep.subr.mxu0 0.0
    %2012 = vmatpush1.msra.mxu0 0.0
    %2013 = vmatprep.subr.mxu0 0.0
    %2014 = vmatpush1.msra.mxu0 0.0
    %2015 = vmatprep.subr.mxu0 0.0
    %2016 = vmatpush1.msra.mxu0 0.0
    %2017 = vmatprep.subr.mxu0 0.0
    %2018 = vmatpush1.msra.mxu0 0.0
    %2019 = vmatprep.subr.mxu0 0.0
    %2020 = vmatpush1.msra.mxu0 0.0
    %2021 = vmatprep.subr.mxu0 0.0
    %2022 = vmatpush1.msra.mxu0 0.0
    %2023 = vmatprep.subr.mxu0 0.0
    %2024 = vmatpush1.msra.mxu0 0.0
    %2025 = vmatprep.subr.mxu0 0.0
    %2026 = vmatpush1.msra.mxu0 0.0
    %2027 = vmatprep.mubr.f32.mxu0 0.0
    %2028 = vmatmul.mubr.f32.gmra.mrb[0].mxu0 %v1961
    %v2029 = vpop.f32.mrb[0].mxu0
    %v2030 = vadd.f32 %v1193, %v2029
    %v2031 = vpop.f32.mrb[0].mxu0
    %2032 = vdwg.mxu0
    %v2034 = vsel %vm83, %v1011, 0
    %2036 = vmatprep.subr.mxu0 0.0
    %2037 = vmatpush1.msra.mxu0 %v1038
    %2038 = vmatprep.subr.mxu0 0.0
    %2039 = vmatpush1.msra.mxu0 %v1039
    %2040 = vmatprep.subr.mxu0 0.0
    %2041 = vmatpush1.msra.mxu0 0.0
    %2042 = vmatprep.subr.mxu0 0.0
    %2043 = vmatpush1.msra.mxu0 0.0
    %2044 = vmatprep.subr.mxu0 0.0
    %2045 = vmatpush1.msra.mxu0 0.0
    %2046 = vmatprep.subr.mxu0 0.0
    %2047 = vmatpush1.msra.mxu0 0.0
    %2048 = vmatprep.subr.mxu0 0.0
    %2049 = vmatpush1.msra.mxu0 0.0
    %2050 = vmatprep.subr.mxu0 0.0
    %2051 = vmatpush1.msra.mxu0 0.0
    %2052 = vmatprep.subr.mxu0 0.0
    %2053 = vmatpush1.msra.mxu0 0.0
    %2054 = vmatprep.subr.mxu0 0.0
    %2055 = vmatpush1.msra.mxu0 0.0
    %2056 = vmatprep.subr.mxu0 0.0
    %2057 = vmatpush1.msra.mxu0 0.0
    %2058 = vmatprep.subr.mxu0 0.0
    %2059 = vmatpush1.msra.mxu0 0.0
    %2060 = vmatprep.subr.mxu0 0.0
    %2061 = vmatpush1.msra.mxu0 0.0
    %2062 = vmatprep.subr.mxu0 0.0
    %2063 = vmatpush1.msra.mxu0 0.0
    %2064 = vmatprep.subr.mxu0 0.0
    %2065 = vmatpush1.msra.mxu0 0.0
    %2066 = vmatprep.subr.mxu0 0.0
    %2067 = vmatpush1.msra.mxu0 0.0
    %2068 = vmatprep.subr.mxu0 0.0
    %2069 = vmatpush1.msra.mxu0 0.0
    %2070 = vmatprep.subr.mxu0 0.0
    %2071 = vmatpush1.msra.mxu0 0.0
    %2072 = vmatprep.subr.mxu0 0.0
    %2073 = vmatpush1.msra.mxu0 0.0
    %2074 = vmatprep.subr.mxu0 0.0
    %2075 = vmatpush1.msra.mxu0 0.0
    %2076 = vmatprep.subr.mxu0 0.0
    %2077 = vmatpush1.msra.mxu0 0.0
    %2078 = vmatprep.subr.mxu0 0.0
    %2079 = vmatpush1.msra.mxu0 0.0
    %2080 = vmatprep.subr.mxu0 0.0
    %2081 = vmatpush1.msra.mxu0 0.0
    %2082 = vmatprep.subr.mxu0 0.0
    %2083 = vmatpush1.msra.mxu0 0.0
    %2084 = vmatprep.subr.mxu0 0.0
    %2085 = vmatpush1.msra.mxu0 0.0
    %2086 = vmatprep.subr.mxu0 0.0
    %2087 = vmatpush1.msra.mxu0 0.0
    %2088 = vmatprep.subr.mxu0 0.0
    %2089 = vmatpush1.msra.mxu0 0.0
    %2090 = vmatprep.subr.mxu0 0.0
    %2091 = vmatpush1.msra.mxu0 0.0
    %2092 = vmatprep.subr.mxu0 0.0
    %2093 = vmatpush1.msra.mxu0 0.0
    %2094 = vmatprep.subr.mxu0 0.0
    %2095 = vmatpush1.msra.mxu0 0.0
    %2096 = vmatprep.subr.mxu0 0.0
    %2097 = vmatpush1.msra.mxu0 0.0
    %2098 = vmatprep.subr.mxu0 0.0
    %2099 = vmatpush1.msra.mxu0 0.0
    %2100 = vmatprep.mubr.f32.mxu0 0.0
    %2101 = vmatmul.mubr.f32.gmra.mrb[0].mxu0 %v2034
    %v2102 = vpop.f32.mrb[0].mxu0
    %v2103 = vadd.f32 %v1197, %v2102
    %v2104 = vpop.f32.mrb[0].mxu0
    %2105 = vdwg.mxu0
    %v2107 = vsel %vm83, %v1012, 0
    %2109 = vmatprep.subr.mxu0 0.0
    %2110 = vmatpush1.msra.mxu0 %v1040
    %2111 = vmatprep.subr.mxu0 0.0
    %2112 = vmatpush1.msra.mxu0 %v1041
    %2113 = vmatprep.subr.mxu0 0.0
    %2114 = vmatpush1.msra.mxu0 0.0
    %2115 = vmatprep.subr.mxu0 0.0
    %2116 = vmatpush1.msra.mxu0 0.0
    %2117 = vmatprep.subr.mxu0 0.0
    %2118 = vmatpush1.msra.mxu0 0.0
    %2119 = vmatprep.subr.mxu0 0.0
    %2120 = vmatpush1.msra.mxu0 0.0
    %2121 = vmatprep.subr.mxu0 0.0
    %2122 = vmatpush1.msra.mxu0 0.0
    %2123 = vmatprep.subr.mxu0 0.0
    %2124 = vmatpush1.msra.mxu0 0.0
    %2125 = vmatprep.subr.mxu0 0.0
    %2126 = vmatpush1.msra.mxu0 0.0
    %2127 = vmatprep.subr.mxu0 0.0
    %2128 = vmatpush1.msra.mxu0 0.0
    %2129 = vmatprep.subr.mxu0 0.0
    %2130 = vmatpush1.msra.mxu0 0.0
    %2131 = vmatprep.subr.mxu0 0.0
    %2132 = vmatpush1.msra.mxu0 0.0
    %2133 = vmatprep.subr.mxu0 0.0
    %2134 = vmatpush1.msra.mxu0 0.0
    %2135 = vmatprep.subr.mxu0 0.0
    %2136 = vmatpush1.msra.mxu0 0.0
    %2137 = vmatprep.subr.mxu0 0.0
    %2138 = vmatpush1.msra.mxu0 0.0
    %2139 = vmatprep.subr.mxu0 0.0
    %2140 = vmatpush1.msra.mxu0 0.0
    %2141 = vmatprep.subr.mxu0 0.0
    %2142 = vmatpush1.msra.mxu0 0.0
    %2143 = vmatprep.subr.mxu0 0.0
    %2144 = vmatpush1.msra.mxu0 0.0
    %2145 = vmatprep.subr.mxu0 0.0
    %2146 = vmatpush1.msra.mxu0 0.0
    %2147 = vmatprep.subr.mxu0 0.0
    %2148 = vmatpush1.msra.mxu0 0.0
    %2149 = vmatprep.subr.mxu0 0.0
    %2150 = vmatpush1.msra.mxu0 0.0
    %2151 = vmatprep.subr.mxu0 0.0
    %2152 = vmatpush1.msra.mxu0 0.0
    %2153 = vmatprep.subr.mxu0 0.0
    %2154 = vmatpush1.msra.mxu0 0.0
    %2155 = vmatprep.subr.mxu0 0.0
    %2156 = vmatpush1.msra.mxu0 0.0
    %2157 = vmatprep.subr.mxu0 0.0
    %2158 = vmatpush1.msra.mxu0 0.0
    %2159 = vmatprep.subr.mxu0 0.0
    %2160 = vmatpush1.msra.mxu0 0.0
    %2161 = vmatprep.subr.mxu0 0.0
    %2162 = vmatpush1.msra.mxu0 0.0
    %2163 = vmatprep.subr.mxu0 0.0
    %2164 = vmatpush1.msra.mxu0 0.0
    %2165 = vmatprep.subr.mxu0 0.0
    %2166 = vmatpush1.msra.mxu0 0.0
    %2167 = vmatprep.subr.mxu0 0.0
    %2168 = vmatpush1.msra.mxu0 0.0
    %2169 = vmatprep.subr.mxu0 0.0
    %2170 = vmatpush1.msra.mxu0 0.0
    %2171 = vmatprep.subr.mxu0 0.0
    %2172 = vmatpush1.msra.mxu0 0.0
    %2173 = vmatprep.mubr.f32.mxu0 0.0
    %2174 = vmatmul.mubr.f32.gmra.mrb[0].mxu0 %v2107
    %v2175 = vpop.f32.mrb[0].mxu0
    %v2176 = vadd.f32 %v1201, %v2175
    %v2177 = vpop.f32.mrb[0].mxu0
    %2178 = vdwg.mxu0
    %v2180 = vsel %vm83, %v1013, 0
    %2182 = vmatprep.subr.mxu0 0.0
    %2183 = vmatpush1.msra.mxu0 %v1042
    %2184 = vmatprep.subr.mxu0 0.0
    %2185 = vmatpush1.msra.mxu0 %v1043
    %2186 = vmatprep.subr.mxu0 0.0
    %2187 = vmatpush1.msra.mxu0 0.0
    %2188 = vmatprep.subr.mxu0 0.0
    %2189 = vmatpush1.msra.mxu0 0.0
    %2190 = vmatprep.subr.mxu0 0.0
    %2191 = vmatpush1.msra.mxu0 0.0
    %2192 = vmatprep.subr.mxu0 0.0
    %2193 = vmatpush1.msra.mxu0 0.0
    %2194 = vmatprep.subr.mxu0 0.0
    %2195 = vmatpush1.msra.mxu0 0.0
    %2196 = vmatprep.subr.mxu0 0.0
    %2197 = vmatpush1.msra.mxu0 0.0
    %2198 = vmatprep.subr.mxu0 0.0
    %2199 = vmatpush1.msra.mxu0 0.0
    %2200 = vmatprep.subr.mxu0 0.0
    %2201 = vmatpush1.msra.mxu0 0.0
    %2202 = vmatprep.subr.mxu0 0.0
    %2203 = vmatpush1.msra.mxu0 0.0
    %2204 = vmatprep.subr.mxu0 0.0
    %2205 = vmatpush1.msra.mxu0 0.0
    %2206 = vmatprep.subr.mxu0 0.0
    %2207 = vmatpush1.msra.mxu0 0.0
    %2208 = vmatprep.subr.mxu0 0.0
    %2209 = vmatpush1.msra.mxu0 0.0
    %2210 = vmatprep.subr.mxu0 0.0
    %2211 = vmatpush1.msra.mxu0 0.0
    %2212 = vmatprep.subr.mxu0 0.0
    %2213 = vmatpush1.msra.mxu0 0.0
    %2214 = vmatprep.subr.mxu0 0.0
    %2215 = vmatpush1.msra.mxu0 0.0
    %2216 = vmatprep.subr.mxu0 0.0
    %2217 = vmatpush1.msra.mxu0 0.0
    %2218 = vmatprep.subr.mxu0 0.0
    %2219 = vmatpush1.msra.mxu0 0.0
    %2220 = vmatprep.subr.mxu0 0.0
    %2221 = vmatpush1.msra.mxu0 0.0
    %2222 = vmatprep.subr.mxu0 0.0
    %2223 = vmatpush1.msra.mxu0 0.0
    %2224 = vmatprep.subr.mxu0 0.0
    %2225 = vmatpush1.msra.mxu0 0.0
    %2226 = vmatprep.subr.mxu0 0.0
    %2227 = vmatpush1.msra.mxu0 0.0
    %2228 = vmatprep.subr.mxu0 0.0
    %2229 = vmatpush1.msra.mxu0 0.0
    %2230 = vmatprep.subr.mxu0 0.0
    %2231 = vmatpush1.msra.mxu0 0.0
    %2232 = vmatprep.subr.mxu0 0.0
    %2233 = vmatpush1.msra.mxu0 0.0
    %2234 = vmatprep.subr.mxu0 0.0
    %2235 = vmatpush1.msra.mxu0 0.0
    %2236 = vmatprep.subr.mxu0 0.0
    %2237 = vmatpush1.msra.mxu0 0.0
    %2238 = vmatprep.subr.mxu0 0.0
    %2239 = vmatpush1.msra.mxu0 0.0
    %2240 = vmatprep.subr.mxu0 0.0
    %2241 = vmatpush1.msra.mxu0 0.0
    %2242 = vmatprep.subr.mxu0 0.0
    %2243 = vmatpush1.msra.mxu0 0.0
    %2244 = vmatprep.subr.mxu0 0.0
    %2245 = vmatpush1.msra.mxu0 0.0
    %2246 = vmatprep.mubr.f32.mxu0 0.0
    %2247 = vmatmul.mubr.f32.gmra.mrb[0].mxu0 %v2180
    %v2248 = vpop.f32.mrb[0].mxu0
    %v2249 = vadd.f32 %v1205, %v2248
    %v2250 = vpop.f32.mrb[0].mxu0
    %2251 = vdwg.mxu0
    %v2253 = vsel %vm83, %v1014, 0
    %2255 = vmatprep.subr.mxu0 0.0
    %2256 = vmatpush1.msra.mxu0 %v1044
    %2257 = vmatprep.subr.mxu0 0.0
    %2258 = vmatpush1.msra.mxu0 %v1045
    %2259 = vmatprep.subr.mxu0 0.0
    %2260 = vmatpush1.msra.mxu0 0.0
    %2261 = vmatprep.subr.mxu0 0.0
    %2262 = vmatpush1.msra.mxu0 0.0
    %2263 = vmatprep.subr.mxu0 0.0
    %2264 = vmatpush1.msra.mxu0 0.0
    %2265 = vmatprep.subr.mxu0 0.0
    %2266 = vmatpush1.msra.mxu0 0.0
    %2267 = vmatprep.subr.mxu0 0.0
    %2268 = vmatpush1.msra.mxu0 0.0
    %2269 = vmatprep.subr.mxu0 0.0
    %2270 = vmatpush1.msra.mxu0 0.0
    %2271 = vmatprep.subr.mxu0 0.0
    %2272 = vmatpush1.msra.mxu0 0.0
    %2273 = vmatprep.subr.mxu0 0.0
    %2274 = vmatpush1.msra.mxu0 0.0
    %2275 = vmatprep.subr.mxu0 0.0
    %2276 = vmatpush1.msra.mxu0 0.0
    %2277 = vmatprep.subr.mxu0 0.0
    %2278 = vmatpush1.msra.mxu0 0.0
    %2279 = vmatprep.subr.mxu0 0.0
    %2280 = vmatpush1.msra.mxu0 0.0
    %2281 = vmatprep.subr.mxu0 0.0
    %2282 = vmatpush1.msra.mxu0 0.0
    %2283 = vmatprep.subr.mxu0 0.0
    %2284 = vmatpush1.msra.mxu0 0.0
    %2285 = vmatprep.subr.mxu0 0.0
    %2286 = vmatpush1.msra.mxu0 0.0
    %2287 = vmatprep.subr.mxu0 0.0
    %2288 = vmatpush1.msra.mxu0 0.0
    %2289 = vmatprep.subr.mxu0 0.0
    %2290 = vmatpush1.msra.mxu0 0.0
    %2291 = vmatprep.subr.mxu0 0.0
    %2292 = vmatpush1.msra.mxu0 0.0
    %2293 = vmatprep.subr.mxu0 0.0
    %2294 = vmatpush1.msra.mxu0 0.0
    %2295 = vmatprep.subr.mxu0 0.0
    %2296 = vmatpush1.msra.mxu0 0.0
    %2297 = vmatprep.subr.mxu0 0.0
    %2298 = vmatpush1.msra.mxu0 0.0
    %2299 = vmatprep.subr.mxu0 0.0
    %2300 = vmatpush1.msra.mxu0 0.0
    %2301 = vmatprep.subr.mxu0 0.0
    %2302 = vmatpush1.msra.mxu0 0.0
    %2303 = vmatprep.subr.mxu0 0.0
    %2304 = vmatpush1.msra.mxu0 0.0
    %2305 = vmatprep.subr.mxu0 0.0
    %2306 = vmatpush1.msra.mxu0 0.0
    %2307 = vmatprep.subr.mxu0 0.0
    %2308 = vmatpush1.msra.mxu0 0.0
    %2309 = vmatprep.subr.mxu0 0.0
    %2310 = vmatpush1.msra.mxu0 0.0
    %2311 = vmatprep.subr.mxu0 0.0
    %2312 = vmatpush1.msra.mxu0 0.0
    %2313 = vmatprep.subr.mxu0 0.0
    %2314 = vmatpush1.msra.mxu0 0.0
    %2315 = vmatprep.subr.mxu0 0.0
    %2316 = vmatpush1.msra.mxu0 0.0
    %2317 = vmatprep.subr.mxu0 0.0
    %2318 = vmatpush1.msra.mxu0 0.0
    %2319 = vmatprep.mubr.f32.mxu0 0.0
    %2320 = vmatmul.mubr.f32.gmra.mrb[0].mxu0 %v2253
    %v2321 = vpop.f32.mrb[0].mxu0
    %v2322 = vadd.f32 %v1209, %v2321
    %v2323 = vpop.f32.mrb[0].mxu0
    %2324 = vdwg.mxu0
    %v2326 = vsel %vm83, %v1015, 0
    %2328 = vmatprep.subr.mxu0 0.0
    %2329 = vmatpush1.msra.mxu0 %v1046
    %2330 = vmatprep.subr.mxu0 0.0
    %2331 = vmatpush1.msra.mxu0 %v1047
    %2332 = vmatprep.subr.mxu0 0.0
    %2333 = vmatpush1.msra.mxu0 0.0
    %2334 = vmatprep.subr.mxu0 0.0
    %2335 = vmatpush1.msra.mxu0 0.0
    %2336 = vmatprep.subr.mxu0 0.0
    %2337 = vmatpush1.msra.mxu0 0.0
    %2338 = vmatprep.subr.mxu0 0.0
    %2339 = vmatpush1.msra.mxu0 0.0
    %2340 = vmatprep.subr.mxu0 0.0
    %2341 = vmatpush1.msra.mxu0 0.0
    %2342 = vmatprep.subr.mxu0 0.0
    %2343 = vmatpush1.msra.mxu0 0.0
    %2344 = vmatprep.subr.mxu0 0.0
    %2345 = vmatpush1.msra.mxu0 0.0
    %2346 = vmatprep.subr.mxu0 0.0
    %2347 = vmatpush1.msra.mxu0 0.0
    %2348 = vmatprep.subr.mxu0 0.0
    %2349 = vmatpush1.msra.mxu0 0.0
    %2350 = vmatprep.subr.mxu0 0.0
    %2351 = vmatpush1.msra.mxu0 0.0
    %2352 = vmatprep.subr.mxu0 0.0
    %2353 = vmatpush1.msra.mxu0 0.0
    %2354 = vmatprep.subr.mxu0 0.0
    %2355 = vmatpush1.msra.mxu0 0.0
    %2356 = vmatprep.subr.mxu0 0.0
    %2357 = vmatpush1.msra.mxu0 0.0
    %2358 = vmatprep.subr.mxu0 0.0
    %2359 = vmatpush1.msra.mxu0 0.0
    %2360 = vmatprep.subr.mxu0 0.0
    %2361 = vmatpush1.msra.mxu0 0.0
    %2362 = vmatprep.subr.mxu0 0.0
    %2363 = vmatpush1.msra.mxu0 0.0
    %2364 = vmatprep.subr.mxu0 0.0
    %2365 = vmatpush1.msra.mxu0 0.0
    %2366 = vmatprep.subr.mxu0 0.0
    %2367 = vmatpush1.msra.mxu0 0.0
    %2368 = vmatprep.subr.mxu0 0.0
    %2369 = vmatpush1.msra.mxu0 0.0
    %2370 = vmatprep.subr.mxu0 0.0
    %2371 = vmatpush1.msra.mxu0 0.0
    %2372 = vmatprep.subr.mxu0 0.0
    %2373 = vmatpush1.msra.mxu0 0.0
    %2374 = vmatprep.subr.mxu0 0.0
    %2375 = vmatpush1.msra.mxu0 0.0
    %2376 = vmatprep.subr.mxu0 0.0
    %2377 = vmatpush1.msra.mxu0 0.0
    %2378 = vmatprep.subr.mxu0 0.0
    %2379 = vmatpush1.msra.mxu0 0.0
    %2380 = vmatprep.subr.mxu0 0.0
    %2381 = vmatpush1.msra.mxu0 0.0
    %2382 = vmatprep.subr.mxu0 0.0
    %2383 = vmatpush1.msra.mxu0 0.0
    %2384 = vmatprep.subr.mxu0 0.0
    %2385 = vmatpush1.msra.mxu0 0.0
    %2386 = vmatprep.subr.mxu0 0.0
    %2387 = vmatpush1.msra.mxu0 0.0
    %2388 = vmatprep.subr.mxu0 0.0
    %2389 = vmatpush1.msra.mxu0 0.0
    %2390 = vmatprep.subr.mxu0 0.0
    %2391 = vmatpush1.msra.mxu0 0.0
    %2392 = vmatprep.mubr.f32.mxu0 0.0
    %2393 = vmatmul.mubr.f32.gmra.mrb[0].mxu0 %v2326
    %v2394 = vpop.f32.mrb[0].mxu0
    %v2395 = vadd.f32 %v1213, %v2394
    %v2396 = vpop.f32.mrb[0].mxu0
    %2397 = vdwg.mxu0
    %v2398 = vcombine.low %v1300, %v1446
    %v2400 = vunpack.c.l.s4 1983009808
    %v2401 = vunpack.c.0.s8 %v2400
    %v2402 = vlaneseq
    %v2403 = vshrl.u32 %v2402, 7
    %v2404 = vsub.s32 %v2401, %v2403
    %v2405 = vrot.slane %v2398, %v2404
    %v2406 = vcombine.low %v1373, %v1519
    %v2408 = vunpack.c.l.s4 1983009808
    %v2409 = vunpack.c.0.s8 %v2408
    %v2410 = vlaneseq
    %v2411 = vshrl.u32 %v2410, 7
    %v2412 = vsub.s32 %v2409, %v2411
    %v2413 = vrot.slane %v2406, %v2412
    %v2414 = vcombine.low %v1592, %v1738
    %v2416 = vunpack.c.l.s4 1983009808
    %v2417 = vunpack.c.0.s8 %v2416
    %v2418 = vlaneseq
    %v2419 = vshrl.u32 %v2418, 7
    %v2420 = vsub.s32 %v2417, %v2419
    %v2421 = vrot.slane %v2414, %v2420
    %v2422 = vcombine.low %v1665, %v1811
    %v2424 = vunpack.c.l.s4 1983009808
    %v2425 = vunpack.c.0.s8 %v2424
    %v2426 = vlaneseq
    %v2427 = vshrl.u32 %v2426, 7
    %v2428 = vsub.s32 %v2425, %v2427
    %v2429 = vrot.slane %v2422, %v2428
    %v2430 = vcombine.low %v2405, %v2413
    %v2432 = vunpack.c.l.s4 1934713408
    %v2433 = vunpack.c.0.s8 %v2432
    %v2434 = vlaneseq
    %v2435 = vshrl.u32 %v2434, 7
    %v2436 = vsub.s32 %v2433, %v2435
    %v2437 = vrot.slane %v2430, %v2436
    %v2438 = vcombine.low %v2421, %v2429
    %v2440 = vunpack.c.l.s4 1934713408
    %v2441 = vunpack.c.0.s8 %v2440
    %v2442 = vlaneseq
    %v2443 = vshrl.u32 %v2442, 7
    %v2444 = vsub.s32 %v2441, %v2443
    %v2445 = vrot.slane %v2438, %v2444
    %v2446 = vcombine.low %v2437, %v2445
    %v2447 = vcombine.high %v2437, %v2445
    %v2448 = vcombine.low %v1884, %v2030
    %v2450 = vunpack.c.l.s4 1983009808
    %v2451 = vunpack.c.0.s8 %v2450
    %v2452 = vlaneseq
    %v2453 = vshrl.u32 %v2452, 7
    %v2454 = vsub.s32 %v2451, %v2453
    %v2455 = vrot.slane %v2448, %v2454
    %v2456 = vcombine.low %v1957, %v2103
    %v2458 = vunpack.c.l.s4 1983009808
    %v2459 = vunpack.c.0.s8 %v2458
    %v2460 = vlaneseq
    %v2461 = vshrl.u32 %v2460, 7
    %v2462 = vsub.s32 %v2459, %v2461
    %v2463 = vrot.slane %v2456, %v2462
    %v2464 = vcombine.low %v2176, %v2322
    %v2466 = vunpack.c.l.s4 1983009808
    %v2467 = vunpack.c.0.s8 %v2466
    %v2468 = vlaneseq
    %v2469 = vshrl.u32 %v2468, 7
    %v2470 = vsub.s32 %v2467, %v2469
    %v2471 = vrot.slane %v2464, %v2470
    %v2472 = vcombine.low %v2249, %v2395
    %v2474 = vunpack.c.l.s4 1983009808
    %v2475 = vunpack.c.0.s8 %v2474
    %v2476 = vlaneseq
    %v2477 = vshrl.u32 %v2476, 7
    %v2478 = vsub.s32 %v2475, %v2477
    %v2479 = vrot.slane %v2472, %v2478
    %v2480 = vcombine.low %v2455, %v2463
    %v2482 = vunpack.c.l.s4 1934713408
    %v2483 = vunpack.c.0.s8 %v2482
    %v2484 = vlaneseq
    %v2485 = vshrl.u32 %v2484, 7
    %v2486 = vsub.s32 %v2483, %v2485
    %v2487 = vrot.slane %v2480, %v2486
    %v2488 = vcombine.low %v2471, %v2479
    %v2490 = vunpack.c.l.s4 1934713408
    %v2491 = vunpack.c.0.s8 %v2490
    %v2492 = vlaneseq
    %v2493 = vshrl.u32 %v2492, 7
    %v2494 = vsub.s32 %v2491, %v2493
    %v2495 = vrot.slane %v2488, %v2494
    %v2496 = vcombine.low %v2487, %v2495
    %v2497 = vcombine.high %v2487, %v2495
    %2500 = vrot.lane.b32.xlu0 %v2447, 8
    %v2501 = vpop.permute.xlu0 %2500
    %2502 = vrot.lane.b32.xlu0 %v2497, 8
    %v2503 = vpop.permute.xlu0 %2502
    %v2506 = vsel %vm982, %v2446, %v2501
    %v2507 = vsel %vm982, %v2496, %v2503
    %2508 = vst.msk [vmem:[#allocation10] sm:$0xff] %vm83, %v2506
    %2509 = vst.msk [vmem:[#allocation10 + $0x8] sm:$0xff] %vm83, %v2507
    // Predicated region
    $region34: #{tpu_custom_call.1} parent=1 // pred_check
      _
    $region35: #{tpu_custom_call.1} parent=1 // pred_check_branch
      %2511 = sbr.rel (0) target = $region37
    $region36: #{tpu_custom_call.1} parent=1 // pred_region
      %s2513 = ssub.s32 256, 256
      %2514 = vsyncadd [#allocation4], %s2513
      %s2515 = sshll.u32 [#allocation10], 4
      %s2516 = int_to_ptr.vmem [resolvable:$true] %s2515
      %2521 = dma.vmem_to_hbm [thread:$0]  %s2516, 256, %s4, [#allocation4], 128, 128, 8
    $region37: #{tpu_custom_call.1} parent=1 // pred_fallthru
      _
    // Predicated region
    $region38: #{tpu_custom_call.1} parent=1 // pred_check
      _
    $region39: #{tpu_custom_call.1} parent=1 // pred_check_branch
      %2523 = sbr.rel (0) target = $region41
    $region40: #{tpu_custom_call.1} parent=1 // pred_region
      %2524 = dma.done [#allocation4], 256
    $region41: #{tpu_custom_call.1} parent=1 // pred_fallthru
      _
    %2525 = vsyncpa [#allocation3], 1
    %2526 = vsyncpa [#allocation6], 1
    %2527 = vsyncpa [#allocation9], 1
    %2528 = vsyncpa [#allocation4], 1

// kernel: tpu_custom_call.1
$region0: #{tpu_custom_call.1}
  #allocation0 [shape = 'u32[]', space=smem, size = 0x4, offset = 0x4, fixed_abs, tag = 'smem constant byte address 0x4 - core index']
  #allocation1 [shape = 'u32[144,128]{1,0:T(1,128)}', space=vmem, size = 0x12000, scoped, tag = 'internal scratch']
  %s0 = inlined_call_operand.hbm [shape: f32[64,16], index: 0, kind: input, shape index: {}]
  %s1 = inlined_call_operand.hbm [shape: f32[16,8], index: 1, kind: input, shape index: {}]
  %s2 = inlined_call_operand.hbm [shape: f32[16,16,8], index: 2, kind: input, shape index: {}]
  %s3 = inlined_call_operand.hbm [shape: f32[16,8], index: 3, kind: input, shape index: {}]
  %s4 = inlined_call_operand.hbm [shape: f32[16,16], index: 4, kind: output, shape index: {}]
  %s5 = sld [smem:[#allocation0]]
  $region42: #{tpu_custom_call.1} parent=0
    _
  %s7 = ssub.s32 1, %s5
  %s8 = scalar_select 0, %s7, %s5
  $region1: #{tpu_custom_call.1} parent=0
    #allocation2 [shape = 'u8[32768]{0}', space=vmem, size = 0x8000, scoped, tag = 'input window, operand 0, single buffered']
    #allocation3 [shape = 's32[1]{0}', space=sflag, size = 0x4, scoped, tag = 'scoped memory for tpu_custom_call.1']
    #allocation4 [shape = 's32[1]{0}', space=sflag, size = 0x4, scoped, tag = 'scoped memory for tpu_custom_call.1']
    #allocation5 [shape = 'u8[8192]{0}', space=vmem, size = 0x2000, scoped, tag = 'input window, operand 1, single buffered']
    #allocation6 [shape = 's32[1]{0}', space=sflag, size = 0x4, scoped, tag = 'scoped memory for tpu_custom_call.1']
    #allocation7 [shape = 'u8[131072]{0}', space=vmem, size = 0x20000, scoped, tag = 'input window, operand 2, single buffered']
    #allocation8 [shape = 'u8[8192]{0}', space=vmem, size = 0x2000, scoped, tag = 'input window, operand 3, single buffered']
    #allocation9 [shape = 's32[1]{0}', space=sflag, size = 0x4, scoped, tag = 'scoped memory for tpu_custom_call.1']
    #allocation10 [shape = 'u8[8192]{0}', space=vmem, size = 0x2000, scoped, tag = 'output window, operand 0, single buffered']
    %9 = vsyncpa [#allocation3], 0
    %10 = vsyncpa [#allocation6], 0
    %11 = vsyncpa [#allocation9], 0
    %12 = vsyncpa [#allocation4], 0
    // Predicated region
    $region2: #{tpu_custom_call.1} parent=1 // pred_check
      _
    $region3: #{tpu_custom_call.1} parent=1 // pred_check_branch
      %14 = sbr.rel (0) target = $region5
    $region4: #{tpu_custom_call.1} parent=1 // pred_region
      %s16 = ssub.s32 1024, 1024
      %17 = vsyncadd [#allocation3], %s16
      %s18 = sshll.u32 [#allocation2], 4
      %s19 = int_to_ptr.vmem [resolvable:$true] %s18
      %24 = dma.hbm_to_vmem [thread:$0]  %s0, 1024, %s19, [#allocation3], 128, 128, 8
    $region5: #{tpu_custom_call.1} parent=1 // pred_fallthru
      _
    // Predicated region
    $region6: #{tpu_custom_call.1} parent=1 // pred_check
      _
    $region7: #{tpu_custom_call.1} parent=1 // pred_check_branch
      %26 = sbr.rel (0) target = $region9
    $region8: #{tpu_custom_call.1} parent=1 // pred_region
      %s28 = ssub.s32 256, 256
      %29 = vsyncadd [#allocation6], %s28
      %s30 = sshll.u32 [#allocation5], 4
      %s31 = int_to_ptr.vmem [resolvable:$true] %s30
      %36 = dma.hbm_to_vmem [thread:$0]  %s1, 256, %s31, [#allocation6], 128, 128, 8
    $region9: #{tpu_custom_call.1} parent=1 // pred_fallthru
      _
    // Predicated region
    $region10: #{tpu_custom_call.1} parent=1 // pred_check
      _
    $region11: #{tpu_custom_call.1} parent=1 // pred_check_branch
      %38 = sbr.rel (0) target = $region13
    $region12: #{tpu_custom_call.1} parent=1 // pred_region
      %s40 = ssub.s32 4096, 4096
      %41 = vsyncadd [#allocation6], %s40
      %s42 = sshll.u32 [#allocation7], 4
      %s43 = int_to_ptr.vmem [resolvable:$true] %s42
      %48 = dma.hbm_to_vmem [thread:$0]  %s2, 4096, %s43, [#allocation6], 128, 128, 8
    $region13: #{tpu_custom_call.1} parent=1 // pred_fallthru
      _
    // Predicated region
    $region14: #{tpu_custom_call.1} parent=1 // pred_check
      _
    $region15: #{tpu_custom_call.1} parent=1 // pred_check_branch
      %50 = sbr.rel (0) target = $region17
    $region16: #{tpu_custom_call.1} parent=1 // pred_region
      %s52 = ssub.s32 256, 256
      %53 = vsyncadd [#allocation9], %s52
      %s54 = sshll.u32 [#allocation8], 4
      %s55 = int_to_ptr.vmem [resolvable:$true] %s54
      %60 = dma.hbm_to_vmem [thread:$0]  %s3, 256, %s55, [#allocation9], 128, 128, 8
    $region17: #{tpu_custom_call.1} parent=1 // pred_fallthru
      _
    // Predicated region
    $region18: #{tpu_custom_call.1} parent=1 // pred_check
      _
    $region19: #{tpu_custom_call.1} parent=1 // pred_check_branch
      %62 = sbr.rel (0) target = $region21
    $region20: #{tpu_custom_call.1} parent=1 // pred_region
      %63 = dma.done [#allocation3], 1024
    $region21: #{tpu_custom_call.1} parent=1 // pred_fallthru
      _
    // Predicated region
    $region22: #{tpu_custom_call.1} parent=1 // pred_check
      _
    $region23: #{tpu_custom_call.1} parent=1 // pred_check_branch
      %65 = sbr.rel (0) target = $region25
    $region24: #{tpu_custom_call.1} parent=1 // pred_region
      %66 = dma.done [#allocation6], 256
    $region25: #{tpu_custom_call.1} parent=1 // pred_fallthru
      _
    // Predicated region
    $region26: #{tpu_custom_call.1} parent=1 // pred_check
      _
    $region27: #{tpu_custom_call.1} parent=1 // pred_check_branch
      %68 = sbr.rel (0) target = $region29
    $region28: #{tpu_custom_call.1} parent=1 // pred_region
      %69 = dma.done [#allocation6], 4096
    $region29: #{tpu_custom_call.1} parent=1 // pred_fallthru
      _
    // Predicated region
    $region30: #{tpu_custom_call.1} parent=1 // pred_check
      _
    $region31: #{tpu_custom_call.1} parent=1 // pred_check_branch
      %71 = sbr.rel (0) target = $region33
    $region32: #{tpu_custom_call.1} parent=1 // pred_region
      %72 = dma.done [#allocation9], 256
    $region33: #{tpu_custom_call.1} parent=1 // pred_fallthru
      _
    %v73 = vld [vmem:[#allocation5] sm:$0xff]
    %v74 = vld [vmem:[#allocation5 + $0x8] sm:$0xff]
    %v75 = vld [vmem:[#allocation2] sm:$0xff]
    %v76 = vld [vmem:[#allocation2 + $0x8] sm:$0xff]
    %v77 = vld [vmem:[#allocation2 + $0x10] sm:$0xff]
    %v78 = vld [vmem:[#allocation2 + $0x18] sm:$0xff]
    %v79 = vld [vmem:[#allocation2 + $0x20] sm:$0xff]
    %v80 = vld [vmem:[#allocation2 + $0x28] sm:$0xff]
    %v81 = vld [vmem:[#allocation2 + $0x30] sm:$0xff]
    %v82 = vld [vmem:[#allocation2 + $0x38] sm:$0xff]
    %vm83 = vcmask 130048
    %v85 = vsel %vm83, %v75, 0
    %v88 = vsel %vm83, %v76, 0
    %v91 = vsel %vm83, %v77, 0
    %v94 = vsel %vm83, %v78, 0
    %v97 = vsel %vm83, %v79, 0
    %v100 = vsel %vm83, %v80, 0
    %v103 = vsel %vm83, %v81, 0
    %v106 = vsel %vm83, %v82, 0
    %108 = vmatprep.subr.mxu0 0.0
    %109 = vmatpush1.msra.mxu0 %v73
    %110 = vmatprep.subr.mxu0 0.0
    %111 = vmatpush1.msra.mxu0 %v74
    %112 = vmatprep.subr.mxu0 0.0
    %113 = vmatpush1.msra.mxu0 0.0
    %114 = vmatprep.subr.mxu0 0.0
    %115 = vmatpush1.msra.mxu0 0.0
    %116 = vmatprep.subr.mxu0 0.0
    %117 = vmatpush1.msra.mxu0 0.0
    %118 = vmatprep.subr.mxu0 0.0
    %119 = vmatpush1.msra.mxu0 0.0
    %120 = vmatprep.subr.mxu0 0.0
    %121 = vmatpush1.msra.mxu0 0.0
    %122 = vmatprep.subr.mxu0 0.0
    %123 = vmatpush1.msra.mxu0 0.0
    %124 = vmatprep.subr.mxu0 0.0
    %125 = vmatpush1.msra.mxu0 0.0
    %126 = vmatprep.subr.mxu0 0.0
    %127 = vmatpush1.msra.mxu0 0.0
    %128 = vmatprep.subr.mxu0 0.0
    %129 = vmatpush1.msra.mxu0 0.0
    %130 = vmatprep.subr.mxu0 0.0
    %131 = vmatpush1.msra.mxu0 0.0
    %132 = vmatprep.subr.mxu0 0.0
    %133 = vmatpush1.msra.mxu0 0.0
    %134 = vmatprep.subr.mxu0 0.0
    %135 = vmatpush1.msra.mxu0 0.0
    %136 = vmatprep.subr.mxu0 0.0
    %137 = vmatpush1.msra.mxu0 0.0
    %138 = vmatprep.subr.mxu0 0.0
    %139 = vmatpush1.msra.mxu0 0.0
    %140 = vmatprep.subr.mxu0 0.0
    %141 = vmatpush1.msra.mxu0 0.0
    %142 = vmatprep.subr.mxu0 0.0
    %143 = vmatpush1.msra.mxu0 0.0
    %144 = vmatprep.subr.mxu0 0.0
    %145 = vmatpush1.msra.mxu0 0.0
    %146 = vmatprep.subr.mxu0 0.0
    %147 = vmatpush1.msra.mxu0 0.0
    %148 = vmatprep.subr.mxu0 0.0
    %149 = vmatpush1.msra.mxu0 0.0
    %150 = vmatprep.subr.mxu0 0.0
    %151 = vmatpush1.msra.mxu0 0.0
    %152 = vmatprep.subr.mxu0 0.0
    %153 = vmatpush1.msra.mxu0 0.0
    %154 = vmatprep.subr.mxu0 0.0
    %155 = vmatpush1.msra.mxu0 0.0
    %156 = vmatprep.subr.mxu0 0.0
    %157 = vmatpush1.msra.mxu0 0.0
    %158 = vmatprep.subr.mxu0 0.0
    %159 = vmatpush1.msra.mxu0 0.0
    %160 = vmatprep.subr.mxu0 0.0
    %161 = vmatpush1.msra.mxu0 0.0
    %162 = vmatprep.subr.mxu0 0.0
    %163 = vmatpush1.msra.mxu0 0.0
    %164 = vmatprep.subr.mxu0 0.0
    %165 = vmatpush1.msra.mxu0 0.0
    %166 = vmatprep.subr.mxu0 0.0
    %167 = vmatpush1.msra.mxu0 0.0
    %168 = vmatprep.subr.mxu0 0.0
    %169 = vmatpush1.msra.mxu0 0.0
    %170 = vmatprep.subr.mxu0 0.0
    %171 = vmatpush1.msra.mxu0 0.0
    %172 = vmatprep.mubr.f32.mxu0 0.0
    %173 = vmatmul.mubr.f32.gmra.mrb[0].mxu0 %v85
    %v174 = vpop.f32.mrb[0].mxu0
    %v175 = vadd.f32 0.0, %v174
    %v176 = vpop.f32.mrb[0].mxu0
    %177 = vmatprep.mubr.f32.mxu0 0.0
    %178 = vmatmul.mubr.f32.gmra.mrb[0].mxu0 %v88
    %v179 = vpop.f32.mrb[0].mxu0
    %v180 = vadd.f32 0.0, %v179
    %v181 = vpop.f32.mrb[0].mxu0
    %182 = vmatprep.mubr.f32.mxu0 0.0
    %183 = vmatmul.mubr.f32.gmra.mrb[0].mxu0 %v91
    %v184 = vpop.f32.mrb[0].mxu0
    %v185 = vadd.f32 0.0, %v184
    %v186 = vpop.f32.mrb[0].mxu0
    %187 = vmatprep.mubr.f32.mxu0 0.0
    %188 = vmatmul.mubr.f32.gmra.mrb[0].mxu0 %v94
    %v189 = vpop.f32.mrb[0].mxu0
    %v190 = vadd.f32 0.0, %v189
    %v191 = vpop.f32.mrb[0].mxu0
    %192 = vmatprep.mubr.f32.mxu0 0.0
    %193 = vmatmul.mubr.f32.gmra.mrb[0].mxu0 %v97
    %v194 = vpop.f32.mrb[0].mxu0
    %v195 = vadd.f32 0.0, %v194
    %v196 = vpop.f32.mrb[0].mxu0
    %197 = vmatprep.mubr.f32.mxu0 0.0
    %198 = vmatmul.mubr.f32.gmra.mrb[0].mxu0 %v100
    %v199 = vpop.f32.mrb[0].mxu0
    %v200 = vadd.f32 0.0, %v199
    %v201 = vpop.f32.mrb[0].mxu0
    %202 = vmatprep.mubr.f32.mxu0 0.0
    %203 = vmatmul.mubr.f32.gmra.mrb[0].mxu0 %v103
    %v204 = vpop.f32.mrb[0].mxu0
    %v205 = vadd.f32 0.0, %v204
    %v206 = vpop.f32.mrb[0].mxu0
    %207 = vmatprep.mubr.f32.mxu0 0.0
    %208 = vmatmul.mubr.f32.gmra.mrb[0].mxu0 %v106
    %v209 = vpop.f32.mrb[0].mxu0
    %v210 = vadd.f32 0.0, %v209
    %v211 = vpop.f32.mrb[0].mxu0
    %212 = vdwg.mxu0
    %215 = vrot.lane.b32.xlu0 %v175, 124
    %v216 = vpop.permute.xlu0 %215
    %217 = vrot.lane.b32.xlu0 %v180, 124
    %v218 = vpop.permute.xlu0 %217
    %v221 = vcombine.high %v175, 0.0
    %v223 = vunpack.c.l.s4 1983009808
    %v224 = vunpack.c.0.s8 %v223
    %v225 = vlaneseq
    %v226 = vshrl.u32 %v225, 7
    %v227 = vsub.s32 %v224, %v226
    %v228 = vrot.slane %v175, %v227
    %v230 = vunpack.c.l.s4 1983009808
    %v231 = vunpack.c.0.s8 %v230
    %v232 = vlaneseq
    %v233 = vshrl.u32 %v232, 7
    %v234 = vsub.s32 %v231, %v233
    %v235 = vrot.slane %v221, %v234
    %v236 = vcombine.high %v216, 0.0
    %v238 = vunpack.c.l.s4 1983009808
    %v239 = vunpack.c.0.s8 %v238
    %v240 = vlaneseq
    %v241 = vshrl.u32 %v240, 7
    %v242 = vsub.s32 %v239, %v241
    %v243 = vrot.slane %v216, %v242
    %v245 = vunpack.c.l.s4 1983009808
    %v246 = vunpack.c.0.s8 %v245
    %v247 = vlaneseq
    %v248 = vshrl.u32 %v247, 7
    %v249 = vsub.s32 %v246, %v248
    %v250 = vrot.slane %v236, %v249
    %v251 = vcombine.low %v228, %v243
    %v252 = vcombine.high %v228, %v243
    %v254 = vunpack.c.l.s4 1934713408
    %v255 = vunpack.c.0.s8 %v254
    %v256 = vlaneseq
    %v257 = vshrl.u32 %v256, 7
    %v258 = vsub.s32 %v255, %v257
    %v259 = vrot.slane %v251, %v258
    %v261 = vunpack.c.l.s4 1934713408
    %v262 = vunpack.c.0.s8 %v261
    %v263 = vlaneseq
    %v264 = vshrl.u32 %v263, 7
    %v265 = vsub.s32 %v262, %v264
    %v266 = vrot.slane %v252, %v265
    %v267 = vcombine.low %v235, %v250
    %v268 = vcombine.high %v235, %v250
    %v270 = vunpack.c.l.s4 1934713408
    %v271 = vunpack.c.0.s8 %v270
    %v272 = vlaneseq
    %v273 = vshrl.u32 %v272, 7
    %v274 = vsub.s32 %v271, %v273
    %v275 = vrot.slane %v267, %v274
    %v277 = vunpack.c.l.s4 1934713408
    %v278 = vunpack.c.0.s8 %v277
    %v279 = vlaneseq
    %v280 = vshrl.u32 %v279, 7
    %v281 = vsub.s32 %v278, %v280
    %v282 = vrot.slane %v268, %v281
    %v283 = vcombine.high %v259, 0.0
    %v284 = vcombine.high %v266, 0.0
    %v285 = vcombine.high %v275, 0.0
    %v286 = vcombine.high %v282, 0.0
    %v287 = vcombine.high %v180, 0.0
    %v289 = vunpack.c.l.s4 1983009808
    %v290 = vunpack.c.0.s8 %v289
    %v291 = vlaneseq
    %v292 = vshrl.u32 %v291, 7
    %v293 = vsub.s32 %v290, %v292
    %v294 = vrot.slane %v180, %v293
    %v296 = vunpack.c.l.s4 1983009808
    %v297 = vunpack.c.0.s8 %v296
    %v298 = vlaneseq
    %v299 = vshrl.u32 %v298, 7
    %v300 = vsub.s32 %v297, %v299
    %v301 = vrot.slane %v287, %v300
    %v302 = vcombine.high %v218, 0.0
    %v304 = vunpack.c.l.s4 1983009808
    %v305 = vunpack.c.0.s8 %v304
    %v306 = vlaneseq
    %v307 = vshrl.u32 %v306, 7
    %v308 = vsub.s32 %v305, %v307
    %v309 = vrot.slane %v218, %v308
    %v311 = vunpack.c.l.s4 1983009808
    %v312 = vunpack.c.0.s8 %v311
    %v313 = vlaneseq
    %v314 = vshrl.u32 %v313, 7
    %v315 = vsub.s32 %v312, %v314
    %v316 = vrot.slane %v302, %v315
    %v317 = vcombine.low %v294, %v309
    %v318 = vcombine.high %v294, %v309
    %v320 = vunpack.c.l.s4 1934713408
    %v321 = vunpack.c.0.s8 %v320
    %v322 = vlaneseq
    %v323 = vshrl.u32 %v322, 7
    %v324 = vsub.s32 %v321, %v323
    %v325 = vrot.slane %v317, %v324
    %v327 = vunpack.c.l.s4 1934713408
    %v328 = vunpack.c.0.s8 %v327
    %v329 = vlaneseq
    %v330 = vshrl.u32 %v329, 7
    %v331 = vsub.s32 %v328, %v330
    %v332 = vrot.slane %v318, %v331
    %v333 = vcombine.low %v301, %v316
    %v334 = vcombine.high %v301, %v316
    %v336 = vunpack.c.l.s4 1934713408
    %v337 = vunpack.c.0.s8 %v336
    %v338 = vlaneseq
    %v339 = vshrl.u32 %v338, 7
    %v340 = vsub.s32 %v337, %v339
    %v341 = vrot.slane %v333, %v340
    %v343 = vunpack.c.l.s4 1934713408
    %v344 = vunpack.c.0.s8 %v343
    %v345 = vlaneseq
    %v346 = vshrl.u32 %v345, 7
    %v347 = vsub.s32 %v344, %v346
    %v348 = vrot.slane %v334, %v347
    %v349 = vcombine.high %v325, 0.0
    %v350 = vcombine.high %v332, 0.0
    %v351 = vcombine.high %v341, 0.0
    %v352 = vcombine.high %v348, 0.0
    %355 = vrot.lane.b32.xlu0 %v185, 124
    %v356 = vpop.permute.xlu0 %355
    %357 = vrot.lane.b32.xlu0 %v190, 124
    %v358 = vpop.permute.xlu0 %357
    %v361 = vcombine.high %v185, 0.0
    %v363 = vunpack.c.l.s4 1983009808
    %v364 = vunpack.c.0.s8 %v363
    %v365 = vlaneseq
    %v366 = vshrl.u32 %v365, 7
    %v367 = vsub.s32 %v364, %v366
    %v368 = vrot.slane %v185, %v367
    %v370 = vunpack.c.l.s4 1983009808
    %v371 = vunpack.c.0.s8 %v370
    %v372 = vlaneseq
    %v373 = vshrl.u32 %v372, 7
    %v374 = vsub.s32 %v371, %v373
    %v375 = vrot.slane %v361, %v374
    %v376 = vcombine.high %v356, 0.0
    %v378 = vunpack.c.l.s4 1983009808
    %v379 = vunpack.c.0.s8 %v378
    %v380 = vlaneseq
    %v381 = vshrl.u32 %v380, 7
    %v382 = vsub.s32 %v379, %v381
    %v383 = vrot.slane %v356, %v382
    %v385 = vunpack.c.l.s4 1983009808
    %v386 = vunpack.c.0.s8 %v385
    %v387 = vlaneseq
    %v388 = vshrl.u32 %v387, 7
    %v389 = vsub.s32 %v386, %v388
    %v390 = vrot.slane %v376, %v389
    %v391 = vcombine.low %v368, %v383
    %v392 = vcombine.high %v368, %v383
    %v394 = vunpack.c.l.s4 1934713408
    %v395 = vunpack.c.0.s8 %v394
    %v396 = vlaneseq
    %v397 = vshrl.u32 %v396, 7
    %v398 = vsub.s32 %v395, %v397
    %v399 = vrot.slane %v391, %v398
    %v401 = vunpack.c.l.s4 1934713408
    %v402 = vunpack.c.0.s8 %v401
    %v403 = vlaneseq
    %v404 = vshrl.u32 %v403, 7
    %v405 = vsub.s32 %v402, %v404
    %v406 = vrot.slane %v392, %v405
    %v407 = vcombine.low %v375, %v390
    %v408 = vcombine.high %v375, %v390
    %v410 = vunpack.c.l.s4 1934713408
    %v411 = vunpack.c.0.s8 %v410
    %v412 = vlaneseq
    %v413 = vshrl.u32 %v412, 7
    %v414 = vsub.s32 %v411, %v413
    %v415 = vrot.slane %v407, %v414
    %v417 = vunpack.c.l.s4 1934713408
    %v418 = vunpack.c.0.s8 %v417
    %v419 = vlaneseq
    %v420 = vshrl.u32 %v419, 7
    %v421 = vsub.s32 %v418, %v420
    %v422 = vrot.slane %v408, %v421
    %v423 = vcombine.high %v399, 0.0
    %v424 = vcombine.high %v406, 0.0
    %v425 = vcombine.high %v415, 0.0
    %v426 = vcombine.high %v422, 0.0
    %v427 = vcombine.high %v190, 0.0
    %v429 = vunpack.c.l.s4 1983009808
    %v430 = vunpack.c.0.s8 %v429
    %v431 = vlaneseq
    %v432 = vshrl.u32 %v431, 7
    %v433 = vsub.s32 %v430, %v432
    %v434 = vrot.slane %v190, %v433
    %v436 = vunpack.c.l.s4 1983009808
    %v437 = vunpack.c.0.s8 %v436
    %v438 = vlaneseq
    %v439 = vshrl.u32 %v438, 7
    %v440 = vsub.s32 %v437, %v439
    %v441 = vrot.slane %v427, %v440
    %v442 = vcombine.high %v358, 0.0
    %v444 = vunpack.c.l.s4 1983009808
    %v445 = vunpack.c.0.s8 %v444
    %v446 = vlaneseq
    %v447 = vshrl.u32 %v446, 7
    %v448 = vsub.s32 %v445, %v447
    %v449 = vrot.slane %v358, %v448
    %v451 = vunpack.c.l.s4 1983009808
    %v452 = vunpack.c.0.s8 %v451
    %v453 = vlaneseq
    %v454 = vshrl.u32 %v453, 7
    %v455 = vsub.s32 %v452, %v454
    %v456 = vrot.slane %v442, %v455
    %v457 = vcombine.low %v434, %v449
    %v458 = vcombine.high %v434, %v449
    %v460 = vunpack.c.l.s4 1934713408
    %v461 = vunpack.c.0.s8 %v460
    %v462 = vlaneseq
    %v463 = vshrl.u32 %v462, 7
    %v464 = vsub.s32 %v461, %v463
    %v465 = vrot.slane %v457, %v464
    %v467 = vunpack.c.l.s4 1934713408
    %v468 = vunpack.c.0.s8 %v467
    %v469 = vlaneseq
    %v470 = vshrl.u32 %v469, 7
    %v471 = vsub.s32 %v468, %v470
    %v472 = vrot.slane %v458, %v471
    %v473 = vcombine.low %v441, %v456
    %v474 = vcombine.high %v441, %v456
    %v476 = vunpack.c.l.s4 1934713408
    %v477 = vunpack.c.0.s8 %v476
    %v478 = vlaneseq
    %v479 = vshrl.u32 %v478, 7
    %v480 = vsub.s32 %v477, %v479
    %v481 = vrot.slane %v473, %v480
    %v483 = vunpack.c.l.s4 1934713408
    %v484 = vunpack.c.0.s8 %v483
    %v485 = vlaneseq
    %v486 = vshrl.u32 %v485, 7
    %v487 = vsub.s32 %v484, %v486
    %v488 = vrot.slane %v474, %v487
    %v489 = vcombine.high %v465, 0.0
    %v490 = vcombine.high %v472, 0.0
    %v491 = vcombine.high %v481, 0.0
    %v492 = vcombine.high %v488, 0.0
    %495 = vrot.lane.b32.xlu0 %v195, 124
    %v496 = vpop.permute.xlu0 %495
    %497 = vrot.lane.b32.xlu0 %v200, 124
    %v498 = vpop.permute.xlu0 %497
    %v501 = vcombine.high %v195, 0.0
    %v503 = vunpack.c.l.s4 1983009808
    %v504 = vunpack.c.0.s8 %v503
    %v505 = vlaneseq
    %v506 = vshrl.u32 %v505, 7
    %v507 = vsub.s32 %v504, %v506
    %v508 = vrot.slane %v195, %v507
    %v510 = vunpack.c.l.s4 1983009808
    %v511 = vunpack.c.0.s8 %v510
    %v512 = vlaneseq
    %v513 = vshrl.u32 %v512, 7
    %v514 = vsub.s32 %v511, %v513
    %v515 = vrot.slane %v501, %v514
    %v516 = vcombine.high %v496, 0.0
    %v518 = vunpack.c.l.s4 1983009808
    %v519 = vunpack.c.0.s8 %v518
    %v520 = vlaneseq
    %v521 = vshrl.u32 %v520, 7
    %v522 = vsub.s32 %v519, %v521
    %v523 = vrot.slane %v496, %v522
    %v525 = vunpack.c.l.s4 1983009808
    %v526 = vunpack.c.0.s8 %v525
    %v527 = vlaneseq
    %v528 = vshrl.u32 %v527, 7
    %v529 = vsub.s32 %v526, %v528
    %v530 = vrot.slane %v516, %v529
    %v531 = vcombine.low %v508, %v523
    %v532 = vcombine.high %v508, %v523
    %v534 = vunpack.c.l.s4 1934713408
    %v535 = vunpack.c.0.s8 %v534
    %v536 = vlaneseq
    %v537 = vshrl.u32 %v536, 7
    %v538 = vsub.s32 %v535, %v537
    %v539 = vrot.slane %v531, %v538
    %v541 = vunpack.c.l.s4 1934713408
    %v542 = vunpack.c.0.s8 %v541
    %v543 = vlaneseq
    %v544 = vshrl.u32 %v543, 7
    %v545 = vsub.s32 %v542, %v544
    %v546 = vrot.slane %v532, %v545
    %v547 = vcombine.low %v515, %v530
    %v548 = vcombine.high %v515, %v530
    %v550 = vunpack.c.l.s4 1934713408
    %v551 = vunpack.c.0.s8 %v550
    %v552 = vlaneseq
    %v553 = vshrl.u32 %v552, 7
    %v554 = vsub.s32 %v551, %v553
    %v555 = vrot.slane %v547, %v554
    %v557 = vunpack.c.l.s4 1934713408
    %v558 = vunpack.c.0.s8 %v557
    %v559 = vlaneseq
    %v560 = vshrl.u32 %v559, 7
    %v561 = vsub.s32 %v558, %v560
    %v562 = vrot.slane %v548, %v561
    %v563 = vcombine.high %v539, 0.0
    %v564 = vcombine.high %v546, 0.0
    %v565 = vcombine.high %v555, 0.0
    %v566 = vcombine.high %v562, 0.0
    %v567 = vcombine.high %v200, 0.0
    %v569 = vunpack.c.l.s4 1983009808
    %v570 = vunpack.c.0.s8 %v569
    %v571 = vlaneseq
    %v572 = vshrl.u32 %v571, 7
    %v573 = vsub.s32 %v570, %v572
    %v574 = vrot.slane %v200, %v573
    %v576 = vunpack.c.l.s4 1983009808
    %v577 = vunpack.c.0.s8 %v576
    %v578 = vlaneseq
    %v579 = vshrl.u32 %v578, 7
    %v580 = vsub.s32 %v577, %v579
    %v581 = vrot.slane %v567, %v580
    %v582 = vcombine.high %v498, 0.0
    %v584 = vunpack.c.l.s4 1983009808
    %v585 = vunpack.c.0.s8 %v584
    %v586 = vlaneseq
    %v587 = vshrl.u32 %v586, 7
    %v588 = vsub.s32 %v585, %v587
    %v589 = vrot.slane %v498, %v588
    %v591 = vunpack.c.l.s4 1983009808
    %v592 = vunpack.c.0.s8 %v591
    %v593 = vlaneseq
    %v594 = vshrl.u32 %v593, 7
    %v595 = vsub.s32 %v592, %v594
    %v596 = vrot.slane %v582, %v595
    %v597 = vcombine.low %v574, %v589
    %v598 = vcombine.high %v574, %v589
    %v600 = vunpack.c.l.s4 1934713408
    %v601 = vunpack.c.0.s8 %v600
    %v602 = vlaneseq
    %v603 = vshrl.u32 %v602, 7
    %v604 = vsub.s32 %v601, %v603
    %v605 = vrot.slane %v597, %v604
    %v607 = vunpack.c.l.s4 1934713408
    %v608 = vunpack.c.0.s8 %v607
    %v609 = vlaneseq
    %v610 = vshrl.u32 %v609, 7
    %v611 = vsub.s32 %v608, %v610
    %v612 = vrot.slane %v598, %v611
    %v613 = vcombine.low %v581, %v596
    %v614 = vcombine.high %v581, %v596
    %v616 = vunpack.c.l.s4 1934713408
    %v617 = vunpack.c.0.s8 %v616
    %v618 = vlaneseq
    %v619 = vshrl.u32 %v618, 7
    %v620 = vsub.s32 %v617, %v619
    %v621 = vrot.slane %v613, %v620
    %v623 = vunpack.c.l.s4 1934713408
    %v624 = vunpack.c.0.s8 %v623
    %v625 = vlaneseq
    %v626 = vshrl.u32 %v625, 7
    %v627 = vsub.s32 %v624, %v626
    %v628 = vrot.slane %v614, %v627
    %v629 = vcombine.high %v605, 0.0
    %v630 = vcombine.high %v612, 0.0
    %v631 = vcombine.high %v621, 0.0
    %v632 = vcombine.high %v628, 0.0
    %635 = vrot.lane.b32.xlu0 %v205, 124
    %v636 = vpop.permute.xlu0 %635
    %637 = vrot.lane.b32.xlu0 %v210, 124
    %v638 = vpop.permute.xlu0 %637
    %v641 = vcombine.high %v205, 0.0
    %v643 = vunpack.c.l.s4 1983009808
    %v644 = vunpack.c.0.s8 %v643
    %v645 = vlaneseq
    %v646 = vshrl.u32 %v645, 7
    %v647 = vsub.s32 %v644, %v646
    %v648 = vrot.slane %v205, %v647
    %v650 = vunpack.c.l.s4 1983009808
    %v651 = vunpack.c.0.s8 %v650
    %v652 = vlaneseq
    %v653 = vshrl.u32 %v652, 7
    %v654 = vsub.s32 %v651, %v653
    %v655 = vrot.slane %v641, %v654
    %v656 = vcombine.high %v636, 0.0
    %v658 = vunpack.c.l.s4 1983009808
    %v659 = vunpack.c.0.s8 %v658
    %v660 = vlaneseq
    %v661 = vshrl.u32 %v660, 7
    %v662 = vsub.s32 %v659, %v661
    %v663 = vrot.slane %v636, %v662
    %v665 = vunpack.c.l.s4 1983009808
    %v666 = vunpack.c.0.s8 %v665
    %v667 = vlaneseq
    %v668 = vshrl.u32 %v667, 7
    %v669 = vsub.s32 %v666, %v668
    %v670 = vrot.slane %v656, %v669
    %v671 = vcombine.low %v648, %v663
    %v672 = vcombine.high %v648, %v663
    %v674 = vunpack.c.l.s4 1934713408
    %v675 = vunpack.c.0.s8 %v674
    %v676 = vlaneseq
    %v677 = vshrl.u32 %v676, 7
    %v678 = vsub.s32 %v675, %v677
    %v679 = vrot.slane %v671, %v678
    %v681 = vunpack.c.l.s4 1934713408
    %v682 = vunpack.c.0.s8 %v681
    %v683 = vlaneseq
    %v684 = vshrl.u32 %v683, 7
    %v685 = vsub.s32 %v682, %v684
    %v686 = vrot.slane %v672, %v685
    %v687 = vcombine.low %v655, %v670
    %v688 = vcombine.high %v655, %v670
    %v690 = vunpack.c.l.s4 1934713408
    %v691 = vunpack.c.0.s8 %v690
    %v692 = vlaneseq
    %v693 = vshrl.u32 %v692, 7
    %v694 = vsub.s32 %v691, %v693
    %v695 = vrot.slane %v687, %v694
    %v697 = vunpack.c.l.s4 1934713408
    %v698 = vunpack.c.0.s8 %v697
    %v699 = vlaneseq
    %v700 = vshrl.u32 %v699, 7
    %v701 = vsub.s32 %v698, %v700
    %v702 = vrot.slane %v688, %v701
    %v703 = vcombine.high %v679, 0.0
    %v704 = vcombine.high %v686, 0.0
    %v705 = vcombine.high %v695, 0.0
    %v706 = vcombine.high %v702, 0.0
    %v707 = vcombine.high %v210, 0.0
    %v709 = vunpack.c.l.s4 1983009808
    %v710 = vunpack.c.0.s8 %v709
    %v711 = vlaneseq
    %v712 = vshrl.u32 %v711, 7
    %v713 = vsub.s32 %v710, %v712
    %v714 = vrot.slane %v210, %v713
    %v716 = vunpack.c.l.s4 1983009808
    %v717 = vunpack.c.0.s8 %v716
    %v718 = vlaneseq
    %v719 = vshrl.u32 %v718, 7
    %v720 = vsub.s32 %v717, %v719
    %v721 = vrot.slane %v707, %v720
    %v722 = vcombine.high %v638, 0.0
    %v724 = vunpack.c.l.s4 1983009808
    %v725 = vunpack.c.0.s8 %v724
    %v726 = vlaneseq
    %v727 = vshrl.u32 %v726, 7
    %v728 = vsub.s32 %v725, %v727
    %v729 = vrot.slane %v638, %v728
    %v731 = vunpack.c.l.s4 1983009808
    %v732 = vunpack.c.0.s8 %v731
    %v733 = vlaneseq
    %v734 = vshrl.u32 %v733, 7
    %v735 = vsub.s32 %v732, %v734
    %v736 = vrot.slane %v722, %v735
    %v737 = vcombine.low %v714, %v729
    %v738 = vcombine.high %v714, %v729
    %v740 = vunpack.c.l.s4 1934713408
    %v741 = vunpack.c.0.s8 %v740
    %v742 = vlaneseq
    %v743 = vshrl.u32 %v742, 7
    %v744 = vsub.s32 %v741, %v743
    %v745 = vrot.slane %v737, %v744
    %v747 = vunpack.c.l.s4 1934713408
    %v748 = vunpack.c.0.s8 %v747
    %v749 = vlaneseq
    %v750 = vshrl.u32 %v749, 7
    %v751 = vsub.s32 %v748, %v750
    %v752 = vrot.slane %v738, %v751
    %v753 = vcombine.low %v721, %v736
    %v754 = vcombine.high %v721, %v736
    %v756 = vunpack.c.l.s4 1934713408
    %v757 = vunpack.c.0.s8 %v756
    %v758 = vlaneseq
    %v759 = vshrl.u32 %v758, 7
    %v760 = vsub.s32 %v757, %v759
    %v761 = vrot.slane %v753, %v760
    %v763 = vunpack.c.l.s4 1934713408
    %v764 = vunpack.c.0.s8 %v763
    %v765 = vlaneseq
    %v766 = vshrl.u32 %v765, 7
    %v767 = vsub.s32 %v764, %v766
    %v768 = vrot.slane %v754, %v767
    %v769 = vcombine.high %v745, 0.0
    %v770 = vcombine.high %v752, 0.0
    %v771 = vcombine.high %v761, 0.0
    %v772 = vcombine.high %v768, 0.0
    %789 = vrot.lane.b32.xlu0 %v399, 4
    %v790 = vpop.permute.xlu0 %789
    %791 = vrot.lane.b32.xlu0 %v423, 4
    %v792 = vpop.permute.xlu0 %791
    %793 = vrot.lane.b32.xlu0 %v406, 4
    %v794 = vpop.permute.xlu0 %793
    %795 = vrot.lane.b32.xlu0 %v424, 4
    %v796 = vpop.permute.xlu0 %795
    %797 = vrot.lane.b32.xlu0 %v415, 4
    %v798 = vpop.permute.xlu0 %797
    %799 = vrot.lane.b32.xlu0 %v425, 4
    %v800 = vpop.permute.xlu0 %799
    %801 = vrot.lane.b32.xlu0 %v422, 4
    %v802 = vpop.permute.xlu0 %801
    %803 = vrot.lane.b32.xlu0 %v426, 4
    %v804 = vpop.permute.xlu0 %803
    %805 = vrot.lane.b32.xlu0 %v465, 4
    %v806 = vpop.permute.xlu0 %805
    %807 = vrot.lane.b32.xlu0 %v489, 4
    %v808 = vpop.permute.xlu0 %807
    %809 = vrot.lane.b32.xlu0 %v472, 4
    %v810 = vpop.permute.xlu0 %809
    %811 = vrot.lane.b32.xlu0 %v490, 4
    %v812 = vpop.permute.xlu0 %811
    %813 = vrot.lane.b32.xlu0 %v481, 4
    %v814 = vpop.permute.xlu0 %813
    %815 = vrot.lane.b32.xlu0 %v491, 4
    %v816 = vpop.permute.xlu0 %815
    %817 = vrot.lane.b32.xlu0 %v488, 4
    %v818 = vpop.permute.xlu0 %817
    %819 = vrot.lane.b32.xlu0 %v492, 4
    %v820 = vpop.permute.xlu0 %819
    %853 = vrot.lane.b32.xlu0 %v539, 8
    %v854 = vpop.permute.xlu0 %853
    %855 = vrot.lane.b32.xlu0 %v563, 8
    %v856 = vpop.permute.xlu0 %855
    %857 = vrot.lane.b32.xlu0 %v546, 8
    %v858 = vpop.permute.xlu0 %857
    %859 = vrot.lane.b32.xlu0 %v564, 8
    %v860 = vpop.permute.xlu0 %859
    %861 = vrot.lane.b32.xlu0 %v555, 8
    %v862 = vpop.permute.xlu0 %861
    %863 = vrot.lane.b32.xlu0 %v565, 8
    %v864 = vpop.permute.xlu0 %863
    %865 = vrot.lane.b32.xlu0 %v562, 8
    %v866 = vpop.permute.xlu0 %865
    %867 = vrot.lane.b32.xlu0 %v566, 8
    %v868 = vpop.permute.xlu0 %867
    %869 = vrot.lane.b32.xlu0 %v605, 8
    %v870 = vpop.permute.xlu0 %869
    %871 = vrot.lane.b32.xlu0 %v629, 8
    %v872 = vpop.permute.xlu0 %871
    %873 = vrot.lane.b32.xlu0 %v612, 8
    %v874 = vpop.permute.xlu0 %873
    %875 = vrot.lane.b32.xlu0 %v630, 8
    %v876 = vpop.permute.xlu0 %875
    %877 = vrot.lane.b32.xlu0 %v621, 8
    %v878 = vpop.permute.xlu0 %877
    %879 = vrot.lane.b32.xlu0 %v631, 8
    %v880 = vpop.permute.xlu0 %879
    %881 = vrot.lane.b32.xlu0 %v628, 8
    %v882 = vpop.permute.xlu0 %881
    %883 = vrot.lane.b32.xlu0 %v632, 8
    %v884 = vpop.permute.xlu0 %883
    %917 = vrot.lane.b32.xlu0 %v679, 12
    %v918 = vpop.permute.xlu0 %917
    %919 = vrot.lane.b32.xlu0 %v703, 12
    %v920 = vpop.permute.xlu0 %919
    %921 = vrot.lane.b32.xlu0 %v686, 12
    %v922 = vpop.permute.xlu0 %921
    %923 = vrot.lane.b32.xlu0 %v704, 12
    %v924 = vpop.permute.xlu0 %923
    %925 = vrot.lane.b32.xlu0 %v695, 12
    %v926 = vpop.permute.xlu0 %925
    %927 = vrot.lane.b32.xlu0 %v705, 12
    %v928 = vpop.permute.xlu0 %927
    %929 = vrot.lane.b32.xlu0 %v702, 12
    %v930 = vpop.permute.xlu0 %929
    %931 = vrot.lane.b32.xlu0 %v706, 12
    %v932 = vpop.permute.xlu0 %931
    %933 = vrot.lane.b32.xlu0 %v745, 12
    %v934 = vpop.permute.xlu0 %933
    %935 = vrot.lane.b32.xlu0 %v769, 12
    %v936 = vpop.permute.xlu0 %935
    %937 = vrot.lane.b32.xlu0 %v752, 12
    %v938 = vpop.permute.xlu0 %937
    %939 = vrot.lane.b32.xlu0 %v770, 12
    %v940 = vpop.permute.xlu0 %939
    %941 = vrot.lane.b32.xlu0 %v761, 12
    %v942 = vpop.permute.xlu0 %941
    %943 = vrot.lane.b32.xlu0 %v771, 12
    %v944 = vpop.permute.xlu0 %943
    %945 = vrot.lane.b32.xlu0 %v768, 12
    %v946 = vpop.permute.xlu0 %945
    %947 = vrot.lane.b32.xlu0 %v772, 12
    %v948 = vpop.permute.xlu0 %947
    %vm965 = vcmask 31744
    %v966 = vsel %vm965, %v259, %v790
    %v967 = vsel %vm965, %v283, %v792
    %v968 = vsel %vm965, %v266, %v794
    %v969 = vsel %vm965, %v284, %v796
    %v970 = vsel %vm965, %v275, %v798
    %v971 = vsel %vm965, %v285, %v800
    %v972 = vsel %vm965, %v282, %v802
    %v973 = vsel %vm965, %v286, %v804
    %v974 = vsel %vm965, %v325, %v806
    %v975 = vsel %vm965, %v349, %v808
    %v976 = vsel %vm965, %v332, %v810
    %v977 = vsel %vm965, %v350, %v812
    %v978 = vsel %vm965, %v341, %v814
    %v979 = vsel %vm965, %v351, %v816
    %v980 = vsel %vm965, %v348, %v818
    %v981 = vsel %vm965, %v352, %v820
    %vm982 = vcmask 64512
    %v983 = vsel %vm982, %v966, %v854
    %v984 = vsel %vm982, %v967, %v856
    %v985 = vsel %vm982, %v968, %v858
    %v986 = vsel %vm982, %v969, %v860
    %v987 = vsel %vm982, %v970, %v862
    %v988 = vsel %vm982, %v971, %v864
    %v989 = vsel %vm982, %v972, %v866
    %v990 = vsel %vm982, %v973, %v868
    %v991 = vsel %vm982, %v974, %v870
    %v992 = vsel %vm982, %v975, %v872
    %v993 = vsel %vm982, %v976, %v874
    %v994 = vsel %vm982, %v977, %v876
    %v995 = vsel %vm982, %v978, %v878
    %v996 = vsel %vm982, %v979, %v880
    %v997 = vsel %vm982, %v980, %v882
    %v998 = vsel %vm982, %v981, %v884
    %vm999 = vcmask 97280
    %v1000 = vsel %vm999, %v983, %v918
    %v1001 = vsel %vm999, %v984, %v920
    %v1002 = vsel %vm999, %v985, %v922
    %v1003 = vsel %vm999, %v986, %v924
    %v1004 = vsel %vm999, %v987, %v926
    %v1005 = vsel %vm999, %v988, %v928
    %v1006 = vsel %vm999, %v989, %v930
    %v1007 = vsel %vm999, %v990, %v932
    %v1008 = vsel %vm999, %v991, %v934
    %v1009 = vsel %vm999, %v992, %v936
    %v1010 = vsel %vm999, %v993, %v938
    %v1011 = vsel %vm999, %v994, %v940
    %v1012 = vsel %vm999, %v995, %v942
    %v1013 = vsel %vm999, %v996, %v944
    %v1014 = vsel %vm999, %v997, %v946
    %v1015 = vsel %vm999, %v998, %v948
    %v1016 = vld [vmem:[#allocation7] sm:$0xff]
    %v1017 = vld [vmem:[#allocation7 + $0x8] sm:$0xff]
    %v1018 = vld [vmem:[#allocation7 + $0x10] sm:$0xff]
    %v1019 = vld [vmem:[#allocation7 + $0x18] sm:$0xff]
    %v1020 = vld [vmem:[#allocation7 + $0x20] sm:$0xff]
    %v1021 = vld [vmem:[#allocation7 + $0x28] sm:$0xff]
    %v1022 = vld [vmem:[#allocation7 + $0x30] sm:$0xff]
    %v1023 = vld [vmem:[#allocation7 + $0x38] sm:$0xff]
    %v1024 = vld [vmem:[#allocation7 + $0x40] sm:$0xff]
    %v1025 = vld [vmem:[#allocation7 + $0x48] sm:$0xff]
    %v1026 = vld [vmem:[#allocation7 + $0x50] sm:$0xff]
    %v1027 = vld [vmem:[#allocation7 + $0x58] sm:$0xff]
    %v1028 = vld [vmem:[#allocation7 + $0x60] sm:$0xff]
    %v1029 = vld [vmem:[#allocation7 + $0x68] sm:$0xff]
    %v1030 = vld [vmem:[#allocation7 + $0x70] sm:$0xff]
    %v1031 = vld [vmem:[#allocation7 + $0x78] sm:$0xff]
    %v1032 = vld [vmem:[#allocation7 + $0x80] sm:$0xff]
    %v1033 = vld [vmem:[#allocation7 + $0x88] sm:$0xff]
    %v1034 = vld [vmem:[#allocation7 + $0x90] sm:$0xff]
    %v1035 = vld [vmem:[#allocation7 + $0x98] sm:$0xff]
    %v1036 = vld [vmem:[#allocation7 + $0xa0] sm:$0xff]
    %v1037 = vld [vmem:[#allocation7 + $0xa8] sm:$0xff]
    %v1038 = vld [vmem:[#allocation7 + $0xb0] sm:$0xff]
    %v1039 = vld [vmem:[#allocation7 + $0xb8] sm:$0xff]
    %v1040 = vld [vmem:[#allocation7 + $0xc0] sm:$0xff]
    %v1041 = vld [vmem:[#allocation7 + $0xc8] sm:$0xff]
    %v1042 = vld [vmem:[#allocation7 + $0xd0] sm:$0xff]
    %v1043 = vld [vmem:[#allocation7 + $0xd8] sm:$0xff]
    %v1044 = vld [vmem:[#allocation7 + $0xe0] sm:$0xff]
    %v1045 = vld [vmem:[#allocation7 + $0xe8] sm:$0xff]
    %v1046 = vld [vmem:[#allocation7 + $0xf0] sm:$0xff]
    %v1047 = vld [vmem:[#allocation7 + $0xf8] sm:$0xff]
    %v1048 = vld [vmem:[#allocation8] sm:$0xff]
    %v1049 = vld [vmem:[#allocation8 + $0x8] sm:$0xff]
    %v1052 = vcombine.high %v1048, %v1048
    %v1054 = vunpack.c.l.s4 1966171168
    %v1055 = vunpack.c.0.s8 %v1054
    %v1056 = vlaneseq
    %v1057 = vshrl.u32 %v1056, 7
    %v1058 = vsub.s32 %v1055, %v1057
    %v1059 = vrot.slane %v1048, %v1058
    %v1061 = vunpack.c.l.s4 1966171168
    %v1062 = vunpack.c.0.s8 %v1061
    %v1063 = vlaneseq
    %v1064 = vshrl.u32 %v1063, 7
    %v1065 = vsub.s32 %v1062, %v1064
    %v1066 = vrot.slane %v1052, %v1065
    %v1067 = vcombine.high %v1059, %v1059
    %v1068 = vcombine.high %v1066, %v1066
    %v1070 = vunpack.c.l.s4 1966171168
    %v1071 = vunpack.c.0.s8 %v1070
    %v1072 = vlaneseq
    %v1073 = vshrl.u32 %v1072, 7
    %v1074 = vsub.s32 %v1071, %v1073
    %v1075 = vrot.slane %v1059, %v1074
    %v1077 = vunpack.c.l.s4 1966171168
    %v1078 = vunpack.c.0.s8 %v1077
    %v1079 = vlaneseq
    %v1080 = vshrl.u32 %v1079, 7
    %v1081 = vsub.s32 %v1078, %v1080
    %v1082 = vrot.slane %v1066, %v1081
    %v1084 = vunpack.c.l.s4 1966171168
    %v1085 = vunpack.c.0.s8 %v1084
    %v1086 = vlaneseq
    %v1087 = vshrl.u32 %v1086, 7
    %v1088 = vsub.s32 %v1085, %v1087
    %v1089 = vrot.slane %v1067, %v1088
    %v1091 = vunpack.c.l.s4 1966171168
    %v1092 = vunpack.c.0.s8 %v1091
    %v1093 = vlaneseq
    %v1094 = vshrl.u32 %v1093, 7
    %v1095 = vsub.s32 %v1092, %v1094
    %v1096 = vrot.slane %v1068, %v1095
    %v1097 = vcombine.high %v1075, %v1075
    %v1098 = vcombine.high %v1082, %v1082
    %v1099 = vcombine.high %v1089, %v1089
    %v1100 = vcombine.high %v1096, %v1096
    %v1101 = vcombine.high %v1049, %v1049
    %v1103 = vunpack.c.l.s4 1966171168
    %v1104 = vunpack.c.0.s8 %v1103
    %v1105 = vlaneseq
    %v1106 = vshrl.u32 %v1105, 7
    %v1107 = vsub.s32 %v1104, %v1106
    %v1108 = vrot.slane %v1049, %v1107
    %v1110 = vunpack.c.l.s4 1966171168
    %v1111 = vunpack.c.0.s8 %v1110
    %v1112 = vlaneseq
    %v1113 = vshrl.u32 %v1112, 7
    %v1114 = vsub.s32 %v1111, %v1113
    %v1115 = vrot.slane %v1101, %v1114
    %v1116 = vcombine.high %v1108, %v1108
    %v1117 = vcombine.high %v1115, %v1115
    %v1119 = vunpack.c.l.s4 1966171168
    %v1120 = vunpack.c.0.s8 %v1119
    %v1121 = vlaneseq
    %v1122 = vshrl.u32 %v1121, 7
    %v1123 = vsub.s32 %v1120, %v1122
    %v1124 = vrot.slane %v1108, %v1123
    %v1126 = vunpack.c.l.s4 1966171168
    %v1127 = vunpack.c.0.s8 %v1126
    %v1128 = vlaneseq
    %v1129 = vshrl.u32 %v1128, 7
    %v1130 = vsub.s32 %v1127, %v1129
    %v1131 = vrot.slane %v1115, %v1130
    %v1133 = vunpack.c.l.s4 1966171168
    %v1134 = vunpack.c.0.s8 %v1133
    %v1135 = vlaneseq
    %v1136 = vshrl.u32 %v1135, 7
    %v1137 = vsub.s32 %v1134, %v1136
    %v1138 = vrot.slane %v1116, %v1137
    %v1140 = vunpack.c.l.s4 1966171168
    %v1141 = vunpack.c.0.s8 %v1140
    %v1142 = vlaneseq
    %v1143 = vshrl.u32 %v1142, 7
    %v1144 = vsub.s32 %v1141, %v1143
    %v1145 = vrot.slane %v1117, %v1144
    %v1146 = vcombine.high %v1124, %v1124
    %v1147 = vcombine.high %v1131, %v1131
    %v1148 = vcombine.high %v1138, %v1138
    %v1149 = vcombine.high %v1145, %v1145
    %v1150 = vlaneseq
    %v1151 = vshrl.u32 %v1150, 7
    %v1152 = vsub.s32 0, %v1151
    %v1153 = vrot.slane %v1075, %v1152
    %v1154 = vlaneseq
    %v1155 = vshrl.u32 %v1154, 7
    %v1156 = vsub.s32 0, %v1155
    %v1157 = vrot.slane %v1089, %v1156
    %v1158 = vlaneseq
    %v1159 = vshrl.u32 %v1158, 7
    %v1160 = vsub.s32 0, %v1159
    %v1161 = vrot.slane %v1097, %v1160
    %v1162 = vlaneseq
    %v1163 = vshrl.u32 %v1162, 7
    %v1164 = vsub.s32 0, %v1163
    %v1165 = vrot.slane %v1099, %v1164
    %v1166 = vlaneseq
    %v1167 = vshrl.u32 %v1166, 7
    %v1168 = vsub.s32 0, %v1167
    %v1169 = vrot.slane %v1082, %v1168
    %v1170 = vlaneseq
    %v1171 = vshrl.u32 %v1170, 7
    %v1172 = vsub.s32 0, %v1171
    %v1173 = vrot.slane %v1096, %v1172
    %v1174 = vlaneseq
    %v1175 = vshrl.u32 %v1174, 7
    %v1176 = vsub.s32 0, %v1175
    %v1177 = vrot.slane %v1098, %v1176
    %v1178 = vlaneseq
    %v1179 = vshrl.u32 %v1178, 7
    %v1180 = vsub.s32 0, %v1179
    %v1181 = vrot.slane %v1100, %v1180
    %v1182 = vlaneseq
    %v1183 = vshrl.u32 %v1182, 7
    %v1184 = vsub.s32 0, %v1183
    %v1185 = vrot.slane %v1124, %v1184
    %v1186 = vlaneseq
    %v1187 = vshrl.u32 %v1186, 7
    %v1188 = vsub.s32 0, %v1187
    %v1189 = vrot.slane %v1138, %v1188
    %v1190 = vlaneseq
    %v1191 = vshrl.u32 %v1190, 7
    %v1192 = vsub.s32 0, %v1191
    %v1193 = vrot.slane %v1146, %v1192
    %v1194 = vlaneseq
    %v1195 = vshrl.u32 %v1194, 7
    %v1196 = vsub.s32 0, %v1195
    %v1197 = vrot.slane %v1148, %v1196
    %v1198 = vlaneseq
    %v1199 = vshrl.u32 %v1198, 7
    %v1200 = vsub.s32 0, %v1199
    %v1201 = vrot.slane %v1131, %v1200
    %v1202 = vlaneseq
    %v1203 = vshrl.u32 %v1202, 7
    %v1204 = vsub.s32 0, %v1203
    %v1205 = vrot.slane %v1145, %v1204
    %v1206 = vlaneseq
    %v1207 = vshrl.u32 %v1206, 7
    %v1208 = vsub.s32 0, %v1207
    %v1209 = vrot.slane %v1147, %v1208
    %v1210 = vlaneseq
    %v1211 = vshrl.u32 %v1210, 7
    %v1212 = vsub.s32 0, %v1211
    %v1213 = vrot.slane %v1149, %v1212
    %v1231 = vsel %vm83, %v1000, 0
    %1233 = vmatprep.subr.mxu0 0.0
    %1234 = vmatpush1.msra.mxu0 %v1016
    %1235 = vmatprep.subr.mxu0 0.0
    %1236 = vmatpush1.msra.mxu0 %v1017
    %1237 = vmatprep.subr.mxu0 0.0
    %1238 = vmatpush1.msra.mxu0 0.0
    %1239 = vmatprep.subr.mxu0 0.0
    %1240 = vmatpush1.msra.mxu0 0.0
    %1241 = vmatprep.subr.mxu0 0.0
    %1242 = vmatpush1.msra.mxu0 0.0
    %1243 = vmatprep.subr.mxu0 0.0
    %1244 = vmatpush1.msra.mxu0 0.0
    %1245 = vmatprep.subr.mxu0 0.0
    %1246 = vmatpush1.msra.mxu0 0.0
    %1247 = vmatprep.subr.mxu0 0.0
    %1248 = vmatpush1.msra.mxu0 0.0
    %1249 = vmatprep.subr.mxu0 0.0
    %1250 = vmatpush1.msra.mxu0 0.0
    %1251 = vmatprep.subr.mxu0 0.0
    %1252 = vmatpush1.msra.mxu0 0.0
    %1253 = vmatprep.subr.mxu0 0.0
    %1254 = vmatpush1.msra.mxu0 0.0
    %1255 = vmatprep.subr.mxu0 0.0
    %1256 = vmatpush1.msra.mxu0 0.0
    %1257 = vmatprep.subr.mxu0 0.0
    %1258 = vmatpush1.msra.mxu0 0.0
    %1259 = vmatprep.subr.mxu0 0.0
    %1260 = vmatpush1.msra.mxu0 0.0
    %1261 = vmatprep.subr.mxu0 0.0
    %1262 = vmatpush1.msra.mxu0 0.0
    %1263 = vmatprep.subr.mxu0 0.0
    %1264 = vmatpush1.msra.mxu0 0.0
    %1265 = vmatprep.subr.mxu0 0.0
    %1266 = vmatpush1.msra.mxu0 0.0
    %1267 = vmatprep.subr.mxu0 0.0
    %1268 = vmatpush1.msra.mxu0 0.0
    %1269 = vmatprep.subr.mxu0 0.0
    %1270 = vmatpush1.msra.mxu0 0.0
    %1271 = vmatprep.subr.mxu0 0.0
    %1272 = vmatpush1.msra.mxu0 0.0
    %1273 = vmatprep.subr.mxu0 0.0
    %1274 = vmatpush1.msra.mxu0 0.0
    %1275 = vmatprep.subr.mxu0 0.0
    %1276 = vmatpush1.msra.mxu0 0.0
    %1277 = vmatprep.subr.mxu0 0.0
    %1278 = vmatpush1.msra.mxu0 0.0
    %1279 = vmatprep.subr.mxu0 0.0
    %1280 = vmatpush1.msra.mxu0 0.0
    %1281 = vmatprep.subr.mxu0 0.0
    %1282 = vmatpush1.msra.mxu0 0.0
    %1283 = vmatprep.subr.mxu0 0.0
    %1284 = vmatpush1.msra.mxu0 0.0
    %1285 = vmatprep.subr.mxu0 0.0
    %1286 = vmatpush1.msra.mxu0 0.0
    %1287 = vmatprep.subr.mxu0 0.0
    %1288 = vmatpush1.msra.mxu0 0.0
    %1289 = vmatprep.subr.mxu0 0.0
    %1290 = vmatpush1.msra.mxu0 0.0
    %1291 = vmatprep.subr.mxu0 0.0
    %1292 = vmatpush1.msra.mxu0 0.0
    %1293 = vmatprep.subr.mxu0 0.0
    %1294 = vmatpush1.msra.mxu0 0.0
    %1295 = vmatprep.subr.mxu0 0.0
    %1296 = vmatpush1.msra.mxu0 0.0
    %1297 = vmatprep.mubr.f32.mxu0 0.0
    %1298 = vmatmul.mubr.f32.gmra.mrb[0].mxu0 %v1231
    %v1299 = vpop.f32.mrb[0].mxu0
    %v1300 = vadd.f32 %v1153, %v1299
    %v1301 = vpop.f32.mrb[0].mxu0
    %1302 = vdwg.mxu0
    %v1304 = vsel %vm83, %v1001, 0
    %1306 = vmatprep.subr.mxu0 0.0
    %1307 = vmatpush1.msra.mxu0 %v1018
    %1308 = vmatprep.subr.mxu0 0.0
    %1309 = vmatpush1.msra.mxu0 %v1019
    %1310 = vmatprep.subr.mxu0 0.0
    %1311 = vmatpush1.msra.mxu0 0.0
    %1312 = vmatprep.subr.mxu0 0.0
    %1313 = vmatpush1.msra.mxu0 0.0
    %1314 = vmatprep.subr.mxu0 0.0
    %1315 = vmatpush1.msra.mxu0 0.0
    %1316 = vmatprep.subr.mxu0 0.0
    %1317 = vmatpush1.msra.mxu0 0.0
    %1318 = vmatprep.subr.mxu0 0.0
    %1319 = vmatpush1.msra.mxu0 0.0
    %1320 = vmatprep.subr.mxu0 0.0
    %1321 = vmatpush1.msra.mxu0 0.0
    %1322 = vmatprep.subr.mxu0 0.0
    %1323 = vmatpush1.msra.mxu0 0.0
    %1324 = vmatprep.subr.mxu0 0.0
    %1325 = vmatpush1.msra.mxu0 0.0
    %1326 = vmatprep.subr.mxu0 0.0
    %1327 = vmatpush1.msra.mxu0 0.0
    %1328 = vmatprep.subr.mxu0 0.0
    %1329 = vmatpush1.msra.mxu0 0.0
    %1330 = vmatprep.subr.mxu0 0.0
    %1331 = vmatpush1.msra.mxu0 0.0
    %1332 = vmatprep.subr.mxu0 0.0
    %1333 = vmatpush1.msra.mxu0 0.0
    %1334 = vmatprep.subr.mxu0 0.0
    %1335 = vmatpush1.msra.mxu0 0.0
    %1336 = vmatprep.subr.mxu0 0.0
    %1337 = vmatpush1.msra.mxu0 0.0
    %1338 = vmatprep.subr.mxu0 0.0
    %1339 = vmatpush1.msra.mxu0 0.0
    %1340 = vmatprep.subr.mxu0 0.0
    %1341 = vmatpush1.msra.mxu0 0.0
    %1342 = vmatprep.subr.mxu0 0.0
    %1343 = vmatpush1.msra.mxu0 0.0
    %1344 = vmatprep.subr.mxu0 0.0
    %1345 = vmatpush1.msra.mxu0 0.0
    %1346 = vmatprep.subr.mxu0 0.0
    %1347 = vmatpush1.msra.mxu0 0.0
    %1348 = vmatprep.subr.mxu0 0.0
    %1349 = vmatpush1.msra.mxu0 0.0
    %1350 = vmatprep.subr.mxu0 0.0
    %1351 = vmatpush1.msra.mxu0 0.0
    %1352 = vmatprep.subr.mxu0 0.0
    %1353 = vmatpush1.msra.mxu0 0.0
    %1354 = vmatprep.subr.mxu0 0.0
    %1355 = vmatpush1.msra.mxu0 0.0
    %1356 = vmatprep.subr.mxu0 0.0
    %1357 = vmatpush1.msra.mxu0 0.0
    %1358 = vmatprep.subr.mxu0 0.0
    %1359 = vmatpush1.msra.mxu0 0.0
    %1360 = vmatprep.subr.mxu0 0.0
    %1361 = vmatpush1.msra.mxu0 0.0
    %1362 = vmatprep.subr.mxu0 0.0
    %1363 = vmatpush1.msra.mxu0 0.0
    %1364 = vmatprep.subr.mxu0 0.0
    %1365 = vmatpush1.msra.mxu0 0.0
    %1366 = vmatprep.subr.mxu0 0.0
    %1367 = vmatpush1.msra.mxu0 0.0
    %1368 = vmatprep.subr.mxu0 0.0
    %1369 = vmatpush1.msra.mxu0 0.0
    %1370 = vmatprep.mubr.f32.mxu0 0.0
    %1371 = vmatmul.mubr.f32.gmra.mrb[0].mxu0 %v1304
    %v1372 = vpop.f32.mrb[0].mxu0
    %v1373 = vadd.f32 %v1157, %v1372
    %v1374 = vpop.f32.mrb[0].mxu0
    %1375 = vdwg.mxu0
    %v1377 = vsel %vm83, %v1002, 0
    %1379 = vmatprep.subr.mxu0 0.0
    %1380 = vmatpush1.msra.mxu0 %v1020
    %1381 = vmatprep.subr.mxu0 0.0
    %1382 = vmatpush1.msra.mxu0 %v1021
    %1383 = vmatprep.subr.mxu0 0.0
    %1384 = vmatpush1.msra.mxu0 0.0
    %1385 = vmatprep.subr.mxu0 0.0
    %1386 = vmatpush1.msra.mxu0 0.0
    %1387 = vmatprep.subr.mxu0 0.0
    %1388 = vmatpush1.msra.mxu0 0.0
    %1389 = vmatprep.subr.mxu0 0.0
    %1390 = vmatpush1.msra.mxu0 0.0
    %1391 = vmatprep.subr.mxu0 0.0
    %1392 = vmatpush1.msra.mxu0 0.0
    %1393 = vmatprep.subr.mxu0 0.0
    %1394 = vmatpush1.msra.mxu0 0.0
    %1395 = vmatprep.subr.mxu0 0.0
    %1396 = vmatpush1.msra.mxu0 0.0
    %1397 = vmatprep.subr.mxu0 0.0
    %1398 = vmatpush1.msra.mxu0 0.0
    %1399 = vmatprep.subr.mxu0 0.0
    %1400 = vmatpush1.msra.mxu0 0.0
    %1401 = vmatprep.subr.mxu0 0.0
    %1402 = vmatpush1.msra.mxu0 0.0
    %1403 = vmatprep.subr.mxu0 0.0
    %1404 = vmatpush1.msra.mxu0 0.0
    %1405 = vmatprep.subr.mxu0 0.0
    %1406 = vmatpush1.msra.mxu0 0.0
    %1407 = vmatprep.subr.mxu0 0.0
    %1408 = vmatpush1.msra.mxu0 0.0
    %1409 = vmatprep.subr.mxu0 0.0
    %1410 = vmatpush1.msra.mxu0 0.0
    %1411 = vmatprep.subr.mxu0 0.0
    %1412 = vmatpush1.msra.mxu0 0.0
    %1413 = vmatprep.subr.mxu0 0.0
    %1414 = vmatpush1.msra.mxu0 0.0
    %1415 = vmatprep.subr.mxu0 0.0
    %1416 = vmatpush1.msra.mxu0 0.0
    %1417 = vmatprep.subr.mxu0 0.0
    %1418 = vmatpush1.msra.mxu0 0.0
    %1419 = vmatprep.subr.mxu0 0.0
    %1420 = vmatpush1.msra.mxu0 0.0
    %1421 = vmatprep.subr.mxu0 0.0
    %1422 = vmatpush1.msra.mxu0 0.0
    %1423 = vmatprep.subr.mxu0 0.0
    %1424 = vmatpush1.msra.mxu0 0.0
    %1425 = vmatprep.subr.mxu0 0.0
    %1426 = vmatpush1.msra.mxu0 0.0
    %1427 = vmatprep.subr.mxu0 0.0
    %1428 = vmatpush1.msra.mxu0 0.0
    %1429 = vmatprep.subr.mxu0 0.0
    %1430 = vmatpush1.msra.mxu0 0.0
    %1431 = vmatprep.subr.mxu0 0.0
    %1432 = vmatpush1.msra.mxu0 0.0
    %1433 = vmatprep.subr.mxu0 0.0
    %1434 = vmatpush1.msra.mxu0 0.0
    %1435 = vmatprep.subr.mxu0 0.0
    %1436 = vmatpush1.msra.mxu0 0.0
    %1437 = vmatprep.subr.mxu0 0.0
    %1438 = vmatpush1.msra.mxu0 0.0
    %1439 = vmatprep.subr.mxu0 0.0
    %1440 = vmatpush1.msra.mxu0 0.0
    %1441 = vmatprep.subr.mxu0 0.0
    %1442 = vmatpush1.msra.mxu0 0.0
    %1443 = vmatprep.mubr.f32.mxu0 0.0
    %1444 = vmatmul.mubr.f32.gmra.mrb[0].mxu0 %v1377
    %v1445 = vpop.f32.mrb[0].mxu0
    %v1446 = vadd.f32 %v1161, %v1445
    %v1447 = vpop.f32.mrb[0].mxu0
    %1448 = vdwg.mxu0
    %v1450 = vsel %vm83, %v1003, 0
    %1452 = vmatprep.subr.mxu0 0.0
    %1453 = vmatpush1.msra.mxu0 %v1022
    %1454 = vmatprep.subr.mxu0 0.0
    %1455 = vmatpush1.msra.mxu0 %v1023
    %1456 = vmatprep.subr.mxu0 0.0
    %1457 = vmatpush1.msra.mxu0 0.0
    %1458 = vmatprep.subr.mxu0 0.0
    %1459 = vmatpush1.msra.mxu0 0.0
    %1460 = vmatprep.subr.mxu0 0.0
    %1461 = vmatpush1.msra.mxu0 0.0
    %1462 = vmatprep.subr.mxu0 0.0
    %1463 = vmatpush1.msra.mxu0 0.0
    %1464 = vmatprep.subr.mxu0 0.0
    %1465 = vmatpush1.msra.mxu0 0.0
    %1466 = vmatprep.subr.mxu0 0.0
    %1467 = vmatpush1.msra.mxu0 0.0
    %1468 = vmatprep.subr.mxu0 0.0
    %1469 = vmatpush1.msra.mxu0 0.0
    %1470 = vmatprep.subr.mxu0 0.0
    %1471 = vmatpush1.msra.mxu0 0.0
    %1472 = vmatprep.subr.mxu0 0.0
    %1473 = vmatpush1.msra.mxu0 0.0
    %1474 = vmatprep.subr.mxu0 0.0
    %1475 = vmatpush1.msra.mxu0 0.0
    %1476 = vmatprep.subr.mxu0 0.0
    %1477 = vmatpush1.msra.mxu0 0.0
    %1478 = vmatprep.subr.mxu0 0.0
    %1479 = vmatpush1.msra.mxu0 0.0
    %1480 = vmatprep.subr.mxu0 0.0
    %1481 = vmatpush1.msra.mxu0 0.0
    %1482 = vmatprep.subr.mxu0 0.0
    %1483 = vmatpush1.msra.mxu0 0.0
    %1484 = vmatprep.subr.mxu0 0.0
    %1485 = vmatpush1.msra.mxu0 0.0
    %1486 = vmatprep.subr.mxu0 0.0
    %1487 = vmatpush1.msra.mxu0 0.0
    %1488 = vmatprep.subr.mxu0 0.0
    %1489 = vmatpush1.msra.mxu0 0.0
    %1490 = vmatprep.subr.mxu0 0.0
    %1491 = vmatpush1.msra.mxu0 0.0
    %1492 = vmatprep.subr.mxu0 0.0
    %1493 = vmatpush1.msra.mxu0 0.0
    %1494 = vmatprep.subr.mxu0 0.0
    %1495 = vmatpush1.msra.mxu0 0.0
    %1496 = vmatprep.subr.mxu0 0.0
    %1497 = vmatpush1.msra.mxu0 0.0
    %1498 = vmatprep.subr.mxu0 0.0
    %1499 = vmatpush1.msra.mxu0 0.0
    %1500 = vmatprep.subr.mxu0 0.0
    %1501 = vmatpush1.msra.mxu0 0.0
    %1502 = vmatprep.subr.mxu0 0.0
    %1503 = vmatpush1.msra.mxu0 0.0
    %1504 = vmatprep.subr.mxu0 0.0
    %1505 = vmatpush1.msra.mxu0 0.0
    %1506 = vmatprep.subr.mxu0 0.0
    %1507 = vmatpush1.msra.mxu0 0.0
    %1508 = vmatprep.subr.mxu0 0.0
    %1509 = vmatpush1.msra.mxu0 0.0
    %1510 = vmatprep.subr.mxu0 0.0
    %1511 = vmatpush1.msra.mxu0 0.0
    %1512 = vmatprep.subr.mxu0 0.0
    %1513 = vmatpush1.msra.mxu0 0.0
    %1514 = vmatprep.subr.mxu0 0.0
    %1515 = vmatpush1.msra.mxu0 0.0
    %1516 = vmatprep.mubr.f32.mxu0 0.0
    %1517 = vmatmul.mubr.f32.gmra.mrb[0].mxu0 %v1450
    %v1518 = vpop.f32.mrb[0].mxu0
    %v1519 = vadd.f32 %v1165, %v1518
    %v1520 = vpop.f32.mrb[0].mxu0
    %1521 = vdwg.mxu0
    %v1523 = vsel %vm83, %v1004, 0
    %1525 = vmatprep.subr.mxu0 0.0
    %1526 = vmatpush1.msra.mxu0 %v1024
    %1527 = vmatprep.subr.mxu0 0.0
    %1528 = vmatpush1.msra.mxu0 %v1025
    %1529 = vmatprep.subr.mxu0 0.0
    %1530 = vmatpush1.msra.mxu0 0.0
    %1531 = vmatprep.subr.mxu0 0.0
    %1532 = vmatpush1.msra.mxu0 0.0
    %1533 = vmatprep.subr.mxu0 0.0
    %1534 = vmatpush1.msra.mxu0 0.0
    %1535 = vmatprep.subr.mxu0 0.0
    %1536 = vmatpush1.msra.mxu0 0.0
    %1537 = vmatprep.subr.mxu0 0.0
    %1538 = vmatpush1.msra.mxu0 0.0
    %1539 = vmatprep.subr.mxu0 0.0
    %1540 = vmatpush1.msra.mxu0 0.0
    %1541 = vmatprep.subr.mxu0 0.0
    %1542 = vmatpush1.msra.mxu0 0.0
    %1543 = vmatprep.subr.mxu0 0.0
    %1544 = vmatpush1.msra.mxu0 0.0
    %1545 = vmatprep.subr.mxu0 0.0
    %1546 = vmatpush1.msra.mxu0 0.0
    %1547 = vmatprep.subr.mxu0 0.0
    %1548 = vmatpush1.msra.mxu0 0.0
    %1549 = vmatprep.subr.mxu0 0.0
    %1550 = vmatpush1.msra.mxu0 0.0
    %1551 = vmatprep.subr.mxu0 0.0
    %1552 = vmatpush1.msra.mxu0 0.0
    %1553 = vmatprep.subr.mxu0 0.0
    %1554 = vmatpush1.msra.mxu0 0.0
    %1555 = vmatprep.subr.mxu0 0.0
    %1556 = vmatpush1.msra.mxu0 0.0
    %1557 = vmatprep.subr.mxu0 0.0
    %1558 = vmatpush1.msra.mxu0 0.0
    %1559 = vmatprep.subr.mxu0 0.0
    %1560 = vmatpush1.msra.mxu0 0.0
    %1561 = vmatprep.subr.mxu0 0.0
    %1562 = vmatpush1.msra.mxu0 0.0
    %1563 = vmatprep.subr.mxu0 0.0
    %1564 = vmatpush1.msra.mxu0 0.0
    %1565 = vmatprep.subr.mxu0 0.0
    %1566 = vmatpush1.msra.mxu0 0.0
    %1567 = vmatprep.subr.mxu0 0.0
    %1568 = vmatpush1.msra.mxu0 0.0
    %1569 = vmatprep.subr.mxu0 0.0
    %1570 = vmatpush1.msra.mxu0 0.0
    %1571 = vmatprep.subr.mxu0 0.0
    %1572 = vmatpush1.msra.mxu0 0.0
    %1573 = vmatprep.subr.mxu0 0.0
    %1574 = vmatpush1.msra.mxu0 0.0
    %1575 = vmatprep.subr.mxu0 0.0
    %1576 = vmatpush1.msra.mxu0 0.0
    %1577 = vmatprep.subr.mxu0 0.0
    %1578 = vmatpush1.msra.mxu0 0.0
    %1579 = vmatprep.subr.mxu0 0.0
    %1580 = vmatpush1.msra.mxu0 0.0
    %1581 = vmatprep.subr.mxu0 0.0
    %1582 = vmatpush1.msra.mxu0 0.0
    %1583 = vmatprep.subr.mxu0 0.0
    %1584 = vmatpush1.msra.mxu0 0.0
    %1585 = vmatprep.subr.mxu0 0.0
    %1586 = vmatpush1.msra.mxu0 0.0
    %1587 = vmatprep.subr.mxu0 0.0
    %1588 = vmatpush1.msra.mxu0 0.0
    %1589 = vmatprep.mubr.f32.mxu0 0.0
    %1590 = vmatmul.mubr.f32.gmra.mrb[0].mxu0 %v1523
    %v1591 = vpop.f32.mrb[0].mxu0
    %v1592 = vadd.f32 %v1169, %v1591
    %v1593 = vpop.f32.mrb[0].mxu0
    %1594 = vdwg.mxu0
    %v1596 = vsel %vm83, %v1005, 0
    %1598 = vmatprep.subr.mxu0 0.0
    %1599 = vmatpush1.msra.mxu0 %v1026
    %1600 = vmatprep.subr.mxu0 0.0
    %1601 = vmatpush1.msra.mxu0 %v1027
    %1602 = vmatprep.subr.mxu0 0.0
    %1603 = vmatpush1.msra.mxu0 0.0
    %1604 = vmatprep.subr.mxu0 0.0
    %1605 = vmatpush1.msra.mxu0 0.0
    %1606 = vmatprep.subr.mxu0 0.0
    %1607 = vmatpush1.msra.mxu0 0.0
    %1608 = vmatprep.subr.mxu0 0.0
    %1609 = vmatpush1.msra.mxu0 0.0
    %1610 = vmatprep.subr.mxu0 0.0
    %1611 = vmatpush1.msra.mxu0 0.0
    %1612 = vmatprep.subr.mxu0 0.0
    %1613 = vmatpush1.msra.mxu0 0.0
    %1614 = vmatprep.subr.mxu0 0.0
    %1615 = vmatpush1.msra.mxu0 0.0
    %1616 = vmatprep.subr.mxu0 0.0
    %1617 = vmatpush1.msra.mxu0 0.0
    %1618 = vmatprep.subr.mxu0 0.0
    %1619 = vmatpush1.msra.mxu0 0.0
    %1620 = vmatprep.subr.mxu0 0.0
    %1621 = vmatpush1.msra.mxu0 0.0
    %1622 = vmatprep.subr.mxu0 0.0
    %1623 = vmatpush1.msra.mxu0 0.0
    %1624 = vmatprep.subr.mxu0 0.0
    %1625 = vmatpush1.msra.mxu0 0.0
    %1626 = vmatprep.subr.mxu0 0.0
    %1627 = vmatpush1.msra.mxu0 0.0
    %1628 = vmatprep.subr.mxu0 0.0
    %1629 = vmatpush1.msra.mxu0 0.0
    %1630 = vmatprep.subr.mxu0 0.0
    %1631 = vmatpush1.msra.mxu0 0.0
    %1632 = vmatprep.subr.mxu0 0.0
    %1633 = vmatpush1.msra.mxu0 0.0
    %1634 = vmatprep.subr.mxu0 0.0
    %1635 = vmatpush1.msra.mxu0 0.0
    %1636 = vmatprep.subr.mxu0 0.0
    %1637 = vmatpush1.msra.mxu0 0.0
    %1638 = vmatprep.subr.mxu0 0.0
    %1639 = vmatpush1.msra.mxu0 0.0
    %1640 = vmatprep.subr.mxu0 0.0
    %1641 = vmatpush1.msra.mxu0 0.0
    %1642 = vmatprep.subr.mxu0 0.0
    %1643 = vmatpush1.msra.mxu0 0.0
    %1644 = vmatprep.subr.mxu0 0.0
    %1645 = vmatpush1.msra.mxu0 0.0
    %1646 = vmatprep.subr.mxu0 0.0
    %1647 = vmatpush1.msra.mxu0 0.0
    %1648 = vmatprep.subr.mxu0 0.0
    %1649 = vmatpush1.msra.mxu0 0.0
    %1650 = vmatprep.subr.mxu0 0.0
    %1651 = vmatpush1.msra.mxu0 0.0
    %1652 = vmatprep.subr.mxu0 0.0
    %1653 = vmatpush1.msra.mxu0 0.0
    %1654 = vmatprep.subr.mxu0 0.0
    %1655 = vmatpush1.msra.mxu0 0.0
    %1656 = vmatprep.subr.mxu0 0.0
    %1657 = vmatpush1.msra.mxu0 0.0
    %1658 = vmatprep.subr.mxu0 0.0
    %1659 = vmatpush1.msra.mxu0 0.0
    %1660 = vmatprep.subr.mxu0 0.0
    %1661 = vmatpush1.msra.mxu0 0.0
    %1662 = vmatprep.mubr.f32.mxu0 0.0
    %1663 = vmatmul.mubr.f32.gmra.mrb[0].mxu0 %v1596
    %v1664 = vpop.f32.mrb[0].mxu0
    %v1665 = vadd.f32 %v1173, %v1664
    %v1666 = vpop.f32.mrb[0].mxu0
    %1667 = vdwg.mxu0
    %v1669 = vsel %vm83, %v1006, 0
    %1671 = vmatprep.subr.mxu0 0.0
    %1672 = vmatpush1.msra.mxu0 %v1028
    %1673 = vmatprep.subr.mxu0 0.0
    %1674 = vmatpush1.msra.mxu0 %v1029
    %1675 = vmatprep.subr.mxu0 0.0
    %1676 = vmatpush1.msra.mxu0 0.0
    %1677 = vmatprep.subr.mxu0 0.0
    %1678 = vmatpush1.msra.mxu0 0.0
    %1679 = vmatprep.subr.mxu0 0.0
    %1680 = vmatpush1.msra.mxu0 0.0
    %1681 = vmatprep.subr.mxu0 0.0
    %1682 = vmatpush1.msra.mxu0 0.0
    %1683 = vmatprep.subr.mxu0 0.0
    %1684 = vmatpush1.msra.mxu0 0.0
    %1685 = vmatprep.subr.mxu0 0.0
    %1686 = vmatpush1.msra.mxu0 0.0
    %1687 = vmatprep.subr.mxu0 0.0
    %1688 = vmatpush1.msra.mxu0 0.0
    %1689 = vmatprep.subr.mxu0 0.0
    %1690 = vmatpush1.msra.mxu0 0.0
    %1691 = vmatprep.subr.mxu0 0.0
    %1692 = vmatpush1.msra.mxu0 0.0
    %1693 = vmatprep.subr.mxu0 0.0
    %1694 = vmatpush1.msra.mxu0 0.0
    %1695 = vmatprep.subr.mxu0 0.0
    %1696 = vmatpush1.msra.mxu0 0.0
    %1697 = vmatprep.subr.mxu0 0.0
    %1698 = vmatpush1.msra.mxu0 0.0
    %1699 = vmatprep.subr.mxu0 0.0
    %1700 = vmatpush1.msra.mxu0 0.0
    %1701 = vmatprep.subr.mxu0 0.0
    %1702 = vmatpush1.msra.mxu0 0.0
    %1703 = vmatprep.subr.mxu0 0.0
    %1704 = vmatpush1.msra.mxu0 0.0
    %1705 = vmatprep.subr.mxu0 0.0
    %1706 = vmatpush1.msra.mxu0 0.0
    %1707 = vmatprep.subr.mxu0 0.0
    %1708 = vmatpush1.msra.mxu0 0.0
    %1709 = vmatprep.subr.mxu0 0.0
    %1710 = vmatpush1.msra.mxu0 0.0
    %1711 = vmatprep.subr.mxu0 0.0
    %1712 = vmatpush1.msra.mxu0 0.0
    %1713 = vmatprep.subr.mxu0 0.0
    %1714 = vmatpush1.msra.mxu0 0.0
    %1715 = vmatprep.subr.mxu0 0.0
    %1716 = vmatpush1.msra.mxu0 0.0
    %1717 = vmatprep.subr.mxu0 0.0
    %1718 = vmatpush1.msra.mxu0 0.0
    %1719 = vmatprep.subr.mxu0 0.0
    %1720 = vmatpush1.msra.mxu0 0.0
    %1721 = vmatprep.subr.mxu0 0.0
    %1722 = vmatpush1.msra.mxu0 0.0
    %1723 = vmatprep.subr.mxu0 0.0
    %1724 = vmatpush1.msra.mxu0 0.0
    %1725 = vmatprep.subr.mxu0 0.0
    %1726 = vmatpush1.msra.mxu0 0.0
    %1727 = vmatprep.subr.mxu0 0.0
    %1728 = vmatpush1.msra.mxu0 0.0
    %1729 = vmatprep.subr.mxu0 0.0
    %1730 = vmatpush1.msra.mxu0 0.0
    %1731 = vmatprep.subr.mxu0 0.0
    %1732 = vmatpush1.msra.mxu0 0.0
    %1733 = vmatprep.subr.mxu0 0.0
    %1734 = vmatpush1.msra.mxu0 0.0
    %1735 = vmatprep.mubr.f32.mxu0 0.0
    %1736 = vmatmul.mubr.f32.gmra.mrb[0].mxu0 %v1669
    %v1737 = vpop.f32.mrb[0].mxu0
    %v1738 = vadd.f32 %v1177, %v1737
    %v1739 = vpop.f32.mrb[0].mxu0
    %1740 = vdwg.mxu0
    %v1742 = vsel %vm83, %v1007, 0
    %1744 = vmatprep.subr.mxu0 0.0
    %1745 = vmatpush1.msra.mxu0 %v1030
    %1746 = vmatprep.subr.mxu0 0.0
    %1747 = vmatpush1.msra.mxu0 %v1031
    %1748 = vmatprep.subr.mxu0 0.0
    %1749 = vmatpush1.msra.mxu0 0.0
    %1750 = vmatprep.subr.mxu0 0.0
    %1751 = vmatpush1.msra.mxu0 0.0
    %1752 = vmatprep.subr.mxu0 0.0
    %1753 = vmatpush1.msra.mxu0 0.0
    %1754 = vmatprep.subr.mxu0 0.0
    %1755 = vmatpush1.msra.mxu0 0.0
    %1756 = vmatprep.subr.mxu0 0.0
    %1757 = vmatpush1.msra.mxu0 0.0
    %1758 = vmatprep.subr.mxu0 0.0
    %1759 = vmatpush1.msra.mxu0 0.0
    %1760 = vmatprep.subr.mxu0 0.0
    %1761 = vmatpush1.msra.mxu0 0.0
    %1762 = vmatprep.subr.mxu0 0.0
    %1763 = vmatpush1.msra.mxu0 0.0
    %1764 = vmatprep.subr.mxu0 0.0
    %1765 = vmatpush1.msra.mxu0 0.0
    %1766 = vmatprep.subr.mxu0 0.0
    %1767 = vmatpush1.msra.mxu0 0.0
    %1768 = vmatprep.subr.mxu0 0.0
    %1769 = vmatpush1.msra.mxu0 0.0
    %1770 = vmatprep.subr.mxu0 0.0
    %1771 = vmatpush1.msra.mxu0 0.0
    %1772 = vmatprep.subr.mxu0 0.0
    %1773 = vmatpush1.msra.mxu0 0.0
    %1774 = vmatprep.subr.mxu0 0.0
    %1775 = vmatpush1.msra.mxu0 0.0
    %1776 = vmatprep.subr.mxu0 0.0
    %1777 = vmatpush1.msra.mxu0 0.0
    %1778 = vmatprep.subr.mxu0 0.0
    %1779 = vmatpush1.msra.mxu0 0.0
    %1780 = vmatprep.subr.mxu0 0.0
    %1781 = vmatpush1.msra.mxu0 0.0
    %1782 = vmatprep.subr.mxu0 0.0
    %1783 = vmatpush1.msra.mxu0 0.0
    %1784 = vmatprep.subr.mxu0 0.0
    %1785 = vmatpush1.msra.mxu0 0.0
    %1786 = vmatprep.subr.mxu0 0.0
    %1787 = vmatpush1.msra.mxu0 0.0
    %1788 = vmatprep.subr.mxu0 0.0
    %1789 = vmatpush1.msra.mxu0 0.0
    %1790 = vmatprep.subr.mxu0 0.0
    %1791 = vmatpush1.msra.mxu0 0.0
    %1792 = vmatprep.subr.mxu0 0.0
    %1793 = vmatpush1.msra.mxu0 0.0
    %1794 = vmatprep.subr.mxu0 0.0
    %1795 = vmatpush1.msra.mxu0 0.0
    %1796 = vmatprep.subr.mxu0 0.0
    %1797 = vmatpush1.msra.mxu0 0.0
    %1798 = vmatprep.subr.mxu0 0.0
    %1799 = vmatpush1.msra.mxu0 0.0
    %1800 = vmatprep.subr.mxu0 0.0
    %1801 = vmatpush1.msra.mxu0 0.0
    %1802 = vmatprep.subr.mxu0 0.0
    %1803 = vmatpush1.msra.mxu0 0.0
    %1804 = vmatprep.subr.mxu0 0.0
    %1805 = vmatpush1.msra.mxu0 0.0
    %1806 = vmatprep.subr.mxu0 0.0
    %1807 = vmatpush1.msra.mxu0 0.0
    %1808 = vmatprep.mubr.f32.mxu0 0.0
    %1809 = vmatmul.mubr.f32.gmra.mrb[0].mxu0 %v1742
    %v1810 = vpop.f32.mrb[0].mxu0
    %v1811 = vadd.f32 %v1181, %v1810
    %v1812 = vpop.f32.mrb[0].mxu0
    %1813 = vdwg.mxu0
    %v1815 = vsel %vm83, %v1008, 0
    %1817 = vmatprep.subr.mxu0 0.0
    %1818 = vmatpush1.msra.mxu0 %v1032
    %1819 = vmatprep.subr.mxu0 0.0
    %1820 = vmatpush1.msra.mxu0 %v1033
    %1821 = vmatprep.subr.mxu0 0.0
    %1822 = vmatpush1.msra.mxu0 0.0
    %1823 = vmatprep.subr.mxu0 0.0
    %1824 = vmatpush1.msra.mxu0 0.0
    %1825 = vmatprep.subr.mxu0 0.0
    %1826 = vmatpush1.msra.mxu0 0.0
    %1827 = vmatprep.subr.mxu0 0.0
    %1828 = vmatpush1.msra.mxu0 0.0
    %1829 = vmatprep.subr.mxu0 0.0
    %1830 = vmatpush1.msra.mxu0 0.0
    %1831 = vmatprep.subr.mxu0 0.0
    %1832 = vmatpush1.msra.mxu0 0.0
    %1833 = vmatprep.subr.mxu0 0.0
    %1834 = vmatpush1.msra.mxu0 0.0
    %1835 = vmatprep.subr.mxu0 0.0
    %1836 = vmatpush1.msra.mxu0 0.0
    %1837 = vmatprep.subr.mxu0 0.0
    %1838 = vmatpush1.msra.mxu0 0.0
    %1839 = vmatprep.subr.mxu0 0.0
    %1840 = vmatpush1.msra.mxu0 0.0
    %1841 = vmatprep.subr.mxu0 0.0
    %1842 = vmatpush1.msra.mxu0 0.0
    %1843 = vmatprep.subr.mxu0 0.0
    %1844 = vmatpush1.msra.mxu0 0.0
    %1845 = vmatprep.subr.mxu0 0.0
    %1846 = vmatpush1.msra.mxu0 0.0
    %1847 = vmatprep.subr.mxu0 0.0
    %1848 = vmatpush1.msra.mxu0 0.0
    %1849 = vmatprep.subr.mxu0 0.0
    %1850 = vmatpush1.msra.mxu0 0.0
    %1851 = vmatprep.subr.mxu0 0.0
    %1852 = vmatpush1.msra.mxu0 0.0
    %1853 = vmatprep.subr.mxu0 0.0
    %1854 = vmatpush1.msra.mxu0 0.0
    %1855 = vmatprep.subr.mxu0 0.0
    %1856 = vmatpush1.msra.mxu0 0.0
    %1857 = vmatprep.subr.mxu0 0.0
    %1858 = vmatpush1.msra.mxu0 0.0
    %1859 = vmatprep.subr.mxu0 0.0
    %1860 = vmatpush1.msra.mxu0 0.0
    %1861 = vmatprep.subr.mxu0 0.0
    %1862 = vmatpush1.msra.mxu0 0.0
    %1863 = vmatprep.subr.mxu0 0.0
    %1864 = vmatpush1.msra.mxu0 0.0
    %1865 = vmatprep.subr.mxu0 0.0
    %1866 = vmatpush1.msra.mxu0 0.0
    %1867 = vmatprep.subr.mxu0 0.0
    %1868 = vmatpush1.msra.mxu0 0.0
    %1869 = vmatprep.subr.mxu0 0.0
    %1870 = vmatpush1.msra.mxu0 0.0
    %1871 = vmatprep.subr.mxu0 0.0
    %1872 = vmatpush1.msra.mxu0 0.0
    %1873 = vmatprep.subr.mxu0 0.0
    %1874 = vmatpush1.msra.mxu0 0.0
    %1875 = vmatprep.subr.mxu0 0.0
    %1876 = vmatpush1.msra.mxu0 0.0
    %1877 = vmatprep.subr.mxu0 0.0
    %1878 = vmatpush1.msra.mxu0 0.0
    %1879 = vmatprep.subr.mxu0 0.0
    %1880 = vmatpush1.msra.mxu0 0.0
    %1881 = vmatprep.mubr.f32.mxu0 0.0
    %1882 = vmatmul.mubr.f32.gmra.mrb[0].mxu0 %v1815
    %v1883 = vpop.f32.mrb[0].mxu0
    %v1884 = vadd.f32 %v1185, %v1883
    %v1885 = vpop.f32.mrb[0].mxu0
    %1886 = vdwg.mxu0
    %v1888 = vsel %vm83, %v1009, 0
    %1890 = vmatprep.subr.mxu0 0.0
    %1891 = vmatpush1.msra.mxu0 %v1034
    %1892 = vmatprep.subr.mxu0 0.0
    %1893 = vmatpush1.msra.mxu0 %v1035
    %1894 = vmatprep.subr.mxu0 0.0
    %1895 = vmatpush1.msra.mxu0 0.0
    %1896 = vmatprep.subr.mxu0 0.0
    %1897 = vmatpush1.msra.mxu0 0.0
    %1898 = vmatprep.subr.mxu0 0.0
    %1899 = vmatpush1.msra.mxu0 0.0
    %1900 = vmatprep.subr.mxu0 0.0
    %1901 = vmatpush1.msra.mxu0 0.0
    %1902 = vmatprep.subr.mxu0 0.0
    %1903 = vmatpush1.msra.mxu0 0.0
    %1904 = vmatprep.subr.mxu0 0.0
    %1905 = vmatpush1.msra.mxu0 0.0
    %1906 = vmatprep.subr.mxu0 0.0
    %1907 = vmatpush1.msra.mxu0 0.0
    %1908 = vmatprep.subr.mxu0 0.0
    %1909 = vmatpush1.msra.mxu0 0.0
    %1910 = vmatprep.subr.mxu0 0.0
    %1911 = vmatpush1.msra.mxu0 0.0
    %1912 = vmatprep.subr.mxu0 0.0
    %1913 = vmatpush1.msra.mxu0 0.0
    %1914 = vmatprep.subr.mxu0 0.0
    %1915 = vmatpush1.msra.mxu0 0.0
    %1916 = vmatprep.subr.mxu0 0.0
    %1917 = vmatpush1.msra.mxu0 0.0
    %1918 = vmatprep.subr.mxu0 0.0
    %1919 = vmatpush1.msra.mxu0 0.0
    %1920 = vmatprep.subr.mxu0 0.0
    %1921 = vmatpush1.msra.mxu0 0.0
    %1922 = vmatprep.subr.mxu0 0.0
    %1923 = vmatpush1.msra.mxu0 0.0
    %1924 = vmatprep.subr.mxu0 0.0
    %1925 = vmatpush1.msra.mxu0 0.0
    %1926 = vmatprep.subr.mxu0 0.0
    %1927 = vmatpush1.msra.mxu0 0.0
    %1928 = vmatprep.subr.mxu0 0.0
    %1929 = vmatpush1.msra.mxu0 0.0
    %1930 = vmatprep.subr.mxu0 0.0
    %1931 = vmatpush1.msra.mxu0 0.0
    %1932 = vmatprep.subr.mxu0 0.0
    %1933 = vmatpush1.msra.mxu0 0.0
    %1934 = vmatprep.subr.mxu0 0.0
    %1935 = vmatpush1.msra.mxu0 0.0
    %1936 = vmatprep.subr.mxu0 0.0
    %1937 = vmatpush1.msra.mxu0 0.0
    %1938 = vmatprep.subr.mxu0 0.0
    %1939 = vmatpush1.msra.mxu0 0.0
    %1940 = vmatprep.subr.mxu0 0.0
    %1941 = vmatpush1.msra.mxu0 0.0
    %1942 = vmatprep.subr.mxu0 0.0
    %1943 = vmatpush1.msra.mxu0 0.0
    %1944 = vmatprep.subr.mxu0 0.0
    %1945 = vmatpush1.msra.mxu0 0.0
    %1946 = vmatprep.subr.mxu0 0.0
    %1947 = vmatpush1.msra.mxu0 0.0
    %1948 = vmatprep.subr.mxu0 0.0
    %1949 = vmatpush1.msra.mxu0 0.0
    %1950 = vmatprep.subr.mxu0 0.0
    %1951 = vmatpush1.msra.mxu0 0.0
    %1952 = vmatprep.subr.mxu0 0.0
    %1953 = vmatpush1.msra.mxu0 0.0
    %1954 = vmatprep.mubr.f32.mxu0 0.0
    %1955 = vmatmul.mubr.f32.gmra.mrb[0].mxu0 %v1888
    %v1956 = vpop.f32.mrb[0].mxu0
    %v1957 = vadd.f32 %v1189, %v1956
    %v1958 = vpop.f32.mrb[0].mxu0
    %1959 = vdwg.mxu0
    %v1961 = vsel %vm83, %v1010, 0
    %1963 = vmatprep.subr.mxu0 0.0
    %1964 = vmatpush1.msra.mxu0 %v1036
    %1965 = vmatprep.subr.mxu0 0.0
    %1966 = vmatpush1.msra.mxu0 %v1037
    %1967 = vmatprep.subr.mxu0 0.0
    %1968 = vmatpush1.msra.mxu0 0.0
    %1969 = vmatprep.subr.mxu0 0.0
    %1970 = vmatpush1.msra.mxu0 0.0
    %1971 = vmatprep.subr.mxu0 0.0
    %1972 = vmatpush1.msra.mxu0 0.0
    %1973 = vmatprep.subr.mxu0 0.0
    %1974 = vmatpush1.msra.mxu0 0.0
    %1975 = vmatprep.subr.mxu0 0.0
    %1976 = vmatpush1.msra.mxu0 0.0
    %1977 = vmatprep.subr.mxu0 0.0
    %1978 = vmatpush1.msra.mxu0 0.0
    %1979 = vmatprep.subr.mxu0 0.0
    %1980 = vmatpush1.msra.mxu0 0.0
    %1981 = vmatprep.subr.mxu0 0.0
    %1982 = vmatpush1.msra.mxu0 0.0
    %1983 = vmatprep.subr.mxu0 0.0
    %1984 = vmatpush1.msra.mxu0 0.0
    %1985 = vmatprep.subr.mxu0 0.0
    %1986 = vmatpush1.msra.mxu0 0.0
    %1987 = vmatprep.subr.mxu0 0.0
    %1988 = vmatpush1.msra.mxu0 0.0
    %1989 = vmatprep.subr.mxu0 0.0
    %1990 = vmatpush1.msra.mxu0 0.0
    %1991 = vmatprep.subr.mxu0 0.0
    %1992 = vmatpush1.msra.mxu0 0.0
    %1993 = vmatprep.subr.mxu0 0.0
    %1994 = vmatpush1.msra.mxu0 0.0
    %1995 = vmatprep.subr.mxu0 0.0
    %1996 = vmatpush1.msra.mxu0 0.0
    %1997 = vmatprep.subr.mxu0 0.0
    %1998 = vmatpush1.msra.mxu0 0.0
    %1999 = vmatprep.subr.mxu0 0.0
    %2000 = vmatpush1.msra.mxu0 0.0
    %2001 = vmatprep.subr.mxu0 0.0
    %2002 = vmatpush1.msra.mxu0 0.0
    %2003 = vmatprep.subr.mxu0 0.0
    %2004 = vmatpush1.msra.mxu0 0.0
    %2005 = vmatprep.subr.mxu0 0.0
    %2006 = vmatpush1.msra.mxu0 0.0
    %2007 = vmatprep.subr.mxu0 0.0
    %2008 = vmatpush1.msra.mxu0 0.0
    %2009 = vmatprep.subr.mxu0 0.0
    %2010 = vmatpush1.msra.mxu0 0.0
    %2011 = vmatprep.subr.mxu0 0.0
    %2012 = vmatpush1.msra.mxu0 0.0
    %2013 = vmatprep.subr.mxu0 0.0
    %2014 = vmatpush1.msra.mxu0 0.0
    %2015 = vmatprep.subr.mxu0 0.0
    %2016 = vmatpush1.msra.mxu0 0.0
    %2017 = vmatprep.subr.mxu0 0.0
    %2018 = vmatpush1.msra.mxu0 0.0
    %2019 = vmatprep.subr.mxu0 0.0
    %2020 = vmatpush1.msra.mxu0 0.0
    %2021 = vmatprep.subr.mxu0 0.0
    %2022 = vmatpush1.msra.mxu0 0.0
    %2023 = vmatprep.subr.mxu0 0.0
    %2024 = vmatpush1.msra.mxu0 0.0
    %2025 = vmatprep.subr.mxu0 0.0
    %2026 = vmatpush1.msra.mxu0 0.0
    %2027 = vmatprep.mubr.f32.mxu0 0.0
    %2028 = vmatmul.mubr.f32.gmra.mrb[0].mxu0 %v1961
    %v2029 = vpop.f32.mrb[0].mxu0
    %v2030 = vadd.f32 %v1193, %v2029
    %v2031 = vpop.f32.mrb[0].mxu0
    %2032 = vdwg.mxu0
    %v2034 = vsel %vm83, %v1011, 0
    %2036 = vmatprep.subr.mxu0 0.0
    %2037 = vmatpush1.msra.mxu0 %v1038
    %2038 = vmatprep.subr.mxu0 0.0
    %2039 = vmatpush1.msra.mxu0 %v1039
    %2040 = vmatprep.subr.mxu0 0.0
    %2041 = vmatpush1.msra.mxu0 0.0
    %2042 = vmatprep.subr.mxu0 0.0
    %2043 = vmatpush1.msra.mxu0 0.0
    %2044 = vmatprep.subr.mxu0 0.0
    %2045 = vmatpush1.msra.mxu0 0.0
    %2046 = vmatprep.subr.mxu0 0.0
    %2047 = vmatpush1.msra.mxu0 0.0
    %2048 = vmatprep.subr.mxu0 0.0
    %2049 = vmatpush1.msra.mxu0 0.0
    %2050 = vmatprep.subr.mxu0 0.0
    %2051 = vmatpush1.msra.mxu0 0.0
    %2052 = vmatprep.subr.mxu0 0.0
    %2053 = vmatpush1.msra.mxu0 0.0
    %2054 = vmatprep.subr.mxu0 0.0
    %2055 = vmatpush1.msra.mxu0 0.0
    %2056 = vmatprep.subr.mxu0 0.0
    %2057 = vmatpush1.msra.mxu0 0.0
    %2058 = vmatprep.subr.mxu0 0.0
    %2059 = vmatpush1.msra.mxu0 0.0
    %2060 = vmatprep.subr.mxu0 0.0
    %2061 = vmatpush1.msra.mxu0 0.0
    %2062 = vmatprep.subr.mxu0 0.0
    %2063 = vmatpush1.msra.mxu0 0.0
    %2064 = vmatprep.subr.mxu0 0.0
    %2065 = vmatpush1.msra.mxu0 0.0
    %2066 = vmatprep.subr.mxu0 0.0
    %2067 = vmatpush1.msra.mxu0 0.0
    %2068 = vmatprep.subr.mxu0 0.0
    %2069 = vmatpush1.msra.mxu0 0.0
    %2070 = vmatprep.subr.mxu0 0.0
    %2071 = vmatpush1.msra.mxu0 0.0
    %2072 = vmatprep.subr.mxu0 0.0
    %2073 = vmatpush1.msra.mxu0 0.0
    %2074 = vmatprep.subr.mxu0 0.0
    %2075 = vmatpush1.msra.mxu0 0.0
    %2076 = vmatprep.subr.mxu0 0.0
    %2077 = vmatpush1.msra.mxu0 0.0
    %2078 = vmatprep.subr.mxu0 0.0
    %2079 = vmatpush1.msra.mxu0 0.0
    %2080 = vmatprep.subr.mxu0 0.0
    %2081 = vmatpush1.msra.mxu0 0.0
    %2082 = vmatprep.subr.mxu0 0.0
    %2083 = vmatpush1.msra.mxu0 0.0
    %2084 = vmatprep.subr.mxu0 0.0
    %2085 = vmatpush1.msra.mxu0 0.0
    %2086 = vmatprep.subr.mxu0 0.0
    %2087 = vmatpush1.msra.mxu0 0.0
    %2088 = vmatprep.subr.mxu0 0.0
    %2089 = vmatpush1.msra.mxu0 0.0
    %2090 = vmatprep.subr.mxu0 0.0
    %2091 = vmatpush1.msra.mxu0 0.0
    %2092 = vmatprep.subr.mxu0 0.0
    %2093 = vmatpush1.msra.mxu0 0.0
    %2094 = vmatprep.subr.mxu0 0.0
    %2095 = vmatpush1.msra.mxu0 0.0
    %2096 = vmatprep.subr.mxu0 0.0
    %2097 = vmatpush1.msra.mxu0 0.0
    %2098 = vmatprep.subr.mxu0 0.0
    %2099 = vmatpush1.msra.mxu0 0.0
    %2100 = vmatprep.mubr.f32.mxu0 0.0
    %2101 = vmatmul.mubr.f32.gmra.mrb[0].mxu0 %v2034
    %v2102 = vpop.f32.mrb[0].mxu0
    %v2103 = vadd.f32 %v1197, %v2102
    %v2104 = vpop.f32.mrb[0].mxu0
    %2105 = vdwg.mxu0
    %v2107 = vsel %vm83, %v1012, 0
    %2109 = vmatprep.subr.mxu0 0.0
    %2110 = vmatpush1.msra.mxu0 %v1040
    %2111 = vmatprep.subr.mxu0 0.0
    %2112 = vmatpush1.msra.mxu0 %v1041
    %2113 = vmatprep.subr.mxu0 0.0
    %2114 = vmatpush1.msra.mxu0 0.0
    %2115 = vmatprep.subr.mxu0 0.0
    %2116 = vmatpush1.msra.mxu0 0.0
    %2117 = vmatprep.subr.mxu0 0.0
    %2118 = vmatpush1.msra.mxu0 0.0
    %2119 = vmatprep.subr.mxu0 0.0
    %2120 = vmatpush1.msra.mxu0 0.0
    %2121 = vmatprep.subr.mxu0 0.0
    %2122 = vmatpush1.msra.mxu0 0.0
    %2123 = vmatprep.subr.mxu0 0.0
    %2124 = vmatpush1.msra.mxu0 0.0
    %2125 = vmatprep.subr.mxu0 0.0
    %2126 = vmatpush1.msra.mxu0 0.0
    %2127 = vmatprep.subr.mxu0 0.0
    %2128 = vmatpush1.msra.mxu0 0.0
    %2129 = vmatprep.subr.mxu0 0.0
    %2130 = vmatpush1.msra.mxu0 0.0
    %2131 = vmatprep.subr.mxu0 0.0
    %2132 = vmatpush1.msra.mxu0 0.0
    %2133 = vmatprep.subr.mxu0 0.0
    %2134 = vmatpush1.msra.mxu0 0.0
    %2135 = vmatprep.subr.mxu0 0.0
    %2136 = vmatpush1.msra.mxu0 0.0
    %2137 = vmatprep.subr.mxu0 0.0
    %2138 = vmatpush1.msra.mxu0 0.0
    %2139 = vmatprep.subr.mxu0 0.0
    %2140 = vmatpush1.msra.mxu0 0.0
    %2141 = vmatprep.subr.mxu0 0.0
    %2142 = vmatpush1.msra.mxu0 0.0
    %2143 = vmatprep.subr.mxu0 0.0
    %2144 = vmatpush1.msra.mxu0 0.0
    %2145 = vmatprep.subr.mxu0 0.0
    %2146 = vmatpush1.msra.mxu0 0.0
    %2147 = vmatprep.subr.mxu0 0.0
    %2148 = vmatpush1.msra.mxu0 0.0
    %2149 = vmatprep.subr.mxu0 0.0
    %2150 = vmatpush1.msra.mxu0 0.0
    %2151 = vmatprep.subr.mxu0 0.0
    %2152 = vmatpush1.msra.mxu0 0.0
    %2153 = vmatprep.subr.mxu0 0.0
    %2154 = vmatpush1.msra.mxu0 0.0
    %2155 = vmatprep.subr.mxu0 0.0
    %2156 = vmatpush1.msra.mxu0 0.0
    %2157 = vmatprep.subr.mxu0 0.0
    %2158 = vmatpush1.msra.mxu0 0.0
    %2159 = vmatprep.subr.mxu0 0.0
    %2160 = vmatpush1.msra.mxu0 0.0
    %2161 = vmatprep.subr.mxu0 0.0
    %2162 = vmatpush1.msra.mxu0 0.0
    %2163 = vmatprep.subr.mxu0 0.0
    %2164 = vmatpush1.msra.mxu0 0.0
    %2165 = vmatprep.subr.mxu0 0.0
    %2166 = vmatpush1.msra.mxu0 0.0
    %2167 = vmatprep.subr.mxu0 0.0
    %2168 = vmatpush1.msra.mxu0 0.0
    %2169 = vmatprep.subr.mxu0 0.0
    %2170 = vmatpush1.msra.mxu0 0.0
    %2171 = vmatprep.subr.mxu0 0.0
    %2172 = vmatpush1.msra.mxu0 0.0
    %2173 = vmatprep.mubr.f32.mxu0 0.0
    %2174 = vmatmul.mubr.f32.gmra.mrb[0].mxu0 %v2107
    %v2175 = vpop.f32.mrb[0].mxu0
    %v2176 = vadd.f32 %v1201, %v2175
    %v2177 = vpop.f32.mrb[0].mxu0
    %2178 = vdwg.mxu0
    %v2180 = vsel %vm83, %v1013, 0
    %2182 = vmatprep.subr.mxu0 0.0
    %2183 = vmatpush1.msra.mxu0 %v1042
    %2184 = vmatprep.subr.mxu0 0.0
    %2185 = vmatpush1.msra.mxu0 %v1043
    %2186 = vmatprep.subr.mxu0 0.0
    %2187 = vmatpush1.msra.mxu0 0.0
    %2188 = vmatprep.subr.mxu0 0.0
    %2189 = vmatpush1.msra.mxu0 0.0
    %2190 = vmatprep.subr.mxu0 0.0
    %2191 = vmatpush1.msra.mxu0 0.0
    %2192 = vmatprep.subr.mxu0 0.0
    %2193 = vmatpush1.msra.mxu0 0.0
    %2194 = vmatprep.subr.mxu0 0.0
    %2195 = vmatpush1.msra.mxu0 0.0
    %2196 = vmatprep.subr.mxu0 0.0
    %2197 = vmatpush1.msra.mxu0 0.0
    %2198 = vmatprep.subr.mxu0 0.0
    %2199 = vmatpush1.msra.mxu0 0.0
    %2200 = vmatprep.subr.mxu0 0.0
    %2201 = vmatpush1.msra.mxu0 0.0
    %2202 = vmatprep.subr.mxu0 0.0
    %2203 = vmatpush1.msra.mxu0 0.0
    %2204 = vmatprep.subr.mxu0 0.0
    %2205 = vmatpush1.msra.mxu0 0.0
    %2206 = vmatprep.subr.mxu0 0.0
    %2207 = vmatpush1.msra.mxu0 0.0
    %2208 = vmatprep.subr.mxu0 0.0
    %2209 = vmatpush1.msra.mxu0 0.0
    %2210 = vmatprep.subr.mxu0 0.0
    %2211 = vmatpush1.msra.mxu0 0.0
    %2212 = vmatprep.subr.mxu0 0.0
    %2213 = vmatpush1.msra.mxu0 0.0
    %2214 = vmatprep.subr.mxu0 0.0
    %2215 = vmatpush1.msra.mxu0 0.0
    %2216 = vmatprep.subr.mxu0 0.0
    %2217 = vmatpush1.msra.mxu0 0.0
    %2218 = vmatprep.subr.mxu0 0.0
    %2219 = vmatpush1.msra.mxu0 0.0
    %2220 = vmatprep.subr.mxu0 0.0
    %2221 = vmatpush1.msra.mxu0 0.0
    %2222 = vmatprep.subr.mxu0 0.0
    %2223 = vmatpush1.msra.mxu0 0.0
    %2224 = vmatprep.subr.mxu0 0.0
    %2225 = vmatpush1.msra.mxu0 0.0
    %2226 = vmatprep.subr.mxu0 0.0
    %2227 = vmatpush1.msra.mxu0 0.0
    %2228 = vmatprep.subr.mxu0 0.0
    %2229 = vmatpush1.msra.mxu0 0.0
    %2230 = vmatprep.subr.mxu0 0.0
    %2231 = vmatpush1.msra.mxu0 0.0
    %2232 = vmatprep.subr.mxu0 0.0
    %2233 = vmatpush1.msra.mxu0 0.0
    %2234 = vmatprep.subr.mxu0 0.0
    %2235 = vmatpush1.msra.mxu0 0.0
    %2236 = vmatprep.subr.mxu0 0.0
    %2237 = vmatpush1.msra.mxu0 0.0
    %2238 = vmatprep.subr.mxu0 0.0
    %2239 = vmatpush1.msra.mxu0 0.0
    %2240 = vmatprep.subr.mxu0 0.0
    %2241 = vmatpush1.msra.mxu0 0.0
    %2242 = vmatprep.subr.mxu0 0.0
    %2243 = vmatpush1.msra.mxu0 0.0
    %2244 = vmatprep.subr.mxu0 0.0
    %2245 = vmatpush1.msra.mxu0 0.0
    %2246 = vmatprep.mubr.f32.mxu0 0.0
    %2247 = vmatmul.mubr.f32.gmra.mrb[0].mxu0 %v2180
    %v2248 = vpop.f32.mrb[0].mxu0
    %v2249 = vadd.f32 %v1205, %v2248
    %v2250 = vpop.f32.mrb[0].mxu0
    %2251 = vdwg.mxu0
    %v2253 = vsel %vm83, %v1014, 0
    %2255 = vmatprep.subr.mxu0 0.0
    %2256 = vmatpush1.msra.mxu0 %v1044
    %2257 = vmatprep.subr.mxu0 0.0
    %2258 = vmatpush1.msra.mxu0 %v1045
    %2259 = vmatprep.subr.mxu0 0.0
    %2260 = vmatpush1.msra.mxu0 0.0
    %2261 = vmatprep.subr.mxu0 0.0
    %2262 = vmatpush1.msra.mxu0 0.0
    %2263 = vmatprep.subr.mxu0 0.0
    %2264 = vmatpush1.msra.mxu0 0.0
    %2265 = vmatprep.subr.mxu0 0.0
    %2266 = vmatpush1.msra.mxu0 0.0
    %2267 = vmatprep.subr.mxu0 0.0
    %2268 = vmatpush1.msra.mxu0 0.0
    %2269 = vmatprep.subr.mxu0 0.0
    %2270 = vmatpush1.msra.mxu0 0.0
    %2271 = vmatprep.subr.mxu0 0.0
    %2272 = vmatpush1.msra.mxu0 0.0
    %2273 = vmatprep.subr.mxu0 0.0
    %2274 = vmatpush1.msra.mxu0 0.0
    %2275 = vmatprep.subr.mxu0 0.0
    %2276 = vmatpush1.msra.mxu0 0.0
    %2277 = vmatprep.subr.mxu0 0.0
    %2278 = vmatpush1.msra.mxu0 0.0
    %2279 = vmatprep.subr.mxu0 0.0
    %2280 = vmatpush1.msra.mxu0 0.0
    %2281 = vmatprep.subr.mxu0 0.0
    %2282 = vmatpush1.msra.mxu0 0.0
    %2283 = vmatprep.subr.mxu0 0.0
    %2284 = vmatpush1.msra.mxu0 0.0
    %2285 = vmatprep.subr.mxu0 0.0
    %2286 = vmatpush1.msra.mxu0 0.0
    %2287 = vmatprep.subr.mxu0 0.0
    %2288 = vmatpush1.msra.mxu0 0.0
    %2289 = vmatprep.subr.mxu0 0.0
    %2290 = vmatpush1.msra.mxu0 0.0
    %2291 = vmatprep.subr.mxu0 0.0
    %2292 = vmatpush1.msra.mxu0 0.0
    %2293 = vmatprep.subr.mxu0 0.0
    %2294 = vmatpush1.msra.mxu0 0.0
    %2295 = vmatprep.subr.mxu0 0.0
    %2296 = vmatpush1.msra.mxu0 0.0
    %2297 = vmatprep.subr.mxu0 0.0
    %2298 = vmatpush1.msra.mxu0 0.0
    %2299 = vmatprep.subr.mxu0 0.0
    %2300 = vmatpush1.msra.mxu0 0.0
    %2301 = vmatprep.subr.mxu0 0.0
    %2302 = vmatpush1.msra.mxu0 0.0
    %2303 = vmatprep.subr.mxu0 0.0
    %2304 = vmatpush1.msra.mxu0 0.0
    %2305 = vmatprep.subr.mxu0 0.0
    %2306 = vmatpush1.msra.mxu0 0.0
    %2307 = vmatprep.subr.mxu0 0.0
    %2308 = vmatpush1.msra.mxu0 0.0
    %2309 = vmatprep.subr.mxu0 0.0
    %2310 = vmatpush1.msra.mxu0 0.0
    %2311 = vmatprep.subr.mxu0 0.0
    %2312 = vmatpush1.msra.mxu0 0.0
    %2313 = vmatprep.subr.mxu0 0.0
    %2314 = vmatpush1.msra.mxu0 0.0
    %2315 = vmatprep.subr.mxu0 0.0
    %2316 = vmatpush1.msra.mxu0 0.0
    %2317 = vmatprep.subr.mxu0 0.0
    %2318 = vmatpush1.msra.mxu0 0.0
    %2319 = vmatprep.mubr.f32.mxu0 0.0
    %2320 = vmatmul.mubr.f32.gmra.mrb[0].mxu0 %v2253
    %v2321 = vpop.f32.mrb[0].mxu0
    %v2322 = vadd.f32 %v1209, %v2321
    %v2323 = vpop.f32.mrb[0].mxu0
    %2324 = vdwg.mxu0
    %v2326 = vsel %vm83, %v1015, 0
    %2328 = vmatprep.subr.mxu0 0.0
    %2329 = vmatpush1.msra.mxu0 %v1046
    %2330 = vmatprep.subr.mxu0 0.0
    %2331 = vmatpush1.msra.mxu0 %v1047
    %2332 = vmatprep.subr.mxu0 0.0
    %2333 = vmatpush1.msra.mxu0 0.0
    %2334 = vmatprep.subr.mxu0 0.0
    %2335 = vmatpush1.msra.mxu0 0.0
    %2336 = vmatprep.subr.mxu0 0.0
    %2337 = vmatpush1.msra.mxu0 0.0
    %2338 = vmatprep.subr.mxu0 0.0
    %2339 = vmatpush1.msra.mxu0 0.0
    %2340 = vmatprep.subr.mxu0 0.0
    %2341 = vmatpush1.msra.mxu0 0.0
    %2342 = vmatprep.subr.mxu0 0.0
    %2343 = vmatpush1.msra.mxu0 0.0
    %2344 = vmatprep.subr.mxu0 0.0
    %2345 = vmatpush1.msra.mxu0 0.0
    %2346 = vmatprep.subr.mxu0 0.0
    %2347 = vmatpush1.msra.mxu0 0.0
    %2348 = vmatprep.subr.mxu0 0.0
    %2349 = vmatpush1.msra.mxu0 0.0
    %2350 = vmatprep.subr.mxu0 0.0
    %2351 = vmatpush1.msra.mxu0 0.0
    %2352 = vmatprep.subr.mxu0 0.0
    %2353 = vmatpush1.msra.mxu0 0.0
    %2354 = vmatprep.subr.mxu0 0.0
    %2355 = vmatpush1.msra.mxu0 0.0
    %2356 = vmatprep.subr.mxu0 0.0
    %2357 = vmatpush1.msra.mxu0 0.0
    %2358 = vmatprep.subr.mxu0 0.0
    %2359 = vmatpush1.msra.mxu0 0.0
    %2360 = vmatprep.subr.mxu0 0.0
    %2361 = vmatpush1.msra.mxu0 0.0
    %2362 = vmatprep.subr.mxu0 0.0
    %2363 = vmatpush1.msra.mxu0 0.0
    %2364 = vmatprep.subr.mxu0 0.0
    %2365 = vmatpush1.msra.mxu0 0.0
    %2366 = vmatprep.subr.mxu0 0.0
    %2367 = vmatpush1.msra.mxu0 0.0
    %2368 = vmatprep.subr.mxu0 0.0
    %2369 = vmatpush1.msra.mxu0 0.0
    %2370 = vmatprep.subr.mxu0 0.0
    %2371 = vmatpush1.msra.mxu0 0.0
    %2372 = vmatprep.subr.mxu0 0.0
    %2373 = vmatpush1.msra.mxu0 0.0
    %2374 = vmatprep.subr.mxu0 0.0
    %2375 = vmatpush1.msra.mxu0 0.0
    %2376 = vmatprep.subr.mxu0 0.0
    %2377 = vmatpush1.msra.mxu0 0.0
    %2378 = vmatprep.subr.mxu0 0.0
    %2379 = vmatpush1.msra.mxu0 0.0
    %2380 = vmatprep.subr.mxu0 0.0
    %2381 = vmatpush1.msra.mxu0 0.0
    %2382 = vmatprep.subr.mxu0 0.0
    %2383 = vmatpush1.msra.mxu0 0.0
    %2384 = vmatprep.subr.mxu0 0.0
    %2385 = vmatpush1.msra.mxu0 0.0
    %2386 = vmatprep.subr.mxu0 0.0
    %2387 = vmatpush1.msra.mxu0 0.0
    %2388 = vmatprep.subr.mxu0 0.0
    %2389 = vmatpush1.msra.mxu0 0.0
    %2390 = vmatprep.subr.mxu0 0.0
    %2391 = vmatpush1.msra.mxu0 0.0
    %2392 = vmatprep.mubr.f32.mxu0 0.0
    %2393 = vmatmul.mubr.f32.gmra.mrb[0].mxu0 %v2326
    %v2394 = vpop.f32.mrb[0].mxu0
    %v2395 = vadd.f32 %v1213, %v2394
    %v2396 = vpop.f32.mrb[0].mxu0
    %2397 = vdwg.mxu0
    %v2398 = vcombine.low %v1300, %v1446
    %v2400 = vunpack.c.l.s4 1983009808
    %v2401 = vunpack.c.0.s8 %v2400
    %v2402 = vlaneseq
    %v2403 = vshrl.u32 %v2402, 7
    %v2404 = vsub.s32 %v2401, %v2403
    %v2405 = vrot.slane %v2398, %v2404
    %v2406 = vcombine.low %v1373, %v1519
    %v2408 = vunpack.c.l.s4 1983009808
    %v2409 = vunpack.c.0.s8 %v2408
    %v2410 = vlaneseq
    %v2411 = vshrl.u32 %v2410, 7
    %v2412 = vsub.s32 %v2409, %v2411
    %v2413 = vrot.slane %v2406, %v2412
    %v2414 = vcombine.low %v1592, %v1738
    %v2416 = vunpack.c.l.s4 1983009808
    %v2417 = vunpack.c.0.s8 %v2416
    %v2418 = vlaneseq
    %v2419 = vshrl.u32 %v2418, 7
    %v2420 = vsub.s32 %v2417, %v2419
    %v2421 = vrot.slane %v2414, %v2420
    %v2422 = vcombine.low %v1665, %v1811
    %v2424 = vunpack.c.l.s4 1983009808
    %v2425 = vunpack.c.0.s8 %v2424
    %v2426 = vlaneseq
    %v2427 = vshrl.u32 %v2426, 7
    %v2428 = vsub.s32 %v2425, %v2427
    %v2429 = vrot.slane %v2422, %v2428
    %v2430 = vcombine.low %v2405, %v2413
    %v2432 = vunpack.c.l.s4 1934713408
    %v2433 = vunpack.c.0.s8 %v2432
    %v2434 = vlaneseq
    %v2435 = vshrl.u32 %v2434, 7
    %v2436 = vsub.s32 %v2433, %v2435
    %v2437 = vrot.slane %v2430, %v2436
    %v2438 = vcombine.low %v2421, %v2429
    %v2440 = vunpack.c.l.s4 1934713408
    %v2441 = vunpack.c.0.s8 %v2440
    %v2442 = vlaneseq
    %v2443 = vshrl.u32 %v2442, 7
    %v2444 = vsub.s32 %v2441, %v2443
    %v2445 = vrot.slane %v2438, %v2444
    %v2446 = vcombine.low %v2437, %v2445
    %v2447 = vcombine.high %v2437, %v2445
    %v2448 = vcombine.low %v1884, %v2030
    %v2450 = vunpack.c.l.s4 1983009808
    %v2451 = vunpack.c.0.s8 %v2450
    %v2452 = vlaneseq
    %v2453 = vshrl.u32 %v2452, 7
    %v2454 = vsub.s32 %v2451, %v2453
    %v2455 = vrot.slane %v2448, %v2454
    %v2456 = vcombine.low %v1957, %v2103
    %v2458 = vunpack.c.l.s4 1983009808
    %v2459 = vunpack.c.0.s8 %v2458
    %v2460 = vlaneseq
    %v2461 = vshrl.u32 %v2460, 7
    %v2462 = vsub.s32 %v2459, %v2461
    %v2463 = vrot.slane %v2456, %v2462
    %v2464 = vcombine.low %v2176, %v2322
    %v2466 = vunpack.c.l.s4 1983009808
    %v2467 = vunpack.c.0.s8 %v2466
    %v2468 = vlaneseq
    %v2469 = vshrl.u32 %v2468, 7
    %v2470 = vsub.s32 %v2467, %v2469
    %v2471 = vrot.slane %v2464, %v2470
    %v2472 = vcombine.low %v2249, %v2395
    %v2474 = vunpack.c.l.s4 1983009808
    %v2475 = vunpack.c.0.s8 %v2474
    %v2476 = vlaneseq
    %v2477 = vshrl.u32 %v2476, 7
    %v2478 = vsub.s32 %v2475, %v2477
    %v2479 = vrot.slane %v2472, %v2478
    %v2480 = vcombine.low %v2455, %v2463
    %v2482 = vunpack.c.l.s4 1934713408
    %v2483 = vunpack.c.0.s8 %v2482
    %v2484 = vlaneseq
    %v2485 = vshrl.u32 %v2484, 7
    %v2486 = vsub.s32 %v2483, %v2485
    %v2487 = vrot.slane %v2480, %v2486
    %v2488 = vcombine.low %v2471, %v2479
    %v2490 = vunpack.c.l.s4 1934713408
    %v2491 = vunpack.c.0.s8 %v2490
    %v2492 = vlaneseq
    %v2493 = vshrl.u32 %v2492, 7
    %v2494 = vsub.s32 %v2491, %v2493
    %v2495 = vrot.slane %v2488, %v2494
    %v2496 = vcombine.low %v2487, %v2495
    %v2497 = vcombine.high %v2487, %v2495
    %2500 = vrot.lane.b32.xlu0 %v2447, 8
    %v2501 = vpop.permute.xlu0 %2500
    %2502 = vrot.lane.b32.xlu0 %v2497, 8
    %v2503 = vpop.permute.xlu0 %2502
    %v2506 = vsel %vm982, %v2446, %v2501
    %v2507 = vsel %vm982, %v2496, %v2503
    %2508 = vst.msk [vmem:[#allocation10] sm:$0xff] %vm83, %v2506
    %2509 = vst.msk [vmem:[#allocation10 + $0x8] sm:$0xff] %vm83, %v2507
    // Predicated region
    $region34: #{tpu_custom_call.1} parent=1 // pred_check
      _
    $region35: #{tpu_custom_call.1} parent=1 // pred_check_branch
      %2511 = sbr.rel (0) target = $region37
    $region36: #{tpu_custom_call.1} parent=1 // pred_region
      %s2513 = ssub.s32 256, 256
      %2514 = vsyncadd [#allocation4], %s2513
      %s2515 = sshll.u32 [#allocation10], 4
      %s2516 = int_to_ptr.vmem [resolvable:$true] %s2515
      %2521 = dma.vmem_to_hbm [thread:$0]  %s2516, 256, %s4, [#allocation4], 128, 128, 8
    $region37: #{tpu_custom_call.1} parent=1 // pred_fallthru
      _
    // Predicated region
    $region38: #{tpu_custom_call.1} parent=1 // pred_check
      _
    $region39: #{tpu_custom_call.1} parent=1 // pred_check_branch
      %2523 = sbr.rel (0) target = $region41
    $region40: #{tpu_custom_call.1} parent=1 // pred_region
      %2524 = dma.done [#allocation4], 256
    $region41: #{tpu_custom_call.1} parent=1 // pred_fallthru
      _
    %2525 = vsyncpa [#allocation3], 1
    %2526 = vsyncpa [#allocation6], 1
    %2527 = vsyncpa [#allocation9], 1
    %2528 = vsyncpa [#allocation4], 1

// kernel: tpu_custom_call.1
$region0: #{tpu_custom_call.1}
  #allocation0 [shape = 'u32[]', space=smem, size = 0x4, offset = 0x4, fixed_abs, tag = 'smem constant byte address 0x4 - core index']
  #allocation1 [shape = 'u32[144,128]{1,0:T(1,128)}', space=vmem, size = 0x12000, scoped, tag = 'internal scratch']
  %s0 = inlined_call_operand.vmem [shape: f32[4,16,16], index: 0, kind: input, shape index: {}]
  %s1 = inlined_call_operand.vmem [shape: f32[2,16,4], index: 1, kind: input, shape index: {}]
  %s2 = inlined_call_operand.vmem [shape: f32[4,16,4,8], index: 2, kind: input, shape index: {}]
  %s3 = inlined_call_operand.vmem [shape: f32[16,8], index: 3, kind: input, shape index: {}]
  %s4 = inlined_call_operand.vmem [shape: f32[2,16,8], index: 4, kind: output, shape index: {}]
  %s5 = sld [smem:[#allocation0]]
  $region49: #{tpu_custom_call.1} parent=0
    _
  %s7 = ssub.s32 1, %s5
  %s8 = scalar_select 0, %s7, %s5
  loop: start=0, step=1, limit=4
  $region2: #{tpu_custom_call.1} parent=0 // loop_pre_header
    _
  $region3: #{tpu_custom_call.1} parent=0 // loop_header
    %s10 = sphi 0, %s14
    %p11 = scmp.ge.s32.totalorder %s10, 4
    %s18 = sphi 0, %s18
    %s20 = sphi 0, %s18
    %s21 = sphi 0, %s20
    %s35 = sphi 0, %s21
    %s41 = sphi 0, %s43
    %s44 = sphi 0, %s41
    %s45 = sphi 0, %s44
    %s61 = sphi 0, %s45
    %s65 = sphi 0, %s65
    %s67 = sphi 0, %s65
    %s68 = sphi 0, %s67
    %s82 = sphi 0, %s68
    %s86 = sphi 0, %s86
    %s88 = sphi 0, %s86
    %s89 = sphi 0, %s88
    %s103 = sphi 0, %s89
    %s109 = sphi 0, %s111
    %s112 = sphi 0, %s109
    %s113 = sphi 0, %s112
    %s129 = sphi 0, %s113
  $region4: #{tpu_custom_call.1} parent=0 // loop_header_branch
    %13 = sbr.rel (%p11) target = $region8
  $region5: #{tpu_custom_call.1} parent=0 // loop_body
    %s15 = ssub.s32 %s10, 1
    %s16 = ssub.s32 %s10, 2
    %s17 = sadd.s32 %s10, 1
    %s19 = sadd.s32 %s18, 1
    %p22 = scmp.eq.s32.totalorder %s10, 1
    %p23 = scmp.ne.s32.totalorder %s18, %s20
    %p24 = scmp.eq.s32.totalorder %s10, 0
    %p25 = por %p23, %p24
    %p26 = scmp.ne.s32.totalorder %s18, %s20
    %p27 = scmp.eq.s32.totalorder %s15, 1
    %p28 = por %p26, %p27
    %p29 = scmp.ne.s32.totalorder %s20, %s21
    %p30 = scmp.eq.s32.totalorder %s15, 0
    %p31 = por %p29, %p30
    %p32 = scmp.ne.s32.totalorder %s20, %s21
    %p33 = scmp.eq.s32.totalorder %s16, 1
    %p34 = por %p32, %p33
    %p36 = scmp.ne.s32.totalorder %s21, %s35
    %p37 = scmp.eq.s32.totalorder %s16, 0
    %p38 = por %p36, %p37
    %s39 = ssub.s32 %s10, %s17
    %p40 = scmp.eq.s32.totalorder %s39, 0
    %s42 = sadd.s32 %s41, 1
    %s43 = scalar_select %p40, %s41, %s42
    %p46 = pneg %p40
    %p47 = scmp.eq.s32.totalorder %s10, 1
    %p48 = por %p46, %p47
    %p49 = scmp.ne.s32.totalorder %s41, %s44
    %p50 = scmp.eq.s32.totalorder %s10, 0
    %p51 = por %p49, %p50
    %p52 = scmp.ne.s32.totalorder %s41, %s44
    %p53 = scmp.eq.s32.totalorder %s15, 1
    %p54 = por %p52, %p53
    %p55 = scmp.ne.s32.totalorder %s44, %s45
    %p56 = scmp.eq.s32.totalorder %s15, 0
    %p57 = por %p55, %p56
    %p58 = scmp.ne.s32.totalorder %s44, %s45
    %p59 = scmp.eq.s32.totalorder %s16, 1
    %p60 = por %p58, %p59
    %p62 = scmp.ne.s32.totalorder %s45, %s61
    %p63 = scmp.eq.s32.totalorder %s16, 0
    %p64 = por %p62, %p63
    %s66 = sadd.s32 %s65, 1
    %p69 = scmp.eq.s32.totalorder %s10, 1
    %p70 = scmp.ne.s32.totalorder %s65, %s67
    %p71 = scmp.eq.s32.totalorder %s10, 0
    %p72 = por %p70, %p71
    %p73 = scmp.ne.s32.totalorder %s65, %s67
    %p74 = scmp.eq.s32.totalorder %s15, 1
    %p75 = por %p73, %p74
    %p76 = scmp.ne.s32.totalorder %s67, %s68
    %p77 = scmp.eq.s32.totalorder %s15, 0
    %p78 = por %p76, %p77
    %p79 = scmp.ne.s32.totalorder %s67, %s68
    %p80 = scmp.eq.s32.totalorder %s16, 1
    %p81 = por %p79, %p80
    %p83 = scmp.ne.s32.totalorder %s68, %s82
    %p84 = scmp.eq.s32.totalorder %s16, 0
    %p85 = por %p83, %p84
    %s87 = sadd.s32 %s86, 1
    %p90 = scmp.eq.s32.totalorder %s10, 1
    %p91 = scmp.ne.s32.totalorder %s86, %s88
    %p92 = scmp.eq.s32.totalorder %s10, 0
    %p93 = por %p91, %p92
    %p94 = scmp.ne.s32.totalorder %s86, %s88
    %p95 = scmp.eq.s32.totalorder %s15, 1
    %p96 = por %p94, %p95
    %p97 = scmp.ne.s32.totalorder %s88, %s89
    %p98 = scmp.eq.s32.totalorder %s15, 0
    %p99 = por %p97, %p98
    %p100 = scmp.ne.s32.totalorder %s88, %s89
    %p101 = scmp.eq.s32.totalorder %s16, 1
    %p102 = por %p100, %p101
    %p104 = scmp.ne.s32.totalorder %s89, %s103
    %p105 = scmp.eq.s32.totalorder %s16, 0
    %p106 = por %p104, %p105
    %s107 = ssub.s32 %s10, %s17
    %p108 = scmp.eq.s32.totalorder %s107, 0
    %s110 = sadd.s32 %s109, 1
    %s111 = scalar_select %p108, %s109, %s110
    %p114 = pneg %p108
    %p115 = scmp.eq.s32.totalorder %s10, 1
    %p116 = por %p114, %p115
    %p117 = scmp.ne.s32.totalorder %s109, %s112
    %p118 = scmp.eq.s32.totalorder %s10, 0
    %p119 = por %p117, %p118
    %p120 = scmp.ne.s32.totalorder %s109, %s112
    %p121 = scmp.eq.s32.totalorder %s15, 1
    %p122 = por %p120, %p121
    %p123 = scmp.ne.s32.totalorder %s112, %s113
    %p124 = scmp.eq.s32.totalorder %s15, 0
    %p125 = por %p123, %p124
    %p126 = scmp.ne.s32.totalorder %s112, %s113
    %p127 = scmp.eq.s32.totalorder %s16, 1
    %p128 = por %p126, %p127
    %p130 = scmp.ne.s32.totalorder %s113, %s129
    %p131 = scmp.eq.s32.totalorder %s16, 0
    %p132 = por %p130, %p131
    %p133 = scmp.le.s32.totalorder 1, %s10
    %p134 = scmp.lt.s32.totalorder %s10, 3
    %p135 = pnand %p133, %p134
    %p136 = pneg %p135
    // Predicated region
    $region9: #{tpu_custom_call.1} parent=5 // pred_check
      _
    $region10: #{tpu_custom_call.1} parent=5 // pred_check_branch
      %138 = sbr.rel (%p135) target = $region12
    $region11: #{tpu_custom_call.1} parent=5 // pred_region
      %s139 = ssub.s32 %s10, 1
      // Predicated region
      $region13: #{tpu_custom_call.1} parent=11 // pred_check
        %p140 = pneg %p31
      $region14: #{tpu_custom_call.1} parent=11 // pred_check_branch
        %142 = sbr.rel (%p140) target = $region16
      $region15: #{tpu_custom_call.1} parent=11 // pred_region
        _
      $region16: #{tpu_custom_call.1} parent=11 // pred_fallthru
        _
      // Predicated region
      $region17: #{tpu_custom_call.1} parent=11 // pred_check
        %p143 = pneg %p78
      $region18: #{tpu_custom_call.1} parent=11 // pred_check_branch
        %145 = sbr.rel (%p143) target = $region20
      $region19: #{tpu_custom_call.1} parent=11 // pred_region
        _
      $region20: #{tpu_custom_call.1} parent=11 // pred_fallthru
        _
      // Predicated region
      $region21: #{tpu_custom_call.1} parent=11 // pred_check
        %p146 = pneg %p99
      $region22: #{tpu_custom_call.1} parent=11 // pred_check_branch
        %148 = sbr.rel (%p146) target = $region24
      $region23: #{tpu_custom_call.1} parent=11 // pred_region
        _
      $region24: #{tpu_custom_call.1} parent=11 // pred_fallthru
        _
    $region12: #{tpu_custom_call.1} parent=5 // pred_fallthru
      _
    %p149 = scmp.lt.s32.totalorder %s10, 2
    // Predicated region
    $region25: #{tpu_custom_call.1} parent=5 // pred_check
      %p150 = pneg %p149
    $region26: #{tpu_custom_call.1} parent=5 // pred_check_branch
      %152 = sbr.rel (%p150) target = $region28
    $region27: #{tpu_custom_call.1} parent=5 // pred_region
      // Predicated region
      $region29: #{tpu_custom_call.1} parent=27 // pred_check
        %p153 = pneg %p51
      $region30: #{tpu_custom_call.1} parent=27 // pred_check_branch
        %155 = sbr.rel (%p153) target = $region32
      $region31: #{tpu_custom_call.1} parent=27 // pred_region
        %p156 = scmp.lt.s32.totalorder %s10, 1
        %s157 = scalar_select %p156, %s10, 1
        %s158 = smul.addr %s157, 2
        %s159 = smul.addr %s158, 8
        %s160 = scalar_lea.vmem %s1, %s159
      $region32: #{tpu_custom_call.1} parent=27 // pred_fallthru
        _
    $region28: #{tpu_custom_call.1} parent=5 // pred_fallthru
      _
    %p161 = scmp.le.s32.totalorder 1, %s10
    %p162 = scmp.lt.s32.totalorder %s10, 3
    %p163 = pnand %p161, %p162
    %p164 = pneg %p163
    // Predicated region
    $region33: #{tpu_custom_call.1} parent=5 // pred_check
      _
    $region34: #{tpu_custom_call.1} parent=5 // pred_check_branch
      %166 = sbr.rel (%p163) target = $region36
    $region35: #{tpu_custom_call.1} parent=5 // pred_region
      %s167 = ssub.s32 %s10, 1
      %p168 = pneg %p31
      %p169 = pneg %p28
      %p170 = scmp.lt.s32.totalorder %s15, 1
      %s171 = scalar_select %p170, %s15, 1
      %s172 = smul.addr %s171, 2
      %s173 = smul.addr %s172, 8
      %s174 = scalar_lea.vmem %s1, %s173
      %p175 = pneg %p57
      %p176 = pneg %p54
      %p177 = pneg %p78
      %p178 = pneg %p75
      %p179 = pneg %p99
      %p180 = pneg %p96
      %p181 = pneg %p125
      %p182 = pneg %p122
      %p183 = scmp.lt.s32.totalorder %s15, 1
      %s184 = scalar_select %p183, %s15, 1
      %s185 = smul.addr %s184, 2
      %s186 = smul.addr %s185, 8
      %s187 = scalar_lea.vmem %s4, %s186
      %p188 = scmp.lt.s32.totalorder %s15, 1
      %s189 = scalar_select %p188, %s15, 1
      %s190 = smul.addr %s189, 2
      %s191 = smul.addr %s190, 8
      %s192 = scalar_lea.vmem %s1, %s191
      %p193 = scmp.lt.s32.totalorder %s15, 1
      %s194 = scalar_select %p193, %s15, 1
      %s195 = smul.addr %s194, 2
      %s196 = smul.addr %s195, 8
      %s197 = scalar_lea.vmem %s4, %s196
      %v198 = vld [vmem:[%s192] sm:$0xff]
      %v199 = vld [vmem:[%s192 + $0x8] sm:$0xff]
      %v200 = vld [vmem:[%s3] sm:$0xff]
      %v201 = vld [vmem:[%s3 + $0x8] sm:$0xff]
      %v202 = vld [vmem:[%s0] sm:$0xff]
      %v203 = vld [vmem:[%s0 + $0x8] sm:$0xff]
      %vm204 = vcmask 130048
      %v206 = vsel %vm204, %v202, 0
      %v209 = vsel %vm204, %v203, 0
      %211 = vmatprep.subr.mxu0 0.0
      %212 = vmatpush1.msra.mxu0 %v198
      %213 = vmatprep.subr.mxu0 0.0
      %214 = vmatpush1.msra.mxu0 %v199
      %215 = vmatprep.subr.mxu0 0.0
      %216 = vmatpush1.msra.mxu0 0.0
      %217 = vmatprep.subr.mxu0 0.0
      %218 = vmatpush1.msra.mxu0 0.0
      %219 = vmatprep.subr.mxu0 0.0
      %220 = vmatpush1.msra.mxu0 0.0
      %221 = vmatprep.subr.mxu0 0.0
      %222 = vmatpush1.msra.mxu0 0.0
      %223 = vmatprep.subr.mxu0 0.0
      %224 = vmatpush1.msra.mxu0 0.0
      %225 = vmatprep.subr.mxu0 0.0
      %226 = vmatpush1.msra.mxu0 0.0
      %227 = vmatprep.subr.mxu0 0.0
      %228 = vmatpush1.msra.mxu0 0.0
      %229 = vmatprep.subr.mxu0 0.0
      %230 = vmatpush1.msra.mxu0 0.0
      %231 = vmatprep.subr.mxu0 0.0
      %232 = vmatpush1.msra.mxu0 0.0
      %233 = vmatprep.subr.mxu0 0.0
      %234 = vmatpush1.msra.mxu0 0.0
      %235 = vmatprep.subr.mxu0 0.0
      %236 = vmatpush1.msra.mxu0 0.0
      %237 = vmatprep.subr.mxu0 0.0
      %238 = vmatpush1.msra.mxu0 0.0
      %239 = vmatprep.subr.mxu0 0.0
      %240 = vmatpush1.msra.mxu0 0.0
      %241 = vmatprep.subr.mxu0 0.0
      %242 = vmatpush1.msra.mxu0 0.0
      %243 = vmatprep.subr.mxu0 0.0
      %244 = vmatpush1.msra.mxu0 0.0
      %245 = vmatprep.subr.mxu0 0.0
      %246 = vmatpush1.msra.mxu0 0.0
      %247 = vmatprep.subr.mxu0 0.0
      %248 = vmatpush1.msra.mxu0 0.0
      %249 = vmatprep.subr.mxu0 0.0
      %250 = vmatpush1.msra.mxu0 0.0
      %251 = vmatprep.subr.mxu0 0.0
      %252 = vmatpush1.msra.mxu0 0.0
      %253 = vmatprep.subr.mxu0 0.0
      %254 = vmatpush1.msra.mxu0 0.0
      %255 = vmatprep.subr.mxu0 0.0
      %256 = vmatpush1.msra.mxu0 0.0
      %257 = vmatprep.subr.mxu0 0.0
      %258 = vmatpush1.msra.mxu0 0.0
      %259 = vmatprep.subr.mxu0 0.0
      %260 = vmatpush1.msra.mxu0 0.0
      %261 = vmatprep.subr.mxu0 0.0
      %262 = vmatpush1.msra.mxu0 0.0
      %263 = vmatprep.subr.mxu0 0.0
      %264 = vmatpush1.msra.mxu0 0.0
      %265 = vmatprep.subr.mxu0 0.0
      %266 = vmatpush1.msra.mxu0 0.0
      %267 = vmatprep.subr.mxu0 0.0
      %268 = vmatpush1.msra.mxu0 0.0
      %269 = vmatprep.subr.mxu0 0.0
      %270 = vmatpush1.msra.mxu0 0.0
      %271 = vmatprep.subr.mxu0 0.0
      %272 = vmatpush1.msra.mxu0 0.0
      %273 = vmatprep.subr.mxu0 0.0
      %274 = vmatpush1.msra.mxu0 0.0
      %275 = vmatprep.mubr.f32.mxu0 0.0
      %276 = vmatmul.mubr.f32.gmra.mrb[0].mxu0 %v206
      %v277 = vpop.f32.mrb[0].mxu0
      %v278 = vadd.f32 0.0, %v277
      %v279 = vpop.f32.mrb[0].mxu0
      %280 = vmatprep.mubr.f32.mxu0 0.0
      %281 = vmatmul.mubr.f32.gmra.mrb[0].mxu0 %v209
      %v282 = vpop.f32.mrb[0].mxu0
      %v283 = vadd.f32 0.0, %v282
      %v284 = vpop.f32.mrb[0].mxu0
      %285 = vdwg.mxu0
      %v286 = vlaneseq
      %v287 = vshrl.u32 %v286, 7
      %v288 = vsub.s32 0, %v287
      %v289 = vrot.slane %v278, %v288
      %291 = vbcast.lane.b32.xlu0 %v289, 256
      %v292 = vpop.permute.xlu0 %291
      %v293 = vlaneseq
      %v294 = vshrl.u32 %v293, 7
      %v295 = vsub.s32 1, %v294
      %v296 = vrot.slane %v278, %v295
      %298 = vbcast.lane.b32.xlu0 %v296, 256
      %v299 = vpop.permute.xlu0 %298
      %v300 = vlaneseq
      %v301 = vshrl.u32 %v300, 7
      %v302 = vsub.s32 2, %v301
      %v303 = vrot.slane %v278, %v302
      %305 = vbcast.lane.b32.xlu0 %v303, 256
      %v306 = vpop.permute.xlu0 %305
      %v307 = vlaneseq
      %v308 = vshrl.u32 %v307, 7
      %v309 = vsub.s32 3, %v308
      %v310 = vrot.slane %v278, %v309
      %312 = vbcast.lane.b32.xlu0 %v310, 256
      %v313 = vpop.permute.xlu0 %312
      %v314 = vlaneseq
      %v315 = vshrl.u32 %v314, 7
      %v316 = vsub.s32 4, %v315
      %v317 = vrot.slane %v278, %v316
      %319 = vbcast.lane.b32.xlu0 %v317, 256
      %v320 = vpop.permute.xlu0 %319
      %v321 = vlaneseq
      %v322 = vshrl.u32 %v321, 7
      %v323 = vsub.s32 5, %v322
      %v324 = vrot.slane %v278, %v323
      %326 = vbcast.lane.b32.xlu0 %v324, 256
      %v327 = vpop.permute.xlu0 %326
      %v328 = vlaneseq
      %v329 = vshrl.u32 %v328, 7
      %v330 = vsub.s32 6, %v329
      %v331 = vrot.slane %v278, %v330
      %333 = vbcast.lane.b32.xlu0 %v331, 256
      %v334 = vpop.permute.xlu0 %333
      %v335 = vlaneseq
      %v336 = vshrl.u32 %v335, 7
      %v337 = vsub.s32 7, %v336
      %v338 = vrot.slane %v278, %v337
      %340 = vbcast.lane.b32.xlu0 %v338, 256
      %v341 = vpop.permute.xlu0 %340
      %v342 = vlaneseq
      %v343 = vshrl.u32 %v342, 7
      %v344 = vsub.s32 0, %v343
      %v345 = vrot.slane %v283, %v344
      %347 = vbcast.lane.b32.xlu0 %v345, 256
      %v348 = vpop.permute.xlu0 %347
      %v349 = vlaneseq
      %v350 = vshrl.u32 %v349, 7
      %v351 = vsub.s32 1, %v350
      %v352 = vrot.slane %v283, %v351
      %354 = vbcast.lane.b32.xlu0 %v352, 256
      %v355 = vpop.permute.xlu0 %354
      %v356 = vlaneseq
      %v357 = vshrl.u32 %v356, 7
      %v358 = vsub.s32 2, %v357
      %v359 = vrot.slane %v283, %v358
      %361 = vbcast.lane.b32.xlu0 %v359, 256
      %v362 = vpop.permute.xlu0 %361
      %v363 = vlaneseq
      %v364 = vshrl.u32 %v363, 7
      %v365 = vsub.s32 3, %v364
      %v366 = vrot.slane %v283, %v365
      %368 = vbcast.lane.b32.xlu0 %v366, 256
      %v369 = vpop.permute.xlu0 %368
      %v370 = vlaneseq
      %v371 = vshrl.u32 %v370, 7
      %v372 = vsub.s32 4, %v371
      %v373 = vrot.slane %v283, %v372
      %375 = vbcast.lane.b32.xlu0 %v373, 256
      %v376 = vpop.permute.xlu0 %375
      %v377 = vlaneseq
      %v378 = vshrl.u32 %v377, 7
      %v379 = vsub.s32 5, %v378
      %v380 = vrot.slane %v283, %v379
      %382 = vbcast.lane.b32.xlu0 %v380, 256
      %v383 = vpop.permute.xlu0 %382
      %v384 = vlaneseq
      %v385 = vshrl.u32 %v384, 7
      %v386 = vsub.s32 6, %v385
      %v387 = vrot.slane %v283, %v386
      %389 = vbcast.lane.b32.xlu0 %v387, 256
      %v390 = vpop.permute.xlu0 %389
      %v391 = vlaneseq
      %v392 = vshrl.u32 %v391, 7
      %v393 = vsub.s32 7, %v392
      %v394 = vrot.slane %v283, %v393
      %396 = vbcast.lane.b32.xlu0 %v394, 256
      %v397 = vpop.permute.xlu0 %396
      %v398 = vld [vmem:[%s2] sm:$0xf]
      %v399 = vld [vmem:[%s2 + $0x4] sm:$0xf]
      %v400 = vld [vmem:[%s2 + $0x8] sm:$0xf]
      %v401 = vld [vmem:[%s2 + $0xc] sm:$0xf]
      %v402 = vld [vmem:[%s2 + $0x10] sm:$0xf]
      %v403 = vld [vmem:[%s2 + $0x14] sm:$0xf]
      %v404 = vld [vmem:[%s2 + $0x18] sm:$0xf]
      %v405 = vld [vmem:[%s2 + $0x1c] sm:$0xf]
      %v406 = vld [vmem:[%s2 + $0x20] sm:$0xf]
      %v407 = vld [vmem:[%s2 + $0x24] sm:$0xf]
      %v408 = vld [vmem:[%s2 + $0x28] sm:$0xf]
      %v409 = vld [vmem:[%s2 + $0x2c] sm:$0xf]
      %v410 = vld [vmem:[%s2 + $0x30] sm:$0xf]
      %v411 = vld [vmem:[%s2 + $0x34] sm:$0xf]
      %v412 = vld [vmem:[%s2 + $0x38] sm:$0xf]
      %v413 = vld [vmem:[%s2 + $0x3c] sm:$0xf]
      %v414 = vmul.f32 %v292, %v398
      %v415 = vmul.f32 %v299, %v399
      %v416 = vmul.f32 %v306, %v400
      %v417 = vmul.f32 %v313, %v401
      %v418 = vmul.f32 %v320, %v402
      %v419 = vmul.f32 %v327, %v403
      %v420 = vmul.f32 %v334, %v404
      %v421 = vmul.f32 %v341, %v405
      %v422 = vmul.f32 %v348, %v406
      %v423 = vmul.f32 %v355, %v407
      %v424 = vmul.f32 %v362, %v408
      %v425 = vmul.f32 %v369, %v409
      %v426 = vmul.f32 %v376, %v410
      %v427 = vmul.f32 %v383, %v411
      %v428 = vmul.f32 %v390, %v412
      %v429 = vmul.f32 %v397, %v413
      %vm430 = vcmask 60416
      %v431 = vsel %vm430, %v414, 0.0
      %v432 = vrot.slane %v431, 4
      %v433 = vadd.f32 %v431, %v432
      %v434 = vrot.slane %v433, 2
      %v435 = vadd.f32 %v433, %v434
      %v436 = vrot.slane %v435, 1
      %v437 = vadd.f32 %v435, %v436
      %v438 = vsel %vm430, %v415, 0.0
      %v439 = vrot.slane %v438, 4
      %v440 = vadd.f32 %v438, %v439
      %v441 = vrot.slane %v440, 2
      %v442 = vadd.f32 %v440, %v441
      %v443 = vrot.slane %v442, 1
      %v444 = vadd.f32 %v442, %v443
      %v445 = vsel %vm430, %v416, 0.0
      %v446 = vrot.slane %v445, 4
      %v447 = vadd.f32 %v445, %v446
      %v448 = vrot.slane %v447, 2
      %v449 = vadd.f32 %v447, %v448
      %v450 = vrot.slane %v449, 1
      %v451 = vadd.f32 %v449, %v450
      %v452 = vsel %vm430, %v417, 0.0
      %v453 = vrot.slane %v452, 4
      %v454 = vadd.f32 %v452, %v453
      %v455 = vrot.slane %v454, 2
      %v456 = vadd.f32 %v454, %v455
      %v457 = vrot.slane %v456, 1
      %v458 = vadd.f32 %v456, %v457
      %v459 = vsel %vm430, %v418, 0.0
      %v460 = vrot.slane %v459, 4
      %v461 = vadd.f32 %v459, %v460
      %v462 = vrot.slane %v461, 2
      %v463 = vadd.f32 %v461, %v462
      %v464 = vrot.slane %v463, 1
      %v465 = vadd.f32 %v463, %v464
      %v466 = vsel %vm430, %v419, 0.0
      %v467 = vrot.slane %v466, 4
      %v468 = vadd.f32 %v466, %v467
      %v469 = vrot.slane %v468, 2
      %v470 = vadd.f32 %v468, %v469
      %v471 = vrot.slane %v470, 1
      %v472 = vadd.f32 %v470, %v471
      %v473 = vsel %vm430, %v420, 0.0
      %v474 = vrot.slane %v473, 4
      %v475 = vadd.f32 %v473, %v474
      %v476 = vrot.slane %v475, 2
      %v477 = vadd.f32 %v475, %v476
      %v478 = vrot.slane %v477, 1
      %v479 = vadd.f32 %v477, %v478
      %v480 = vsel %vm430, %v421, 0.0
      %v481 = vrot.slane %v480, 4
      %v482 = vadd.f32 %v480, %v481
      %v483 = vrot.slane %v482, 2
      %v484 = vadd.f32 %v482, %v483
      %v485 = vrot.slane %v484, 1
      %v486 = vadd.f32 %v484, %v485
      %v487 = vsel %vm430, %v422, 0.0
      %v488 = vrot.slane %v487, 4
      %v489 = vadd.f32 %v487, %v488
      %v490 = vrot.slane %v489, 2
      %v491 = vadd.f32 %v489, %v490
      %v492 = vrot.slane %v491, 1
      %v493 = vadd.f32 %v491, %v492
      %v494 = vsel %vm430, %v423, 0.0
      %v495 = vrot.slane %v494, 4
      %v496 = vadd.f32 %v494, %v495
      %v497 = vrot.slane %v496, 2
      %v498 = vadd.f32 %v496, %v497
      %v499 = vrot.slane %v498, 1
      %v500 = vadd.f32 %v498, %v499
      %v501 = vsel %vm430, %v424, 0.0
      %v502 = vrot.slane %v501, 4
      %v503 = vadd.f32 %v501, %v502
      %v504 = vrot.slane %v503, 2
      %v505 = vadd.f32 %v503, %v504
      %v506 = vrot.slane %v505, 1
      %v507 = vadd.f32 %v505, %v506
      %v508 = vsel %vm430, %v425, 0.0
      %v509 = vrot.slane %v508, 4
      %v510 = vadd.f32 %v508, %v509
      %v511 = vrot.slane %v510, 2
      %v512 = vadd.f32 %v510, %v511
      %v513 = vrot.slane %v512, 1
      %v514 = vadd.f32 %v512, %v513
      %v515 = vsel %vm430, %v426, 0.0
      %v516 = vrot.slane %v515, 4
      %v517 = vadd.f32 %v515, %v516
      %v518 = vrot.slane %v517, 2
      %v519 = vadd.f32 %v517, %v518
      %v520 = vrot.slane %v519, 1
      %v521 = vadd.f32 %v519, %v520
      %v522 = vsel %vm430, %v427, 0.0
      %v523 = vrot.slane %v522, 4
      %v524 = vadd.f32 %v522, %v523
      %v525 = vrot.slane %v524, 2
      %v526 = vadd.f32 %v524, %v525
      %v527 = vrot.slane %v526, 1
      %v528 = vadd.f32 %v526, %v527
      %v529 = vsel %vm430, %v428, 0.0
      %v530 = vrot.slane %v529, 4
      %v531 = vadd.f32 %v529, %v530
      %v532 = vrot.slane %v531, 2
      %v533 = vadd.f32 %v531, %v532
      %v534 = vrot.slane %v533, 1
      %v535 = vadd.f32 %v533, %v534
      %v536 = vsel %vm430, %v429, 0.0
      %v537 = vrot.slane %v536, 4
      %v538 = vadd.f32 %v536, %v537
      %v539 = vrot.slane %v538, 2
      %v540 = vadd.f32 %v538, %v539
      %v541 = vrot.slane %v540, 1
      %v542 = vadd.f32 %v540, %v541
      %vm559 = vcmask 1041409
      %v560 = vsel %vm559, %v444, %v437
      %vm561 = vcmask 1042434
      %v562 = vsel %vm561, %v451, %v560
      %vm563 = vcmask 1043459
      %v564 = vsel %vm563, %v458, %v562
      %vm565 = vcmask 1044484
      %v566 = vsel %vm565, %v465, %v564
      %vm567 = vcmask 1045509
      %v568 = vsel %vm567, %v472, %v566
      %vm569 = vcmask 1046534
      %v570 = vsel %vm569, %v479, %v568
      %vm571 = vcmask 1047559
      %v572 = vsel %vm571, %v486, %v570
      %v573 = vsel %vm559, %v500, %v493
      %v574 = vsel %vm561, %v507, %v573
      %v575 = vsel %vm563, %v514, %v574
      %v576 = vsel %vm565, %v521, %v575
      %v577 = vsel %vm567, %v528, %v576
      %v578 = vsel %vm569, %v535, %v577
      %v579 = vsel %vm571, %v542, %v578
      %v582 = vadd.f32 %v200, %v572
      %v583 = vadd.f32 %v201, %v579
      %s584 = scalar_lea.vmem %s0, 16
      %v585 = vld [vmem:[%s584] sm:$0xff]
      %v586 = vld [vmem:[%s584 + $0x8] sm:$0xff]
      %v588 = vsel %vm204, %v585, 0
      %v591 = vsel %vm204, %v586, 0
      %593 = vmatprep.subr.mxu0 0.0
      %594 = vmatpush1.msra.mxu0 %v198
      %595 = vmatprep.subr.mxu0 0.0
      %596 = vmatpush1.msra.mxu0 %v199
      %597 = vmatprep.subr.mxu0 0.0
      %598 = vmatpush1.msra.mxu0 0.0
      %599 = vmatprep.subr.mxu0 0.0
      %600 = vmatpush1.msra.mxu0 0.0
      %601 = vmatprep.subr.mxu0 0.0
      %602 = vmatpush1.msra.mxu0 0.0
      %603 = vmatprep.subr.mxu0 0.0
      %604 = vmatpush1.msra.mxu0 0.0
      %605 = vmatprep.subr.mxu0 0.0
      %606 = vmatpush1.msra.mxu0 0.0
      %607 = vmatprep.subr.mxu0 0.0
      %608 = vmatpush1.msra.mxu0 0.0
      %609 = vmatprep.subr.mxu0 0.0
      %610 = vmatpush1.msra.mxu0 0.0
      %611 = vmatprep.subr.mxu0 0.0
      %612 = vmatpush1.msra.mxu0 0.0
      %613 = vmatprep.subr.mxu0 0.0
      %614 = vmatpush1.msra.mxu0 0.0
      %615 = vmatprep.subr.mxu0 0.0
      %616 = vmatpush1.msra.mxu0 0.0
      %617 = vmatprep.subr.mxu0 0.0
      %618 = vmatpush1.msra.mxu0 0.0
      %619 = vmatprep.subr.mxu0 0.0
      %620 = vmatpush1.msra.mxu0 0.0
      %621 = vmatprep.subr.mxu0 0.0
      %622 = vmatpush1.msra.mxu0 0.0
      %623 = vmatprep.subr.mxu0 0.0
      %624 = vmatpush1.msra.mxu0 0.0
      %625 = vmatprep.subr.mxu0 0.0
      %626 = vmatpush1.msra.mxu0 0.0
      %627 = vmatprep.subr.mxu0 0.0
      %628 = vmatpush1.msra.mxu0 0.0
      %629 = vmatprep.subr.mxu0 0.0
      %630 = vmatpush1.msra.mxu0 0.0
      %631 = vmatprep.subr.mxu0 0.0
      %632 = vmatpush1.msra.mxu0 0.0
      %633 = vmatprep.subr.mxu0 0.0
      %634 = vmatpush1.msra.mxu0 0.0
      %635 = vmatprep.subr.mxu0 0.0
      %636 = vmatpush1.msra.mxu0 0.0
      %637 = vmatprep.subr.mxu0 0.0
      %638 = vmatpush1.msra.mxu0 0.0
      %639 = vmatprep.subr.mxu0 0.0
      %640 = vmatpush1.msra.mxu0 0.0
      %641 = vmatprep.subr.mxu0 0.0
      %642 = vmatpush1.msra.mxu0 0.0
      %643 = vmatprep.subr.mxu0 0.0
      %644 = vmatpush1.msra.mxu0 0.0
      %645 = vmatprep.subr.mxu0 0.0
      %646 = vmatpush1.msra.mxu0 0.0
      %647 = vmatprep.subr.mxu0 0.0
      %648 = vmatpush1.msra.mxu0 0.0
      %649 = vmatprep.subr.mxu0 0.0
      %650 = vmatpush1.msra.mxu0 0.0
      %651 = vmatprep.subr.mxu0 0.0
      %652 = vmatpush1.msra.mxu0 0.0
      %653 = vmatprep.subr.mxu0 0.0
      %654 = vmatpush1.msra.mxu0 0.0
      %655 = vmatprep.subr.mxu0 0.0
      %656 = vmatpush1.msra.mxu0 0.0
      %657 = vmatprep.mubr.f32.mxu0 0.0
      %658 = vmatmul.mubr.f32.gmra.mrb[0].mxu0 %v588
      %v659 = vpop.f32.mrb[0].mxu0
      %v660 = vadd.f32 0.0, %v659
      %v661 = vpop.f32.mrb[0].mxu0
      %662 = vmatprep.mubr.f32.mxu0 0.0
      %663 = vmatmul.mubr.f32.gmra.mrb[0].mxu0 %v591
      %v664 = vpop.f32.mrb[0].mxu0
      %v665 = vadd.f32 0.0, %v664
      %v666 = vpop.f32.mrb[0].mxu0
      %667 = vdwg.mxu0
      %v668 = vlaneseq
      %v669 = vshrl.u32 %v668, 7
      %v670 = vsub.s32 0, %v669
      %v671 = vrot.slane %v660, %v670
      %673 = vbcast.lane.b32.xlu0 %v671, 256
      %v674 = vpop.permute.xlu0 %673
      %v675 = vlaneseq
      %v676 = vshrl.u32 %v675, 7
      %v677 = vsub.s32 1, %v676
      %v678 = vrot.slane %v660, %v677
      %680 = vbcast.lane.b32.xlu0 %v678, 256
      %v681 = vpop.permute.xlu0 %680
      %v682 = vlaneseq
      %v683 = vshrl.u32 %v682, 7
      %v684 = vsub.s32 2, %v683
      %v685 = vrot.slane %v660, %v684
      %687 = vbcast.lane.b32.xlu0 %v685, 256
      %v688 = vpop.permute.xlu0 %687
      %v689 = vlaneseq
      %v690 = vshrl.u32 %v689, 7
      %v691 = vsub.s32 3, %v690
      %v692 = vrot.slane %v660, %v691
      %694 = vbcast.lane.b32.xlu0 %v692, 256
      %v695 = vpop.permute.xlu0 %694
      %v696 = vlaneseq
      %v697 = vshrl.u32 %v696, 7
      %v698 = vsub.s32 4, %v697
      %v699 = vrot.slane %v660, %v698
      %701 = vbcast.lane.b32.xlu0 %v699, 256
      %v702 = vpop.permute.xlu0 %701
      %v703 = vlaneseq
      %v704 = vshrl.u32 %v703, 7
      %v705 = vsub.s32 5, %v704
      %v706 = vrot.slane %v660, %v705
      %708 = vbcast.lane.b32.xlu0 %v706, 256
      %v709 = vpop.permute.xlu0 %708
      %v710 = vlaneseq
      %v711 = vshrl.u32 %v710, 7
      %v712 = vsub.s32 6, %v711
      %v713 = vrot.slane %v660, %v712
      %715 = vbcast.lane.b32.xlu0 %v713, 256
      %v716 = vpop.permute.xlu0 %715
      %v717 = vlaneseq
      %v718 = vshrl.u32 %v717, 7
      %v719 = vsub.s32 7, %v718
      %v720 = vrot.slane %v660, %v719
      %722 = vbcast.lane.b32.xlu0 %v720, 256
      %v723 = vpop.permute.xlu0 %722
      %v724 = vlaneseq
      %v725 = vshrl.u32 %v724, 7
      %v726 = vsub.s32 0, %v725
      %v727 = vrot.slane %v665, %v726
      %729 = vbcast.lane.b32.xlu0 %v727, 256
      %v730 = vpop.permute.xlu0 %729
      %v731 = vlaneseq
      %v732 = vshrl.u32 %v731, 7
      %v733 = vsub.s32 1, %v732
      %v734 = vrot.slane %v665, %v733
      %736 = vbcast.lane.b32.xlu0 %v734, 256
      %v737 = vpop.permute.xlu0 %736
      %v738 = vlaneseq
      %v739 = vshrl.u32 %v738, 7
      %v740 = vsub.s32 2, %v739
      %v741 = vrot.slane %v665, %v740
      %743 = vbcast.lane.b32.xlu0 %v741, 256
      %v744 = vpop.permute.xlu0 %743
      %v745 = vlaneseq
      %v746 = vshrl.u32 %v745, 7
      %v747 = vsub.s32 3, %v746
      %v748 = vrot.slane %v665, %v747
      %750 = vbcast.lane.b32.xlu0 %v748, 256
      %v751 = vpop.permute.xlu0 %750
      %v752 = vlaneseq
      %v753 = vshrl.u32 %v752, 7
      %v754 = vsub.s32 4, %v753
      %v755 = vrot.slane %v665, %v754
      %757 = vbcast.lane.b32.xlu0 %v755, 256
      %v758 = vpop.permute.xlu0 %757
      %v759 = vlaneseq
      %v760 = vshrl.u32 %v759, 7
      %v761 = vsub.s32 5, %v760
      %v762 = vrot.slane %v665, %v761
      %764 = vbcast.lane.b32.xlu0 %v762, 256
      %v765 = vpop.permute.xlu0 %764
      %v766 = vlaneseq
      %v767 = vshrl.u32 %v766, 7
      %v768 = vsub.s32 6, %v767
      %v769 = vrot.slane %v665, %v768
      %771 = vbcast.lane.b32.xlu0 %v769, 256
      %v772 = vpop.permute.xlu0 %771
      %v773 = vlaneseq
      %v774 = vshrl.u32 %v773, 7
      %v775 = vsub.s32 7, %v774
      %v776 = vrot.slane %v665, %v775
      %778 = vbcast.lane.b32.xlu0 %v776, 256
      %v779 = vpop.permute.xlu0 %778
      %s780 = scalar_lea.vmem %s2, 64
      %v781 = vld [vmem:[%s780] sm:$0xf]
      %v782 = vld [vmem:[%s780 + $0x4] sm:$0xf]
      %v783 = vld [vmem:[%s780 + $0x8] sm:$0xf]
      %v784 = vld [vmem:[%s780 + $0xc] sm:$0xf]
      %v785 = vld [vmem:[%s780 + $0x10] sm:$0xf]
      %v786 = vld [vmem:[%s780 + $0x14] sm:$0xf]
      %v787 = vld [vmem:[%s780 + $0x18] sm:$0xf]
      %v788 = vld [vmem:[%s780 + $0x1c] sm:$0xf]
      %v789 = vld [vmem:[%s780 + $0x20] sm:$0xf]
      %v790 = vld [vmem:[%s780 + $0x24] sm:$0xf]
      %v791 = vld [vmem:[%s780 + $0x28] sm:$0xf]
      %v792 = vld [vmem:[%s780 + $0x2c] sm:$0xf]
      %v793 = vld [vmem:[%s780 + $0x30] sm:$0xf]
      %v794 = vld [vmem:[%s780 + $0x34] sm:$0xf]
      %v795 = vld [vmem:[%s780 + $0x38] sm:$0xf]
      %v796 = vld [vmem:[%s780 + $0x3c] sm:$0xf]
      %v797 = vmul.f32 %v674, %v781
      %v798 = vmul.f32 %v681, %v782
      %v799 = vmul.f32 %v688, %v783
      %v800 = vmul.f32 %v695, %v784
      %v801 = vmul.f32 %v702, %v785
      %v802 = vmul.f32 %v709, %v786
      %v803 = vmul.f32 %v716, %v787
      %v804 = vmul.f32 %v723, %v788
      %v805 = vmul.f32 %v730, %v789
      %v806 = vmul.f32 %v737, %v790
      %v807 = vmul.f32 %v744, %v791
      %v808 = vmul.f32 %v751, %v792
      %v809 = vmul.f32 %v758, %v793
      %v810 = vmul.f32 %v765, %v794
      %v811 = vmul.f32 %v772, %v795
      %v812 = vmul.f32 %v779, %v796
      %v813 = vsel %vm430, %v797, 0.0
      %v814 = vrot.slane %v813, 4
      %v815 = vadd.f32 %v813, %v814
      %v816 = vrot.slane %v815, 2
      %v817 = vadd.f32 %v815, %v816
      %v818 = vrot.slane %v817, 1
      %v819 = vadd.f32 %v817, %v818
      %v820 = vsel %vm430, %v798, 0.0
      %v821 = vrot.slane %v820, 4
      %v822 = vadd.f32 %v820, %v821
      %v823 = vrot.slane %v822, 2
      %v824 = vadd.f32 %v822, %v823
      %v825 = vrot.slane %v824, 1
      %v826 = vadd.f32 %v824, %v825
      %v827 = vsel %vm430, %v799, 0.0
      %v828 = vrot.slane %v827, 4
      %v829 = vadd.f32 %v827, %v828
      %v830 = vrot.slane %v829, 2
      %v831 = vadd.f32 %v829, %v830
      %v832 = vrot.slane %v831, 1
      %v833 = vadd.f32 %v831, %v832
      %v834 = vsel %vm430, %v800, 0.0
      %v835 = vrot.slane %v834, 4
      %v836 = vadd.f32 %v834, %v835
      %v837 = vrot.slane %v836, 2
      %v838 = vadd.f32 %v836, %v837
      %v839 = vrot.slane %v838, 1
      %v840 = vadd.f32 %v838, %v839
      %v841 = vsel %vm430, %v801, 0.0
      %v842 = vrot.slane %v841, 4
      %v843 = vadd.f32 %v841, %v842
      %v844 = vrot.slane %v843, 2
      %v845 = vadd.f32 %v843, %v844
      %v846 = vrot.slane %v845, 1
      %v847 = vadd.f32 %v845, %v846
      %v848 = vsel %vm430, %v802, 0.0
      %v849 = vrot.slane %v848, 4
      %v850 = vadd.f32 %v848, %v849
      %v851 = vrot.slane %v850, 2
      %v852 = vadd.f32 %v850, %v851
      %v853 = vrot.slane %v852, 1
      %v854 = vadd.f32 %v852, %v853
      %v855 = vsel %vm430, %v803, 0.0
      %v856 = vrot.slane %v855, 4
      %v857 = vadd.f32 %v855, %v856
      %v858 = vrot.slane %v857, 2
      %v859 = vadd.f32 %v857, %v858
      %v860 = vrot.slane %v859, 1
      %v861 = vadd.f32 %v859, %v860
      %v862 = vsel %vm430, %v804, 0.0
      %v863 = vrot.slane %v862, 4
      %v864 = vadd.f32 %v862, %v863
      %v865 = vrot.slane %v864, 2
      %v866 = vadd.f32 %v864, %v865
      %v867 = vrot.slane %v866, 1
      %v868 = vadd.f32 %v866, %v867
      %v869 = vsel %vm430, %v805, 0.0
      %v870 = vrot.slane %v869, 4
      %v871 = vadd.f32 %v869, %v870
      %v872 = vrot.slane %v871, 2
      %v873 = vadd.f32 %v871, %v872
      %v874 = vrot.slane %v873, 1
      %v875 = vadd.f32 %v873, %v874
      %v876 = vsel %vm430, %v806, 0.0
      %v877 = vrot.slane %v876, 4
      %v878 = vadd.f32 %v876, %v877
      %v879 = vrot.slane %v878, 2
      %v880 = vadd.f32 %v878, %v879
      %v881 = vrot.slane %v880, 1
      %v882 = vadd.f32 %v880, %v881
      %v883 = vsel %vm430, %v807, 0.0
      %v884 = vrot.slane %v883, 4
      %v885 = vadd.f32 %v883, %v884
      %v886 = vrot.slane %v885, 2
      %v887 = vadd.f32 %v885, %v886
      %v888 = vrot.slane %v887, 1
      %v889 = vadd.f32 %v887, %v888
      %v890 = vsel %vm430, %v808, 0.0
      %v891 = vrot.slane %v890, 4
      %v892 = vadd.f32 %v890, %v891
      %v893 = vrot.slane %v892, 2
      %v894 = vadd.f32 %v892, %v893
      %v895 = vrot.slane %v894, 1
      %v896 = vadd.f32 %v894, %v895
      %v897 = vsel %vm430, %v809, 0.0
      %v898 = vrot.slane %v897, 4
      %v899 = vadd.f32 %v897, %v898
      %v900 = vrot.slane %v899, 2
      %v901 = vadd.f32 %v899, %v900
      %v902 = vrot.slane %v901, 1
      %v903 = vadd.f32 %v901, %v902
      %v904 = vsel %vm430, %v810, 0.0
      %v905 = vrot.slane %v904, 4
      %v906 = vadd.f32 %v904, %v905
      %v907 = vrot.slane %v906, 2
      %v908 = vadd.f32 %v906, %v907
      %v909 = vrot.slane %v908, 1
      %v910 = vadd.f32 %v908, %v909
      %v911 = vsel %vm430, %v811, 0.0
      %v912 = vrot.slane %v911, 4
      %v913 = vadd.f32 %v911, %v912
      %v914 = vrot.slane %v913, 2
      %v915 = vadd.f32 %v913, %v914
      %v916 = vrot.slane %v915, 1
      %v917 = vadd.f32 %v915, %v916
      %v918 = vsel %vm430, %v812, 0.0
      %v919 = vrot.slane %v918, 4
      %v920 = vadd.f32 %v918, %v919
      %v921 = vrot.slane %v920, 2
      %v922 = vadd.f32 %v920, %v921
      %v923 = vrot.slane %v922, 1
      %v924 = vadd.f32 %v922, %v923
      %v941 = vsel %vm559, %v826, %v819
      %v942 = vsel %vm561, %v833, %v941
      %v943 = vsel %vm563, %v840, %v942
      %v944 = vsel %vm565, %v847, %v943
      %v945 = vsel %vm567, %v854, %v944
      %v946 = vsel %vm569, %v861, %v945
      %v947 = vsel %vm571, %v868, %v946
      %v948 = vsel %vm559, %v882, %v875
      %v949 = vsel %vm561, %v889, %v948
      %v950 = vsel %vm563, %v896, %v949
      %v951 = vsel %vm565, %v903, %v950
      %v952 = vsel %vm567, %v910, %v951
      %v953 = vsel %vm569, %v917, %v952
      %v954 = vsel %vm571, %v924, %v953
      %v957 = vadd.f32 %v582, %v947
      %v958 = vadd.f32 %v583, %v954
      %s959 = scalar_lea.vmem %s0, 32
      %v960 = vld [vmem:[%s959] sm:$0xff]
      %v961 = vld [vmem:[%s959 + $0x8] sm:$0xff]
      %v963 = vsel %vm204, %v960, 0
      %v966 = vsel %vm204, %v961, 0
      %968 = vmatprep.subr.mxu0 0.0
      %969 = vmatpush1.msra.mxu0 %v198
      %970 = vmatprep.subr.mxu0 0.0
      %971 = vmatpush1.msra.mxu0 %v199
      %972 = vmatprep.subr.mxu0 0.0
      %973 = vmatpush1.msra.mxu0 0.0
      %974 = vmatprep.subr.mxu0 0.0
      %975 = vmatpush1.msra.mxu0 0.0
      %976 = vmatprep.subr.mxu0 0.0
      %977 = vmatpush1.msra.mxu0 0.0
      %978 = vmatprep.subr.mxu0 0.0
      %979 = vmatpush1.msra.mxu0 0.0
      %980 = vmatprep.subr.mxu0 0.0
      %981 = vmatpush1.msra.mxu0 0.0
      %982 = vmatprep.subr.mxu0 0.0
      %983 = vmatpush1.msra.mxu0 0.0
      %984 = vmatprep.subr.mxu0 0.0
      %985 = vmatpush1.msra.mxu0 0.0
      %986 = vmatprep.subr.mxu0 0.0
      %987 = vmatpush1.msra.mxu0 0.0
      %988 = vmatprep.subr.mxu0 0.0
      %989 = vmatpush1.msra.mxu0 0.0
      %990 = vmatprep.subr.mxu0 0.0
      %991 = vmatpush1.msra.mxu0 0.0
      %992 = vmatprep.subr.mxu0 0.0
      %993 = vmatpush1.msra.mxu0 0.0
      %994 = vmatprep.subr.mxu0 0.0
      %995 = vmatpush1.msra.mxu0 0.0
      %996 = vmatprep.subr.mxu0 0.0
      %997 = vmatpush1.msra.mxu0 0.0
      %998 = vmatprep.subr.mxu0 0.0
      %999 = vmatpush1.msra.mxu0 0.0
      %1000 = vmatprep.subr.mxu0 0.0
      %1001 = vmatpush1.msra.mxu0 0.0
      %1002 = vmatprep.subr.mxu0 0.0
      %1003 = vmatpush1.msra.mxu0 0.0
      %1004 = vmatprep.subr.mxu0 0.0
      %1005 = vmatpush1.msra.mxu0 0.0
      %1006 = vmatprep.subr.mxu0 0.0
      %1007 = vmatpush1.msra.mxu0 0.0
      %1008 = vmatprep.subr.mxu0 0.0
      %1009 = vmatpush1.msra.mxu0 0.0
      %1010 = vmatprep.subr.mxu0 0.0
      %1011 = vmatpush1.msra.mxu0 0.0
      %1012 = vmatprep.subr.mxu0 0.0
      %1013 = vmatpush1.msra.mxu0 0.0
      %1014 = vmatprep.subr.mxu0 0.0
      %1015 = vmatpush1.msra.mxu0 0.0
      %1016 = vmatprep.subr.mxu0 0.0
      %1017 = vmatpush1.msra.mxu0 0.0
      %1018 = vmatprep.subr.mxu0 0.0
      %1019 = vmatpush1.msra.mxu0 0.0
      %1020 = vmatprep.subr.mxu0 0.0
      %1021 = vmatpush1.msra.mxu0 0.0
      %1022 = vmatprep.subr.mxu0 0.0
      %1023 = vmatpush1.msra.mxu0 0.0
      %1024 = vmatprep.subr.mxu0 0.0
      %1025 = vmatpush1.msra.mxu0 0.0
      %1026 = vmatprep.subr.mxu0 0.0
      %1027 = vmatpush1.msra.mxu0 0.0
      %1028 = vmatprep.subr.mxu0 0.0
      %1029 = vmatpush1.msra.mxu0 0.0
      %1030 = vmatprep.subr.mxu0 0.0
      %1031 = vmatpush1.msra.mxu0 0.0
      %1032 = vmatprep.mubr.f32.mxu0 0.0
      %1033 = vmatmul.mubr.f32.gmra.mrb[0].mxu0 %v963
      %v1034 = vpop.f32.mrb[0].mxu0
      %v1035 = vadd.f32 0.0, %v1034
      %v1036 = vpop.f32.mrb[0].mxu0
      %1037 = vmatprep.mubr.f32.mxu0 0.0
      %1038 = vmatmul.mubr.f32.gmra.mrb[0].mxu0 %v966
      %v1039 = vpop.f32.mrb[0].mxu0
      %v1040 = vadd.f32 0.0, %v1039
      %v1041 = vpop.f32.mrb[0].mxu0
      %1042 = vdwg.mxu0
      %v1043 = vlaneseq
      %v1044 = vshrl.u32 %v1043, 7
      %v1045 = vsub.s32 0, %v1044
      %v1046 = vrot.slane %v1035, %v1045
      %1048 = vbcast.lane.b32.xlu0 %v1046, 256
      %v1049 = vpop.permute.xlu0 %1048
      %v1050 = vlaneseq
      %v1051 = vshrl.u32 %v1050, 7
      %v1052 = vsub.s32 1, %v1051
      %v1053 = vrot.slane %v1035, %v1052
      %1055 = vbcast.lane.b32.xlu0 %v1053, 256
      %v1056 = vpop.permute.xlu0 %1055
      %v1057 = vlaneseq
      %v1058 = vshrl.u32 %v1057, 7
      %v1059 = vsub.s32 2, %v1058
      %v1060 = vrot.slane %v1035, %v1059
      %1062 = vbcast.lane.b32.xlu0 %v1060, 256
      %v1063 = vpop.permute.xlu0 %1062
      %v1064 = vlaneseq
      %v1065 = vshrl.u32 %v1064, 7
      %v1066 = vsub.s32 3, %v1065
      %v1067 = vrot.slane %v1035, %v1066
      %1069 = vbcast.lane.b32.xlu0 %v1067, 256
      %v1070 = vpop.permute.xlu0 %1069
      %v1071 = vlaneseq
      %v1072 = vshrl.u32 %v1071, 7
      %v1073 = vsub.s32 4, %v1072
      %v1074 = vrot.slane %v1035, %v1073
      %1076 = vbcast.lane.b32.xlu0 %v1074, 256
      %v1077 = vpop.permute.xlu0 %1076
      %v1078 = vlaneseq
      %v1079 = vshrl.u32 %v1078, 7
      %v1080 = vsub.s32 5, %v1079
      %v1081 = vrot.slane %v1035, %v1080
      %1083 = vbcast.lane.b32.xlu0 %v1081, 256
      %v1084 = vpop.permute.xlu0 %1083
      %v1085 = vlaneseq
      %v1086 = vshrl.u32 %v1085, 7
      %v1087 = vsub.s32 6, %v1086
      %v1088 = vrot.slane %v1035, %v1087
      %1090 = vbcast.lane.b32.xlu0 %v1088, 256
      %v1091 = vpop.permute.xlu0 %1090
      %v1092 = vlaneseq
      %v1093 = vshrl.u32 %v1092, 7
      %v1094 = vsub.s32 7, %v1093
      %v1095 = vrot.slane %v1035, %v1094
      %1097 = vbcast.lane.b32.xlu0 %v1095, 256
      %v1098 = vpop.permute.xlu0 %1097
      %v1099 = vlaneseq
      %v1100 = vshrl.u32 %v1099, 7
      %v1101 = vsub.s32 0, %v1100
      %v1102 = vrot.slane %v1040, %v1101
      %1104 = vbcast.lane.b32.xlu0 %v1102, 256
      %v1105 = vpop.permute.xlu0 %1104
      %v1106 = vlaneseq
      %v1107 = vshrl.u32 %v1106, 7
      %v1108 = vsub.s32 1, %v1107
      %v1109 = vrot.slane %v1040, %v1108
      %1111 = vbcast.lane.b32.xlu0 %v1109, 256
      %v1112 = vpop.permute.xlu0 %1111
      %v1113 = vlaneseq
      %v1114 = vshrl.u32 %v1113, 7
      %v1115 = vsub.s32 2, %v1114
      %v1116 = vrot.slane %v1040, %v1115
      %1118 = vbcast.lane.b32.xlu0 %v1116, 256
      %v1119 = vpop.permute.xlu0 %1118
      %v1120 = vlaneseq
      %v1121 = vshrl.u32 %v1120, 7
      %v1122 = vsub.s32 3, %v1121
      %v1123 = vrot.slane %v1040, %v1122
      %1125 = vbcast.lane.b32.xlu0 %v1123, 256
      %v1126 = vpop.permute.xlu0 %1125
      %v1127 = vlaneseq
      %v1128 = vshrl.u32 %v1127, 7
      %v1129 = vsub.s32 4, %v1128
      %v1130 = vrot.slane %v1040, %v1129
      %1132 = vbcast.lane.b32.xlu0 %v1130, 256
      %v1133 = vpop.permute.xlu0 %1132
      %v1134 = vlaneseq
      %v1135 = vshrl.u32 %v1134, 7
      %v1136 = vsub.s32 5, %v1135
      %v1137 = vrot.slane %v1040, %v1136
      %1139 = vbcast.lane.b32.xlu0 %v1137, 256
      %v1140 = vpop.permute.xlu0 %1139
      %v1141 = vlaneseq
      %v1142 = vshrl.u32 %v1141, 7
      %v1143 = vsub.s32 6, %v1142
      %v1144 = vrot.slane %v1040, %v1143
      %1146 = vbcast.lane.b32.xlu0 %v1144, 256
      %v1147 = vpop.permute.xlu0 %1146
      %v1148 = vlaneseq
      %v1149 = vshrl.u32 %v1148, 7
      %v1150 = vsub.s32 7, %v1149
      %v1151 = vrot.slane %v1040, %v1150
      %1153 = vbcast.lane.b32.xlu0 %v1151, 256
      %v1154 = vpop.permute.xlu0 %1153
      %s1155 = scalar_lea.vmem %s2, 128
      %v1156 = vld [vmem:[%s1155] sm:$0xf]
      %v1157 = vld [vmem:[%s1155 + $0x4] sm:$0xf]
      %v1158 = vld [vmem:[%s1155 + $0x8] sm:$0xf]
      %v1159 = vld [vmem:[%s1155 + $0xc] sm:$0xf]
      %v1160 = vld [vmem:[%s1155 + $0x10] sm:$0xf]
      %v1161 = vld [vmem:[%s1155 + $0x14] sm:$0xf]
      %v1162 = vld [vmem:[%s1155 + $0x18] sm:$0xf]
      %v1163 = vld [vmem:[%s1155 + $0x1c] sm:$0xf]
      %v1164 = vld [vmem:[%s1155 + $0x20] sm:$0xf]
      %v1165 = vld [vmem:[%s1155 + $0x24] sm:$0xf]
      %v1166 = vld [vmem:[%s1155 + $0x28] sm:$0xf]
      %v1167 = vld [vmem:[%s1155 + $0x2c] sm:$0xf]
      %v1168 = vld [vmem:[%s1155 + $0x30] sm:$0xf]
      %v1169 = vld [vmem:[%s1155 + $0x34] sm:$0xf]
      %v1170 = vld [vmem:[%s1155 + $0x38] sm:$0xf]
      %v1171 = vld [vmem:[%s1155 + $0x3c] sm:$0xf]
      %v1172 = vmul.f32 %v1049, %v1156
      %v1173 = vmul.f32 %v1056, %v1157
      %v1174 = vmul.f32 %v1063, %v1158
      %v1175 = vmul.f32 %v1070, %v1159
      %v1176 = vmul.f32 %v1077, %v1160
      %v1177 = vmul.f32 %v1084, %v1161
      %v1178 = vmul.f32 %v1091, %v1162
      %v1179 = vmul.f32 %v1098, %v1163
      %v1180 = vmul.f32 %v1105, %v1164
      %v1181 = vmul.f32 %v1112, %v1165
      %v1182 = vmul.f32 %v1119, %v1166
      %v1183 = vmul.f32 %v1126, %v1167
      %v1184 = vmul.f32 %v1133, %v1168
      %v1185 = vmul.f32 %v1140, %v1169
      %v1186 = vmul.f32 %v1147, %v1170
      %v1187 = vmul.f32 %v1154, %v1171
      %v1188 = vsel %vm430, %v1172, 0.0
      %v1189 = vrot.slane %v1188, 4
      %v1190 = vadd.f32 %v1188, %v1189
      %v1191 = vrot.slane %v1190, 2
      %v1192 = vadd.f32 %v1190, %v1191
      %v1193 = vrot.slane %v1192, 1
      %v1194 = vadd.f32 %v1192, %v1193
      %v1195 = vsel %vm430, %v1173, 0.0
      %v1196 = vrot.slane %v1195, 4
      %v1197 = vadd.f32 %v1195, %v1196
      %v1198 = vrot.slane %v1197, 2
      %v1199 = vadd.f32 %v1197, %v1198
      %v1200 = vrot.slane %v1199, 1
      %v1201 = vadd.f32 %v1199, %v1200
      %v1202 = vsel %vm430, %v1174, 0.0
      %v1203 = vrot.slane %v1202, 4
      %v1204 = vadd.f32 %v1202, %v1203
      %v1205 = vrot.slane %v1204, 2
      %v1206 = vadd.f32 %v1204, %v1205
      %v1207 = vrot.slane %v1206, 1
      %v1208 = vadd.f32 %v1206, %v1207
      %v1209 = vsel %vm430, %v1175, 0.0
      %v1210 = vrot.slane %v1209, 4
      %v1211 = vadd.f32 %v1209, %v1210
      %v1212 = vrot.slane %v1211, 2
      %v1213 = vadd.f32 %v1211, %v1212
      %v1214 = vrot.slane %v1213, 1
      %v1215 = vadd.f32 %v1213, %v1214
      %v1216 = vsel %vm430, %v1176, 0.0
      %v1217 = vrot.slane %v1216, 4
      %v1218 = vadd.f32 %v1216, %v1217
      %v1219 = vrot.slane %v1218, 2
      %v1220 = vadd.f32 %v1218, %v1219
      %v1221 = vrot.slane %v1220, 1
      %v1222 = vadd.f32 %v1220, %v1221
      %v1223 = vsel %vm430, %v1177, 0.0
      %v1224 = vrot.slane %v1223, 4
      %v1225 = vadd.f32 %v1223, %v1224
      %v1226 = vrot.slane %v1225, 2
      %v1227 = vadd.f32 %v1225, %v1226
      %v1228 = vrot.slane %v1227, 1
      %v1229 = vadd.f32 %v1227, %v1228
      %v1230 = vsel %vm430, %v1178, 0.0
      %v1231 = vrot.slane %v1230, 4
      %v1232 = vadd.f32 %v1230, %v1231
      %v1233 = vrot.slane %v1232, 2
      %v1234 = vadd.f32 %v1232, %v1233
      %v1235 = vrot.slane %v1234, 1
      %v1236 = vadd.f32 %v1234, %v1235
      %v1237 = vsel %vm430, %v1179, 0.0
      %v1238 = vrot.slane %v1237, 4
      %v1239 = vadd.f32 %v1237, %v1238
      %v1240 = vrot.slane %v1239, 2
      %v1241 = vadd.f32 %v1239, %v1240
      %v1242 = vrot.slane %v1241, 1
      %v1243 = vadd.f32 %v1241, %v1242
      %v1244 = vsel %vm430, %v1180, 0.0
      %v1245 = vrot.slane %v1244, 4
      %v1246 = vadd.f32 %v1244, %v1245
      %v1247 = vrot.slane %v1246, 2
      %v1248 = vadd.f32 %v1246, %v1247
      %v1249 = vrot.slane %v1248, 1
      %v1250 = vadd.f32 %v1248, %v1249
      %v1251 = vsel %vm430, %v1181, 0.0
      %v1252 = vrot.slane %v1251, 4
      %v1253 = vadd.f32 %v1251, %v1252
      %v1254 = vrot.slane %v1253, 2
      %v1255 = vadd.f32 %v1253, %v1254
      %v1256 = vrot.slane %v1255, 1
      %v1257 = vadd.f32 %v1255, %v1256
      %v1258 = vsel %vm430, %v1182, 0.0
      %v1259 = vrot.slane %v1258, 4
      %v1260 = vadd.f32 %v1258, %v1259
      %v1261 = vrot.slane %v1260, 2
      %v1262 = vadd.f32 %v1260, %v1261
      %v1263 = vrot.slane %v1262, 1
      %v1264 = vadd.f32 %v1262, %v1263
      %v1265 = vsel %vm430, %v1183, 0.0
      %v1266 = vrot.slane %v1265, 4
      %v1267 = vadd.f32 %v1265, %v1266
      %v1268 = vrot.slane %v1267, 2
      %v1269 = vadd.f32 %v1267, %v1268
      %v1270 = vrot.slane %v1269, 1
      %v1271 = vadd.f32 %v1269, %v1270
      %v1272 = vsel %vm430, %v1184, 0.0
      %v1273 = vrot.slane %v1272, 4
      %v1274 = vadd.f32 %v1272, %v1273
      %v1275 = vrot.slane %v1274, 2
      %v1276 = vadd.f32 %v1274, %v1275
      %v1277 = vrot.slane %v1276, 1
      %v1278 = vadd.f32 %v1276, %v1277
      %v1279 = vsel %vm430, %v1185, 0.0
      %v1280 = vrot.slane %v1279, 4
      %v1281 = vadd.f32 %v1279, %v1280
      %v1282 = vrot.slane %v1281, 2
      %v1283 = vadd.f32 %v1281, %v1282
      %v1284 = vrot.slane %v1283, 1
      %v1285 = vadd.f32 %v1283, %v1284
      %v1286 = vsel %vm430, %v1186, 0.0
      %v1287 = vrot.slane %v1286, 4
      %v1288 = vadd.f32 %v1286, %v1287
      %v1289 = vrot.slane %v1288, 2
      %v1290 = vadd.f32 %v1288, %v1289
      %v1291 = vrot.slane %v1290, 1
      %v1292 = vadd.f32 %v1290, %v1291
      %v1293 = vsel %vm430, %v1187, 0.0
      %v1294 = vrot.slane %v1293, 4
      %v1295 = vadd.f32 %v1293, %v1294
      %v1296 = vrot.slane %v1295, 2
      %v1297 = vadd.f32 %v1295, %v1296
      %v1298 = vrot.slane %v1297, 1
      %v1299 = vadd.f32 %v1297, %v1298
      %v1316 = vsel %vm559, %v1201, %v1194
      %v1317 = vsel %vm561, %v1208, %v1316
      %v1318 = vsel %vm563, %v1215, %v1317
      %v1319 = vsel %vm565, %v1222, %v1318
      %v1320 = vsel %vm567, %v1229, %v1319
      %v1321 = vsel %vm569, %v1236, %v1320
      %v1322 = vsel %vm571, %v1243, %v1321
      %v1323 = vsel %vm559, %v1257, %v1250
      %v1324 = vsel %vm561, %v1264, %v1323
      %v1325 = vsel %vm563, %v1271, %v1324
      %v1326 = vsel %vm565, %v1278, %v1325
      %v1327 = vsel %vm567, %v1285, %v1326
      %v1328 = vsel %vm569, %v1292, %v1327
      %v1329 = vsel %vm571, %v1299, %v1328
      %v1332 = vadd.f32 %v957, %v1322
      %v1333 = vadd.f32 %v958, %v1329
      %s1334 = scalar_lea.vmem %s0, 48
      %v1335 = vld [vmem:[%s1334] sm:$0xff]
      %v1336 = vld [vmem:[%s1334 + $0x8] sm:$0xff]
      %v1338 = vsel %vm204, %v1335, 0
      %v1341 = vsel %vm204, %v1336, 0
      %1343 = vmatprep.subr.mxu0 0.0
      %1344 = vmatpush1.msra.mxu0 %v198
      %1345 = vmatprep.subr.mxu0 0.0
      %1346 = vmatpush1.msra.mxu0 %v199
      %1347 = vmatprep.subr.mxu0 0.0
      %1348 = vmatpush1.msra.mxu0 0.0
      %1349 = vmatprep.subr.mxu0 0.0
      %1350 = vmatpush1.msra.mxu0 0.0
      %1351 = vmatprep.subr.mxu0 0.0
      %1352 = vmatpush1.msra.mxu0 0.0
      %1353 = vmatprep.subr.mxu0 0.0
      %1354 = vmatpush1.msra.mxu0 0.0
      %1355 = vmatprep.subr.mxu0 0.0
      %1356 = vmatpush1.msra.mxu0 0.0
      %1357 = vmatprep.subr.mxu0 0.0
      %1358 = vmatpush1.msra.mxu0 0.0
      %1359 = vmatprep.subr.mxu0 0.0
      %1360 = vmatpush1.msra.mxu0 0.0
      %1361 = vmatprep.subr.mxu0 0.0
      %1362 = vmatpush1.msra.mxu0 0.0
      %1363 = vmatprep.subr.mxu0 0.0
      %1364 = vmatpush1.msra.mxu0 0.0
      %1365 = vmatprep.subr.mxu0 0.0
      %1366 = vmatpush1.msra.mxu0 0.0
      %1367 = vmatprep.subr.mxu0 0.0
      %1368 = vmatpush1.msra.mxu0 0.0
      %1369 = vmatprep.subr.mxu0 0.0
      %1370 = vmatpush1.msra.mxu0 0.0
      %1371 = vmatprep.subr.mxu0 0.0
      %1372 = vmatpush1.msra.mxu0 0.0
      %1373 = vmatprep.subr.mxu0 0.0
      %1374 = vmatpush1.msra.mxu0 0.0
      %1375 = vmatprep.subr.mxu0 0.0
      %1376 = vmatpush1.msra.mxu0 0.0
      %1377 = vmatprep.subr.mxu0 0.0
      %1378 = vmatpush1.msra.mxu0 0.0
      %1379 = vmatprep.subr.mxu0 0.0
      %1380 = vmatpush1.msra.mxu0 0.0
      %1381 = vmatprep.subr.mxu0 0.0
      %1382 = vmatpush1.msra.mxu0 0.0
      %1383 = vmatprep.subr.mxu0 0.0
      %1384 = vmatpush1.msra.mxu0 0.0
      %1385 = vmatprep.subr.mxu0 0.0
      %1386 = vmatpush1.msra.mxu0 0.0
      %1387 = vmatprep.subr.mxu0 0.0
      %1388 = vmatpush1.msra.mxu0 0.0
      %1389 = vmatprep.subr.mxu0 0.0
      %1390 = vmatpush1.msra.mxu0 0.0
      %1391 = vmatprep.subr.mxu0 0.0
      %1392 = vmatpush1.msra.mxu0 0.0
      %1393 = vmatprep.subr.mxu0 0.0
      %1394 = vmatpush1.msra.mxu0 0.0
      %1395 = vmatprep.subr.mxu0 0.0
      %1396 = vmatpush1.msra.mxu0 0.0
      %1397 = vmatprep.subr.mxu0 0.0
      %1398 = vmatpush1.msra.mxu0 0.0
      %1399 = vmatprep.subr.mxu0 0.0
      %1400 = vmatpush1.msra.mxu0 0.0
      %1401 = vmatprep.subr.mxu0 0.0
      %1402 = vmatpush1.msra.mxu0 0.0
      %1403 = vmatprep.subr.mxu0 0.0
      %1404 = vmatpush1.msra.mxu0 0.0
      %1405 = vmatprep.subr.mxu0 0.0
      %1406 = vmatpush1.msra.mxu0 0.0
      %1407 = vmatprep.mubr.f32.mxu0 0.0
      %1408 = vmatmul.mubr.f32.gmra.mrb[0].mxu0 %v1338
      %v1409 = vpop.f32.mrb[0].mxu0
      %v1410 = vadd.f32 0.0, %v1409
      %v1411 = vpop.f32.mrb[0].mxu0
      %1412 = vmatprep.mubr.f32.mxu0 0.0
      %1413 = vmatmul.mubr.f32.gmra.mrb[0].mxu0 %v1341
      %v1414 = vpop.f32.mrb[0].mxu0
      %v1415 = vadd.f32 0.0, %v1414
      %v1416 = vpop.f32.mrb[0].mxu0
      %1417 = vdwg.mxu0
      %v1418 = vlaneseq
      %v1419 = vshrl.u32 %v1418, 7
      %v1420 = vsub.s32 0, %v1419
      %v1421 = vrot.slane %v1410, %v1420
      %1423 = vbcast.lane.b32.xlu0 %v1421, 256
      %v1424 = vpop.permute.xlu0 %1423
      %v1425 = vlaneseq
      %v1426 = vshrl.u32 %v1425, 7
      %v1427 = vsub.s32 1, %v1426
      %v1428 = vrot.slane %v1410, %v1427
      %1430 = vbcast.lane.b32.xlu0 %v1428, 256
      %v1431 = vpop.permute.xlu0 %1430
      %v1432 = vlaneseq
      %v1433 = vshrl.u32 %v1432, 7
      %v1434 = vsub.s32 2, %v1433
      %v1435 = vrot.slane %v1410, %v1434
      %1437 = vbcast.lane.b32.xlu0 %v1435, 256
      %v1438 = vpop.permute.xlu0 %1437
      %v1439 = vlaneseq
      %v1440 = vshrl.u32 %v1439, 7
      %v1441 = vsub.s32 3, %v1440
      %v1442 = vrot.slane %v1410, %v1441
      %1444 = vbcast.lane.b32.xlu0 %v1442, 256
      %v1445 = vpop.permute.xlu0 %1444
      %v1446 = vlaneseq
      %v1447 = vshrl.u32 %v1446, 7
      %v1448 = vsub.s32 4, %v1447
      %v1449 = vrot.slane %v1410, %v1448
      %1451 = vbcast.lane.b32.xlu0 %v1449, 256
      %v1452 = vpop.permute.xlu0 %1451
      %v1453 = vlaneseq
      %v1454 = vshrl.u32 %v1453, 7
      %v1455 = vsub.s32 5, %v1454
      %v1456 = vrot.slane %v1410, %v1455
      %1458 = vbcast.lane.b32.xlu0 %v1456, 256
      %v1459 = vpop.permute.xlu0 %1458
      %v1460 = vlaneseq
      %v1461 = vshrl.u32 %v1460, 7
      %v1462 = vsub.s32 6, %v1461
      %v1463 = vrot.slane %v1410, %v1462
      %1465 = vbcast.lane.b32.xlu0 %v1463, 256
      %v1466 = vpop.permute.xlu0 %1465
      %v1467 = vlaneseq
      %v1468 = vshrl.u32 %v1467, 7
      %v1469 = vsub.s32 7, %v1468
      %v1470 = vrot.slane %v1410, %v1469
      %1472 = vbcast.lane.b32.xlu0 %v1470, 256
      %v1473 = vpop.permute.xlu0 %1472
      %v1474 = vlaneseq
      %v1475 = vshrl.u32 %v1474, 7
      %v1476 = vsub.s32 0, %v1475
      %v1477 = vrot.slane %v1415, %v1476
      %1479 = vbcast.lane.b32.xlu0 %v1477, 256
      %v1480 = vpop.permute.xlu0 %1479
      %v1481 = vlaneseq
      %v1482 = vshrl.u32 %v1481, 7
      %v1483 = vsub.s32 1, %v1482
      %v1484 = vrot.slane %v1415, %v1483
      %1486 = vbcast.lane.b32.xlu0 %v1484, 256
      %v1487 = vpop.permute.xlu0 %1486
      %v1488 = vlaneseq
      %v1489 = vshrl.u32 %v1488, 7
      %v1490 = vsub.s32 2, %v1489
      %v1491 = vrot.slane %v1415, %v1490
      %1493 = vbcast.lane.b32.xlu0 %v1491, 256
      %v1494 = vpop.permute.xlu0 %1493
      %v1495 = vlaneseq
      %v1496 = vshrl.u32 %v1495, 7
      %v1497 = vsub.s32 3, %v1496
      %v1498 = vrot.slane %v1415, %v1497
      %1500 = vbcast.lane.b32.xlu0 %v1498, 256
      %v1501 = vpop.permute.xlu0 %1500
      %v1502 = vlaneseq
      %v1503 = vshrl.u32 %v1502, 7
      %v1504 = vsub.s32 4, %v1503
      %v1505 = vrot.slane %v1415, %v1504
      %1507 = vbcast.lane.b32.xlu0 %v1505, 256
      %v1508 = vpop.permute.xlu0 %1507
      %v1509 = vlaneseq
      %v1510 = vshrl.u32 %v1509, 7
      %v1511 = vsub.s32 5, %v1510
      %v1512 = vrot.slane %v1415, %v1511
      %1514 = vbcast.lane.b32.xlu0 %v1512, 256
      %v1515 = vpop.permute.xlu0 %1514
      %v1516 = vlaneseq
      %v1517 = vshrl.u32 %v1516, 7
      %v1518 = vsub.s32 6, %v1517
      %v1519 = vrot.slane %v1415, %v1518
      %1521 = vbcast.lane.b32.xlu0 %v1519, 256
      %v1522 = vpop.permute.xlu0 %1521
      %v1523 = vlaneseq
      %v1524 = vshrl.u32 %v1523, 7
      %v1525 = vsub.s32 7, %v1524
      %v1526 = vrot.slane %v1415, %v1525
      %1528 = vbcast.lane.b32.xlu0 %v1526, 256
      %v1529 = vpop.permute.xlu0 %1528
      %s1530 = scalar_lea.vmem %s2, 192
      %v1531 = vld [vmem:[%s1530] sm:$0xf]
      %v1532 = vld [vmem:[%s1530 + $0x4] sm:$0xf]
      %v1533 = vld [vmem:[%s1530 + $0x8] sm:$0xf]
      %v1534 = vld [vmem:[%s1530 + $0xc] sm:$0xf]
      %v1535 = vld [vmem:[%s1530 + $0x10] sm:$0xf]
      %v1536 = vld [vmem:[%s1530 + $0x14] sm:$0xf]
      %v1537 = vld [vmem:[%s1530 + $0x18] sm:$0xf]
      %v1538 = vld [vmem:[%s1530 + $0x1c] sm:$0xf]
      %v1539 = vld [vmem:[%s1530 + $0x20] sm:$0xf]
      %v1540 = vld [vmem:[%s1530 + $0x24] sm:$0xf]
      %v1541 = vld [vmem:[%s1530 + $0x28] sm:$0xf]
      %v1542 = vld [vmem:[%s1530 + $0x2c] sm:$0xf]
      %v1543 = vld [vmem:[%s1530 + $0x30] sm:$0xf]
      %v1544 = vld [vmem:[%s1530 + $0x34] sm:$0xf]
      %v1545 = vld [vmem:[%s1530 + $0x38] sm:$0xf]
      %v1546 = vld [vmem:[%s1530 + $0x3c] sm:$0xf]
      %v1547 = vmul.f32 %v1424, %v1531
      %v1548 = vmul.f32 %v1431, %v1532
      %v1549 = vmul.f32 %v1438, %v1533
      %v1550 = vmul.f32 %v1445, %v1534
      %v1551 = vmul.f32 %v1452, %v1535
      %v1552 = vmul.f32 %v1459, %v1536
      %v1553 = vmul.f32 %v1466, %v1537
      %v1554 = vmul.f32 %v1473, %v1538
      %v1555 = vmul.f32 %v1480, %v1539
      %v1556 = vmul.f32 %v1487, %v1540
      %v1557 = vmul.f32 %v1494, %v1541
      %v1558 = vmul.f32 %v1501, %v1542
      %v1559 = vmul.f32 %v1508, %v1543
      %v1560 = vmul.f32 %v1515, %v1544
      %v1561 = vmul.f32 %v1522, %v1545
      %v1562 = vmul.f32 %v1529, %v1546
      %v1563 = vsel %vm430, %v1547, 0.0
      %v1564 = vrot.slane %v1563, 4
      %v1565 = vadd.f32 %v1563, %v1564
      %v1566 = vrot.slane %v1565, 2
      %v1567 = vadd.f32 %v1565, %v1566
      %v1568 = vrot.slane %v1567, 1
      %v1569 = vadd.f32 %v1567, %v1568
      %v1570 = vsel %vm430, %v1548, 0.0
      %v1571 = vrot.slane %v1570, 4
      %v1572 = vadd.f32 %v1570, %v1571
      %v1573 = vrot.slane %v1572, 2
      %v1574 = vadd.f32 %v1572, %v1573
      %v1575 = vrot.slane %v1574, 1
      %v1576 = vadd.f32 %v1574, %v1575
      %v1577 = vsel %vm430, %v1549, 0.0
      %v1578 = vrot.slane %v1577, 4
      %v1579 = vadd.f32 %v1577, %v1578
      %v1580 = vrot.slane %v1579, 2
      %v1581 = vadd.f32 %v1579, %v1580
      %v1582 = vrot.slane %v1581, 1
      %v1583 = vadd.f32 %v1581, %v1582
      %v1584 = vsel %vm430, %v1550, 0.0
      %v1585 = vrot.slane %v1584, 4
      %v1586 = vadd.f32 %v1584, %v1585
      %v1587 = vrot.slane %v1586, 2
      %v1588 = vadd.f32 %v1586, %v1587
      %v1589 = vrot.slane %v1588, 1
      %v1590 = vadd.f32 %v1588, %v1589
      %v1591 = vsel %vm430, %v1551, 0.0
      %v1592 = vrot.slane %v1591, 4
      %v1593 = vadd.f32 %v1591, %v1592
      %v1594 = vrot.slane %v1593, 2
      %v1595 = vadd.f32 %v1593, %v1594
      %v1596 = vrot.slane %v1595, 1
      %v1597 = vadd.f32 %v1595, %v1596
      %v1598 = vsel %vm430, %v1552, 0.0
      %v1599 = vrot.slane %v1598, 4
      %v1600 = vadd.f32 %v1598, %v1599
      %v1601 = vrot.slane %v1600, 2
      %v1602 = vadd.f32 %v1600, %v1601
      %v1603 = vrot.slane %v1602, 1
      %v1604 = vadd.f32 %v1602, %v1603
      %v1605 = vsel %vm430, %v1553, 0.0
      %v1606 = vrot.slane %v1605, 4
      %v1607 = vadd.f32 %v1605, %v1606
      %v1608 = vrot.slane %v1607, 2
      %v1609 = vadd.f32 %v1607, %v1608
      %v1610 = vrot.slane %v1609, 1
      %v1611 = vadd.f32 %v1609, %v1610
      %v1612 = vsel %vm430, %v1554, 0.0
      %v1613 = vrot.slane %v1612, 4
      %v1614 = vadd.f32 %v1612, %v1613
      %v1615 = vrot.slane %v1614, 2
      %v1616 = vadd.f32 %v1614, %v1615
      %v1617 = vrot.slane %v1616, 1
      %v1618 = vadd.f32 %v1616, %v1617
      %v1619 = vsel %vm430, %v1555, 0.0
      %v1620 = vrot.slane %v1619, 4
      %v1621 = vadd.f32 %v1619, %v1620
      %v1622 = vrot.slane %v1621, 2
      %v1623 = vadd.f32 %v1621, %v1622
      %v1624 = vrot.slane %v1623, 1
      %v1625 = vadd.f32 %v1623, %v1624
      %v1626 = vsel %vm430, %v1556, 0.0
      %v1627 = vrot.slane %v1626, 4
      %v1628 = vadd.f32 %v1626, %v1627
      %v1629 = vrot.slane %v1628, 2
      %v1630 = vadd.f32 %v1628, %v1629
      %v1631 = vrot.slane %v1630, 1
      %v1632 = vadd.f32 %v1630, %v1631
      %v1633 = vsel %vm430, %v1557, 0.0
      %v1634 = vrot.slane %v1633, 4
      %v1635 = vadd.f32 %v1633, %v1634
      %v1636 = vrot.slane %v1635, 2
      %v1637 = vadd.f32 %v1635, %v1636
      %v1638 = vrot.slane %v1637, 1
      %v1639 = vadd.f32 %v1637, %v1638
      %v1640 = vsel %vm430, %v1558, 0.0
      %v1641 = vrot.slane %v1640, 4
      %v1642 = vadd.f32 %v1640, %v1641
      %v1643 = vrot.slane %v1642, 2
      %v1644 = vadd.f32 %v1642, %v1643
      %v1645 = vrot.slane %v1644, 1
      %v1646 = vadd.f32 %v1644, %v1645
      %v1647 = vsel %vm430, %v1559, 0.0
      %v1648 = vrot.slane %v1647, 4
      %v1649 = vadd.f32 %v1647, %v1648
      %v1650 = vrot.slane %v1649, 2
      %v1651 = vadd.f32 %v1649, %v1650
      %v1652 = vrot.slane %v1651, 1
      %v1653 = vadd.f32 %v1651, %v1652
      %v1654 = vsel %vm430, %v1560, 0.0
      %v1655 = vrot.slane %v1654, 4
      %v1656 = vadd.f32 %v1654, %v1655
      %v1657 = vrot.slane %v1656, 2
      %v1658 = vadd.f32 %v1656, %v1657
      %v1659 = vrot.slane %v1658, 1
      %v1660 = vadd.f32 %v1658, %v1659
      %v1661 = vsel %vm430, %v1561, 0.0
      %v1662 = vrot.slane %v1661, 4
      %v1663 = vadd.f32 %v1661, %v1662
      %v1664 = vrot.slane %v1663, 2
      %v1665 = vadd.f32 %v1663, %v1664
      %v1666 = vrot.slane %v1665, 1
      %v1667 = vadd.f32 %v1665, %v1666
      %v1668 = vsel %vm430, %v1562, 0.0
      %v1669 = vrot.slane %v1668, 4
      %v1670 = vadd.f32 %v1668, %v1669
      %v1671 = vrot.slane %v1670, 2
      %v1672 = vadd.f32 %v1670, %v1671
      %v1673 = vrot.slane %v1672, 1
      %v1674 = vadd.f32 %v1672, %v1673
      %v1691 = vsel %vm559, %v1576, %v1569
      %v1692 = vsel %vm561, %v1583, %v1691
      %v1693 = vsel %vm563, %v1590, %v1692
      %v1694 = vsel %vm565, %v1597, %v1693
      %v1695 = vsel %vm567, %v1604, %v1694
      %v1696 = vsel %vm569, %v1611, %v1695
      %v1697 = vsel %vm571, %v1618, %v1696
      %v1698 = vsel %vm559, %v1632, %v1625
      %v1699 = vsel %vm561, %v1639, %v1698
      %v1700 = vsel %vm563, %v1646, %v1699
      %v1701 = vsel %vm565, %v1653, %v1700
      %v1702 = vsel %vm567, %v1660, %v1701
      %v1703 = vsel %vm569, %v1667, %v1702
      %v1704 = vsel %vm571, %v1674, %v1703
      %v1707 = vadd.f32 %v1332, %v1697
      %v1708 = vadd.f32 %v1333, %v1704
      %vm1709 = vcmask 64512
      %1710 = vst.msk [vmem:[%s197] sm:$0xff] %vm1709, %v1707
      %1711 = vst.msk [vmem:[%s197 + $0x8] sm:$0xff] %vm1709, %v1708
      %p1712 = scmp.lt.s32.totalorder %s15, 1
      %s1713 = scalar_select %p1712, %s15, 1
      %s1714 = smul.addr %s1713, 2
      %s1715 = smul.addr %s1714, 8
      %s1716 = scalar_lea.vmem %s4, %s1715
      // Predicated region
      $region37: #{tpu_custom_call.1} parent=35 // pred_check
        %p1717 = pneg %p122
      $region38: #{tpu_custom_call.1} parent=35 // pred_check_branch
        %1719 = sbr.rel (%p1717) target = $region40
      $region39: #{tpu_custom_call.1} parent=35 // pred_region
        _
      $region40: #{tpu_custom_call.1} parent=35 // pred_fallthru
        _
    $region36: #{tpu_custom_call.1} parent=5 // pred_fallthru
      _
    %p1720 = scmp.le.s32.totalorder 2, %s10
    // Predicated region
    $region41: #{tpu_custom_call.1} parent=5 // pred_check
      %p1721 = pneg %p1720
    $region42: #{tpu_custom_call.1} parent=5 // pred_check_branch
      %1723 = sbr.rel (%p1721) target = $region44
    $region43: #{tpu_custom_call.1} parent=5 // pred_region
      %s1724 = ssub.s32 %s10, 2
      // Predicated region
      $region45: #{tpu_custom_call.1} parent=43 // pred_check
        %p1725 = pneg %p128
      $region46: #{tpu_custom_call.1} parent=43 // pred_check_branch
        %1727 = sbr.rel (%p1725) target = $region48
      $region47: #{tpu_custom_call.1} parent=43 // pred_region
        %p1728 = scmp.lt.s32.totalorder %s16, 1
        %s1729 = scalar_select %p1728, %s16, 1
        %s1730 = smul.addr %s1729, 2
        %s1731 = smul.addr %s1730, 8
        %s1732 = scalar_lea.vmem %s4, %s1731
      $region48: #{tpu_custom_call.1} parent=43 // pred_fallthru
        _
    $region44: #{tpu_custom_call.1} parent=5 // pred_fallthru
      _
  $region6: #{tpu_custom_call.1} parent=0 // loop_footer
    %s14 = sadd.s32 1, %s10
  $region7: #{tpu_custom_call.1} parent=0 // loop_footer_branch
    %9 = sbr.rel target = $region3
  $region8: #{tpu_custom_call.1} parent=0 // loop_exit
    _

</llo_original>
